<compile_context>
chip_gen: v7x
topology: tpu7x:2x2x1
jax: 0.10.0
libtpu: 0.0.40
codegen_flags: <defaults>
</compile_context>

<pallas_src>
import math

import jax
import jax.numpy as jnp
import numpy as np
from jax.experimental import pallas as pl
from jax.experimental.pallas import tpu as pltpu

# ---------------- hyperparameters (mirror EpsilonTheta.__init__) ----------------
TARGET_DIM = 16            # target_dim == spatial length of `inputs`
COND_LENGTH = 8            # cond_length
RESIDUAL_LAYERS = 8
RESIDUAL_CHANNELS = 8
DILATION_CYCLE = 2
RESIDUAL_HIDDEN = 64
EMB_SIZE = RESIDUAL_HIDDEN // 2   # GaussianFourierProjection embedding_size
BATCH = 2

NEG_SLOPE = 0.4

T = TARGET_DIM
TH = T // 2
CL = COND_LENGTH
RC = RESIDUAL_CHANNELS
NL = RESIDUAL_LAYERS
HID = RESIDUAL_HIDDEN
EMB = EMB_SIZE
B = BATCH
LPAD = T + 4               # length after the pad=2 circular 1x1 projections
BL = B * LPAD              # batch stacked along the lane axis
INV_SQRT2 = 1.0 / math.sqrt(2.0)
INV_SQRT_NL = 1.0 / math.sqrt(NL)

# ---- packed parameter slab layout (single f32 (PAR_ROWS, PAR_COLS) array) ----
# all row offsets are multiples of 8 (sublane-tile aligned)
R_IP = 0                   # rows [0,8):   col0 ip_w, col1 ip_b
R_FW = 8                   # rows [8,40):  GaussianFourier W (col 0)
R_L1 = 40                  # rows [40,56): block-diag linear1 (B*CL, B*TH)
R_L2 = 56                  # rows [56,72): block-diag linear2 with pad folded (B*TH, BL)
R_MISC = 72                # row 72: linear1 bias (1,B*TH); row 73: linear2+pad bias (1,BL)
R_EFF = 80                 # rows [80,208): eff_w = sum_k(dil_w_k) @ diff_w  (NL*2RC, HID)
R_DIL = 208                # rows [208,336): dil taps (3RC) | cbias | condp_w
R_OUT = 336                # rows [336,464): outp_w (RC) | outp_b
R_TAIL = 464               # rows [464,472): skip conv; row 472: output conv
R_SP1 = 480                # per-segment circular shift matrices (BL,BL)
R_SM1 = 520
R_SP2 = 560
R_SM2 = 600
R_SEG = 640                # rows [640,642): per-batch segment broadcast (B, BL)
PAR_ROWS = 648
PAR_COLS = 64
C_CBIAS = 3 * RC           # 24: dil_b + condp_b + eff_b (all folded)
C_CPW = 3 * RC + 1         # 25: conditioner projection scale
C_OUTB = RC                # 8
C_TAILB = 3 * RC           # 24

# ---------------- parameters (deterministic synthetic init, torch-like layouts) ----------------
PARAM_SPECS = [
    ("ip_w",    (RC, 1),              1.0),                    # Conv1d(1, RC, 1) weight
    ("ip_b",    (RC, 1),              0.1),
    ("fw",      (EMB, 1),             1.0),                    # GaussianFourierProjection.W
    ("l1_w",    (TH, CL),             1.0 / math.sqrt(CL)),    # Linear(CL, T//2)
    ("l1_b",    (1, TH),              0.1),
    ("l2_w",    (T, TH),              1.0 / math.sqrt(TH)),
    ("l2_b",    (1, T),               0.1),
    ("diff_w",  (NL, RC, HID),        1.0 / math.sqrt(HID)),   # Linear(HID, RC) per layer
    ("diff_b",  (NL, RC, 1),          0.1),
    ("condp_w", (NL, 2 * RC, 1),      1.0),                    # Conv1d(1, 2RC, 1) per layer
    ("condp_b", (NL, 2 * RC, 1),      0.1),
    ("dil_w",   (NL, 2 * RC, RC, 3),  1.0 / math.sqrt(3 * RC)),  # Conv1d(RC, 2RC, 3) per layer
    ("dil_b",   (NL, 2 * RC, 1),      0.1),
    ("outp_w",  (NL, 2 * RC, RC),     1.0 / math.sqrt(RC)),      # Conv1d(RC, 2RC, 1) per layer
    ("outp_b",  (NL, 2 * RC, 1),      0.1),
    ("skp_w",   (RC, RC, 3),          1.0 / math.sqrt(3 * RC)),  # Conv1d(RC, RC, 3)
    ("skp_b",   (RC, 1),              0.1),
    ("op_w",    (1, RC, 3),           1.0 / math.sqrt(3 * RC)),  # Conv1d(RC, 1, 3)
    ("op_b",    (1, 1),               0.1),
]


def init_params(key):
    keys = jax.random.split(key, len(PARAM_SPECS))
    return {
        name: jax.random.normal(k, shape, dtype=jnp.float32) * scale
        for (name, shape, scale), k in zip(PARAM_SPECS, keys)
    }


def _leaky(v):
    return jnp.where(v >= 0, v, NEG_SLOPE * v)


# ---------------- one-time parameter packing (wrapper glue: 19 tensors -> 1 slab) ----------------
def pack_params(p):
    a = {k: np.asarray(v, np.float32) for k, v in p.items()}

    def seg_shift_matrix(s):
        # (y @ S)[:, b*L + n] = y[:, b*L + ((n - s) mod L)]  (circular within each segment)
        S = np.zeros((BL, BL), np.float32)
        for n in range(BL):
            b, nl = divmod(n, LPAD)
            S[b * LPAD + (nl - s) % LPAD, n] = 1.0
        return S

    # circular pad (by 2) selection: (B*T, B*L); commutes with leaky_relu.
    PADF = np.zeros((B * T, BL), np.float32)
    for b in range(B):
        for n in range(LPAD):
            PADF[b * T + (n - 2) % T, b * LPAD + n] = 1.0

    P = np.zeros((PAR_ROWS, PAR_COLS), np.float32)
    # input projection Conv1d(1, RC, 1)
    P[R_IP:R_IP + RC, 0] = a["ip_w"][:, 0]
    P[R_IP:R_IP + RC, 1] = a["ip_b"][:, 0]
    # Gaussian-Fourier W
    P[R_FW:R_FW + EMB, 0] = a["fw"][:, 0]
    # cond upsampler: block-diag linears, pad folded into linear2
    eyeB = np.eye(B, dtype=np.float32)
    P[R_L1:R_L1 + B * CL, 0:B * TH] = np.kron(eyeB, a["l1_w"].T)
    P[R_L2:R_L2 + B * TH, 0:BL] = np.kron(eyeB, a["l2_w"].T) @ PADF
    P[R_MISC, 0:B * TH] = np.tile(a["l1_b"], (1, B))[0]
    P[R_MISC + 1, 0:BL] = (np.tile(a["l2_b"], (1, B)) @ PADF)[0]
    # diffusion-step bias folded through the dilated conv (position-constant input):
    #   eff = (sum_k dil_w_k) @ (diff_w @ demb + diff_b)
    wsum = a["dil_w"].sum(axis=3)                                   # (NL, 2RC, RC)
    eff_w = np.einsum("loc,lch->loh", wsum, a["diff_w"]).reshape(NL * 2 * RC, HID)
    eff_b = np.einsum("loc,lcx->lox", wsum, a["diff_b"]).reshape(NL * 2 * RC, 1)
    P[R_EFF:R_EFF + NL * 2 * RC, 0:HID] = eff_w
    # per-layer dilated conv (tap-major columns) + fully folded bias + conditioner scale
    P[R_DIL:R_DIL + NL * 2 * RC, 0:3 * RC] = (
        a["dil_w"].transpose(0, 1, 3, 2).reshape(NL * 2 * RC, 3 * RC))
    P[R_DIL:R_DIL + NL * 2 * RC, C_CBIAS] = (
        a["dil_b"].reshape(-1, 1) + a["condp_b"].reshape(-1, 1) + eff_b)[:, 0]
    P[R_DIL:R_DIL + NL * 2 * RC, C_CPW] = a["condp_w"].reshape(-1)
    # per-layer output projection
    P[R_OUT:R_OUT + NL * 2 * RC, 0:RC] = a["outp_w"].reshape(NL * 2 * RC, RC)
    P[R_OUT:R_OUT + NL * 2 * RC, C_OUTB] = a["outp_b"].reshape(-1)
    # tail: skip / output convs (taps fused, tap-major columns)
    P[R_TAIL:R_TAIL + RC, 0:3 * RC] = a["skp_w"].transpose(0, 2, 1).reshape(RC, 3 * RC)
    P[R_TAIL:R_TAIL + RC, C_TAILB] = a["skp_b"][:, 0]
    P[R_TAIL + RC, 0:3 * RC] = a["op_w"].transpose(0, 2, 1).reshape(3 * RC)
    P[R_TAIL + RC, C_TAILB] = a["op_b"][0, 0]
    # per-segment circular shift matrices and per-batch lane broadcast
    P[R_SP1:R_SP1 + BL, 0:BL] = seg_shift_matrix(1)
    P[R_SM1:R_SM1 + BL, 0:BL] = seg_shift_matrix(-1)
    P[R_SP2:R_SP2 + BL, 0:BL] = seg_shift_matrix(2)
    P[R_SM2:R_SM2 + BL, 0:BL] = seg_shift_matrix(-2)
    for b in range(B):
        P[R_SEG + b, b * LPAD:(b + 1) * LPAD] = 1.0
    return jnp.asarray(P)


# ---------------- Pallas kernel (single invocation, whole batch on the lane axis) ----------------
def epsilon_theta_kernel(act_ref, par_ref, out_ref):
    def dot(u, v):
        return jnp.dot(u, v, preferred_element_type=jnp.float32)

    # ----- parameter views (all static slices of the single VMEM slab) -----
    ip_w = par_ref[R_IP:R_IP + RC, 0:1]
    ip_b = par_ref[R_IP:R_IP + RC, 1:2]
    fw = par_ref[R_FW:R_FW + EMB, 0:1]
    l1 = par_ref[R_L1:R_L1 + B * CL, 0:B * TH]
    l2p = par_ref[R_L2:R_L2 + B * TH, 0:BL]
    b1 = par_ref[R_MISC:R_MISC + 1, 0:B * TH]
    b2p = par_ref[R_MISC + 1:R_MISC + 2, 0:BL]
    eff_w = par_ref[R_EFF:R_EFF + NL * 2 * RC, 0:HID]
    cpw = par_ref[R_DIL:R_DIL + NL * 2 * RC, C_CPW:C_CPW + 1]
    cbias = par_ref[R_DIL:R_DIL + NL * 2 * RC, C_CBIAS:C_CBIAS + 1]
    sp1 = par_ref[R_SP1:R_SP1 + BL, 0:BL]
    sm1 = par_ref[R_SM1:R_SM1 + BL, 0:BL]
    sp2 = par_ref[R_SP2:R_SP2 + BL, 0:BL]
    sm2 = par_ref[R_SM2:R_SM2 + BL, 0:BL]
    seg = par_ref[R_SEG:R_SEG + B, 0:BL]

    # ----- activation slab (padding/flattening done in the wrapper) -----
    x_pad = act_ref[0:1, 0:BL]                                     # (1, BL)
    c_flat = act_ref[1:2, 0:B * CL]                                # (1, B*CL)
    t_row = act_ref[2:3, 0:B]                                      # (1, B)

    # ----- input projection: Conv1d(1, RC, 1, padding=2, circular) + leaky_relu -----
    x = _leaky(ip_w * x_pad + ip_b)                                # (RC, BL)

    # ----- Gaussian-Fourier embedding -> diffusion-step conv bias (hoisted) -----
    xp = fw * t_row * (2.0 * np.pi)                                # (EMB, B)
    demb = jnp.concatenate([jnp.sin(xp), jnp.cos(xp)], axis=0)     # (HID, B)
    eff = dot(eff_w, demb)                                         # (NL*2RC, B)

    # ----- cond upsampler MLP (pad folded) + ALL conditioner projections + eff bias -----
    h = _leaky(dot(c_flat, l1) + b1)                               # (1, B*TH)
    cond_pad = _leaky(dot(h, l2p) + b2p)                           # (1, BL)
    cond_all = cpw * cond_pad + cbias + dot(eff, seg)              # (NL*2RC, BL)

    # ----- residual blocks (fully unrolled; shifts via MXU permutation matrices) -----
    skip = jnp.zeros((RC, BL), jnp.float32)
    for i in range(NL):
        d = 2 ** (i % DILATION_CYCLE)
        s_pos = sp1 if d == 1 else sp2
        s_neg = sm1 if d == 1 else sm2
        rd = R_DIL + i * 2 * RC
        ro = R_OUT + i * 2 * RC
        dil_w = par_ref[rd:rd + 2 * RC, 0:3 * RC]                  # (2RC, 3RC)
        out_w = par_ref[ro:ro + 2 * RC, 0:RC]                      # (2RC, RC)
        out_b = par_ref[ro:ro + 2 * RC, C_OUTB:C_OUTB + 1]
        x3 = jnp.concatenate([dot(x, s_pos), x, dot(x, s_neg)], axis=0)    # (3RC, BL)
        z = dot(dil_w, x3) + cond_all[i * 2 * RC:(i + 1) * 2 * RC, :]      # (2RC, BL)
        g = jax.nn.sigmoid(z[:RC]) * jnp.tanh(z[RC:])                      # (RC, BL)
        # TODO(synk): on v5e/v6e benchmark a VPU splat-FMA form of this K=8 dot (MRF latency).
        w = _leaky(dot(out_w, g) + out_b)                                  # (2RC, BL)
        x = (x + w[:RC]) * INV_SQRT2
        skip = skip + w[RC:]

    # ----- skip projection: Conv1d(RC, RC, 3), valid, taps fused -----
    xs = skip * INV_SQRT_NL
    xs3 = jnp.concatenate([xs, dot(xs, sm1), dot(xs, sm2)], axis=0)
    sk_w = par_ref[R_TAIL:R_TAIL + RC, 0:3 * RC]
    sk_b = par_ref[R_TAIL:R_TAIL + RC, C_TAILB:C_TAILB + 1]
    spx = _leaky(dot(sk_w, xs3) + sk_b)                            # (RC, BL)

    # ----- output projection: Conv1d(RC, 1, 3), valid, taps fused -----
    sp3 = jnp.concatenate([spx, dot(spx, sm1), dot(spx, sm2)], axis=0)
    op_w = par_ref[R_TAIL + RC:R_TAIL + RC + 1, 0:3 * RC]
    op_b = par_ref[R_TAIL + RC:R_TAIL + RC + 1, C_TAILB:C_TAILB + 1]
    # raw lane-dense (1, BL) store; wrapper slices the T valid lanes of each segment
    out_ref[...] = dot(op_w, sp3) + op_b


@jax.jit
def epsilon_theta_pallas(inputs, time, cond, par):
    """inputs (B,1,T) f32; time (B,) f32; cond (B,1,CL) f32 -> (B,1,T) f32."""
    x2 = inputs.reshape(B, T).astype(jnp.float32)
    # circular pad + batch->lane flatten done wrapper-side (layout plumbing)
    x_pad = jnp.concatenate([x2[:, -2:], x2, x2[:, :2]], axis=1).reshape(1, BL)
    c_flat = cond.reshape(1, B * CL).astype(jnp.float32)
    t_row = time.reshape(1, B).astype(jnp.float32)
    act = jnp.zeros((3, BL), jnp.float32)
    act = act.at[0:1, :].set(x_pad)
    act = act.at[1:2, 0:B * CL].set(c_flat)
    act = act.at[2:3, 0:B].set(t_row)

    vmem = pl.BlockSpec(memory_space=pltpu.MemorySpace.VMEM)
    o = pl.pallas_call(
        epsilon_theta_kernel,
        out_shape=jax.ShapeDtypeStruct((1, BL), jnp.float32),
        in_specs=[vmem, vmem],
        out_specs=vmem,
    )(act, par)
    # de-pad in the wrapper: valid output lives at local lanes [0, T) of each segment
    return o.reshape(B, LPAD)[:, :T][:, None, :]


# ---------------- independent pure-JAX reference (natural layouts, different code path) ----------------
def reference_forward(inputs, time, cond, p):
    hi = jax.lax.Precision.HIGHEST

    def mm(a, b):
        return jnp.dot(a, b, precision=hi)

    L = LPAD
    outs = []
    for b in range(inputs.shape[0]):
        x_in = inputs[b]                                   # (1, T)
        t = time[b]
        c = cond[b]                                        # (1, CL)

        x_pad = jnp.concatenate([x_in[:, -2:], x_in, x_in[:, :2]], axis=1)
        x = _leaky(p["ip_w"] * x_pad + p["ip_b"])          # (RC, L)

        xp = t * p["fw"] * (2.0 * np.pi)                   # (EMB, 1)
        demb = jnp.concatenate([jnp.sin(xp), jnp.cos(xp)], axis=0)   # (HID, 1)

        h = _leaky(mm(c, p["l1_w"].T) + p["l1_b"])
        cu = _leaky(mm(h, p["l2_w"].T) + p["l2_b"])        # (1, T)
        cond_pad = jnp.concatenate([cu[:, -2:], cu, cu[:, :2]], axis=1)  # (1, L)

        skip_sum = jnp.zeros((RC, L), jnp.float32)
        for i in range(NL):
            d = 2 ** (i % DILATION_CYCLE)
            dstep = mm(p["diff_w"][i], demb) + p["diff_b"][i]         # (RC, 1)
            cond_i = p["condp_w"][i] * cond_pad + p["condp_b"][i]     # (2RC, L)
            y = x + dstep
            y_pad = jnp.concatenate([y[:, -d:], y, y[:, :d]], axis=1)
            conv = p["dil_b"][i]
            for k in range(3):
                conv = conv + mm(p["dil_w"][i][:, :, k], y_pad[:, k * d:k * d + L])
            z = conv + cond_i
            g = jax.nn.sigmoid(z[:RC]) * jnp.tanh(z[RC:])
            w = _leaky(mm(p["outp_w"][i], g) + p["outp_b"][i])
            x = (x + w[:RC]) / math.sqrt(2.0)
            skip_sum = skip_sum + w[RC:]

        xs = skip_sum / math.sqrt(NL)
        L1 = L - 2
        sp = p["skp_b"]
        for k in range(3):
            sp = sp + mm(p["skp_w"][:, :, k], xs[:, k:k + L1])
        sp = _leaky(sp)
        o = p["op_b"]
        for k in range(3):
            o = o + mm(p["op_w"][:, :, k], sp[:, k:k + T])
        outs.append(o)                                     # (1, T)
    return jnp.stack(outs, axis=0)                         # (B, 1, T)


if __name__ == "__main__":
    key = jax.random.PRNGKey(0)
    kp, ki, kt, kc = jax.random.split(key, 4)

    params = init_params(kp)
    inputs = jax.random.normal(ki, (BATCH, 1, TARGET_DIM), dtype=jnp.float32)
    time = jax.random.uniform(kt, (BATCH,), dtype=jnp.float32)   # continuous diffusion time
    cond = jax.random.normal(kc, (BATCH, 1, COND_LENGTH), dtype=jnp.float32)

    par = pack_params(params)   # one-time parameter re-layout + algebra folding
    out = epsilon_theta_pallas(inputs, time, cond, par)
    out = jax.block_until_ready(out)

    ref = reference_forward(inputs, time, cond, params)
    np.testing.assert_allclose(np.asarray(out), np.asarray(ref), rtol=1e-4, atol=1e-4)
    assert out.shape == (BATCH, 1, TARGET_DIM)
    print("KERNEL_OK")
</pallas_src>

<mosaic_0001>
module attributes {stable_mosaic.version = 11 : i64} {
  func.func @epsilon_theta_kernel(%arg0: memref<3x40xf32, #tpu.memory_space<vmem>>, %arg1: memref<648x64xf32, #tpu.memory_space<vmem>>, %arg2: memref<1x40xf32, #tpu.memory_space<vmem>>) attributes {dimension_semantics = [], scalar_prefetch = 0 : i64, scratch_operands = 0 : i64, tpu.core_type = #tpu.core_type<tc>} {
    %c0 = arith.constant 0 : index
    %c0_0 = arith.constant 0 : index
    %0 = vector.load %arg1[%c0, %c0_0] : memref<648x64xf32, #tpu.memory_space<vmem>>, vector<8x1xf32>
    %c0_1 = arith.constant 0 : index
    %c1 = arith.constant 1 : index
    %1 = vector.load %arg1[%c0_1, %c1] : memref<648x64xf32, #tpu.memory_space<vmem>>, vector<8x1xf32>
    %c8 = arith.constant 8 : index
    %c0_2 = arith.constant 0 : index
    %2 = vector.load %arg1[%c8, %c0_2] : memref<648x64xf32, #tpu.memory_space<vmem>>, vector<32x1xf32>
    %c40 = arith.constant 40 : index
    %c0_3 = arith.constant 0 : index
    %3 = vector.load %arg1[%c40, %c0_3] : memref<648x64xf32, #tpu.memory_space<vmem>>, vector<16x16xf32>
    %c56 = arith.constant 56 : index
    %c0_4 = arith.constant 0 : index
    %4 = vector.load %arg1[%c56, %c0_4] : memref<648x64xf32, #tpu.memory_space<vmem>>, vector<16x40xf32>
    %c72 = arith.constant 72 : index
    %c0_5 = arith.constant 0 : index
    %5 = vector.load %arg1[%c72, %c0_5] : memref<648x64xf32, #tpu.memory_space<vmem>>, vector<1x16xf32>
    %c73 = arith.constant 73 : index
    %c0_6 = arith.constant 0 : index
    %6 = vector.load %arg1[%c73, %c0_6] : memref<648x64xf32, #tpu.memory_space<vmem>>, vector<1x40xf32>
    %c80 = arith.constant 80 : index
    %c0_7 = arith.constant 0 : index
    %7 = vector.load %arg1[%c80, %c0_7] : memref<648x64xf32, #tpu.memory_space<vmem>>, vector<128x64xf32>
    %c208 = arith.constant 208 : index
    %c25 = arith.constant 25 : index
    %8 = vector.load %arg1[%c208, %c25] : memref<648x64xf32, #tpu.memory_space<vmem>>, vector<128x1xf32>
    %c208_8 = arith.constant 208 : index
    %c24 = arith.constant 24 : index
    %9 = vector.load %arg1[%c208_8, %c24] : memref<648x64xf32, #tpu.memory_space<vmem>>, vector<128x1xf32>
    %c480 = arith.constant 480 : index
    %c0_9 = arith.constant 0 : index
    %10 = vector.load %arg1[%c480, %c0_9] : memref<648x64xf32, #tpu.memory_space<vmem>>, vector<40x40xf32>
    %c520 = arith.constant 520 : index
    %c0_10 = arith.constant 0 : index
    %11 = vector.load %arg1[%c520, %c0_10] : memref<648x64xf32, #tpu.memory_space<vmem>>, vector<40x40xf32>
    %c560 = arith.constant 560 : index
    %c0_11 = arith.constant 0 : index
    %12 = vector.load %arg1[%c560, %c0_11] : memref<648x64xf32, #tpu.memory_space<vmem>>, vector<40x40xf32>
    %c600 = arith.constant 600 : index
    %c0_12 = arith.constant 0 : index
    %13 = vector.load %arg1[%c600, %c0_12] : memref<648x64xf32, #tpu.memory_space<vmem>>, vector<40x40xf32>
    %c640 = arith.constant 640 : index
    %c0_13 = arith.constant 0 : index
    %14 = vector.load %arg1[%c640, %c0_13] : memref<648x64xf32, #tpu.memory_space<vmem>>, vector<2x40xf32>
    %c0_14 = arith.constant 0 : index
    %c0_15 = arith.constant 0 : index
    %15 = vector.load %arg0[%c0_14, %c0_15] : memref<3x40xf32, #tpu.memory_space<vmem>>, vector<1x40xf32>
    %c1_16 = arith.constant 1 : index
    %c0_17 = arith.constant 0 : index
    %16 = vector.load %arg0[%c1_16, %c0_17] : memref<3x40xf32, #tpu.memory_space<vmem>>, vector<1x16xf32>
    %c2 = arith.constant 2 : index
    %c0_18 = arith.constant 0 : index
    %17 = vector.load %arg0[%c2, %c0_18] : memref<3x40xf32, #tpu.memory_space<vmem>>, vector<1x2xf32>
    %18 = vector.broadcast %0 : vector<8x1xf32> to vector<8x40xf32>
    %19 = vector.broadcast %15 : vector<1x40xf32> to vector<8x40xf32>
    %20 = arith.mulf %18, %19 : vector<8x40xf32>
    %21 = vector.broadcast %1 : vector<8x1xf32> to vector<8x40xf32>
    %22 = arith.addf %20, %21 : vector<8x40xf32>
    %cst = arith.constant 0.000000e+00 : f32
    %23 = vector.broadcast %cst : f32 to vector<8x40xf32>
    %24 = arith.cmpf oge, %22, %23 : vector<8x40xf32>
    %cst_19 = arith.constant 4.000000e-01 : f32
    %25 = vector.broadcast %cst_19 : f32 to vector<8x40xf32>
    %26 = arith.mulf %25, %22 : vector<8x40xf32>
    %27 = arith.select %24, %22, %26 : vector<8x40xi1>, vector<8x40xf32>
    %28 = vector.broadcast %2 : vector<32x1xf32> to vector<32x2xf32>
    %29 = vector.broadcast %17 : vector<1x2xf32> to vector<32x2xf32>
    %30 = arith.mulf %28, %29 : vector<32x2xf32>
    %cst_20 = arith.constant 6.28318548 : f32
    %31 = vector.broadcast %cst_20 : f32 to vector<32x2xf32>
    %32 = arith.mulf %30, %31 : vector<32x2xf32>
    %33 = math.sin %32 : vector<32x2xf32>
    %34 = math.cos %32 : vector<32x2xf32>
    %35 = tpu.concatenate %33, %34 in 0 : vector<32x2xf32>, vector<32x2xf32> -> vector<64x2xf32>
    %cst_21 = arith.constant dense<0.000000e+00> : vector<128x2xf32>
    %36 = tpu.matmul %7, %35, %cst_21 {dimension_numbers = #tpu.dot_dimension_numbers<[1], [0], [0], [1], [0, 0, 1, 1], [], []>} : vector<128x64xf32>, vector<64x2xf32>, vector<128x2xf32> -> vector<128x2xf32>
    %cst_22 = arith.constant dense<0.000000e+00> : vector<1x16xf32>
    %37 = tpu.matmul %16, %3, %cst_22 {dimension_numbers = #tpu.dot_dimension_numbers<[1], [0], [0], [1], [0, 0, 1, 1], [], []>} : vector<1x16xf32>, vector<16x16xf32>, vector<1x16xf32> -> vector<1x16xf32>
    %38 = arith.addf %37, %5 : vector<1x16xf32>
    %cst_23 = arith.constant 0.000000e+00 : f32
    %39 = vector.broadcast %cst_23 : f32 to vector<1x16xf32>
    %40 = arith.cmpf oge, %38, %39 : vector<1x16xf32>
    %cst_24 = arith.constant 4.000000e-01 : f32
    %41 = vector.broadcast %cst_24 : f32 to vector<1x16xf32>
    %42 = arith.mulf %41, %38 : vector<1x16xf32>
    %43 = arith.select %40, %38, %42 : vector<1x16xi1>, vector<1x16xf32>
    %cst_25 = arith.constant dense<0.000000e+00> : vector<1x40xf32>
    %44 = tpu.matmul %43, %4, %cst_25 {dimension_numbers = #tpu.dot_dimension_numbers<[1], [0], [0], [1], [0, 0, 1, 1], [], []>} : vector<1x16xf32>, vector<16x40xf32>, vector<1x40xf32> -> vector<1x40xf32>
    %45 = arith.addf %44, %6 : vector<1x40xf32>
    %cst_26 = arith.constant 0.000000e+00 : f32
    %46 = vector.broadcast %cst_26 : f32 to vector<1x40xf32>
    %47 = arith.cmpf oge, %45, %46 : vector<1x40xf32>
    %cst_27 = arith.constant 4.000000e-01 : f32
    %48 = vector.broadcast %cst_27 : f32 to vector<1x40xf32>
    %49 = arith.mulf %48, %45 : vector<1x40xf32>
    %50 = arith.select %47, %45, %49 : vector<1x40xi1>, vector<1x40xf32>
    %51 = vector.broadcast %8 : vector<128x1xf32> to vector<128x40xf32>
    %52 = vector.broadcast %50 : vector<1x40xf32> to vector<128x40xf32>
    %53 = arith.mulf %51, %52 : vector<128x40xf32>
    %54 = vector.broadcast %9 : vector<128x1xf32> to vector<128x40xf32>
    %55 = arith.addf %53, %54 : vector<128x40xf32>
    %cst_28 = arith.constant dense<0.000000e+00> : vector<128x40xf32>
    %56 = tpu.matmul %36, %14, %cst_28 {dimension_numbers = #tpu.dot_dimension_numbers<[1], [0], [0], [1], [0, 0, 1, 1], [], []>} : vector<128x2xf32>, vector<2x40xf32>, vector<128x40xf32> -> vector<128x40xf32>
    %57 = arith.addf %55, %56 : vector<128x40xf32>
    %cst_29 = arith.constant 0.000000e+00 : f32
    %58 = vector.broadcast %cst_29 : f32 to vector<8x40xf32>
    %c208_30 = arith.constant 208 : index
    %c0_31 = arith.constant 0 : index
    %59 = vector.load %arg1[%c208_30, %c0_31] : memref<648x64xf32, #tpu.memory_space<vmem>>, vector<16x24xf32>
    %c336 = arith.constant 336 : index
    %c0_32 = arith.constant 0 : index
    %60 = vector.load %arg1[%c336, %c0_32] : memref<648x64xf32, #tpu.memory_space<vmem>>, vector<16x8xf32>
    %c336_33 = arith.constant 336 : index
    %c8_34 = arith.constant 8 : index
    %61 = vector.load %arg1[%c336_33, %c8_34] : memref<648x64xf32, #tpu.memory_space<vmem>>, vector<16x1xf32>
    %cst_35 = arith.constant dense<0.000000e+00> : vector<8x40xf32>
    %62 = tpu.matmul %27, %10, %cst_35 {dimension_numbers = #tpu.dot_dimension_numbers<[1], [0], [0], [1], [0, 0, 1, 1], [], []>} : vector<8x40xf32>, vector<40x40xf32>, vector<8x40xf32> -> vector<8x40xf32>
    %cst_36 = arith.constant dense<0.000000e+00> : vector<8x40xf32>
    %63 = tpu.matmul %27, %11, %cst_36 {dimension_numbers = #tpu.dot_dimension_numbers<[1], [0], [0], [1], [0, 0, 1, 1], [], []>} : vector<8x40xf32>, vector<40x40xf32>, vector<8x40xf32> -> vector<8x40xf32>
    %64 = tpu.concatenate %62, %27, %63 in 0 : vector<8x40xf32>, vector<8x40xf32>, vector<8x40xf32> -> vector<24x40xf32>
    %cst_37 = arith.constant dense<0.000000e+00> : vector<16x40xf32>
    %65 = tpu.matmul %59, %64, %cst_37 {dimension_numbers = #tpu.dot_dimension_numbers<[1], [0], [0], [1], [0, 0, 1, 1], [], []>} : vector<16x24xf32>, vector<24x40xf32>, vector<16x40xf32> -> vector<16x40xf32>
    %66 = vector.extract_strided_slice %57 {offsets = [0, 0], sizes = [16, 40], strides = [1, 1]} : vector<128x40xf32> to vector<16x40xf32>
    %67 = arith.addf %65, %66 : vector<16x40xf32>
    %68 = vector.extract_strided_slice %67 {offsets = [0, 0], sizes = [8, 40], strides = [1, 1]} : vector<16x40xf32> to vector<8x40xf32>
    %69 = arith.negf %68 : vector<8x40xf32>
    %70 = math.exp %69 : vector<8x40xf32>
    %cst_38 = arith.constant 1.000000e+00 : f32
    %71 = vector.broadcast %cst_38 : f32 to vector<8x40xf32>
    %72 = arith.addf %71, %70 : vector<8x40xf32>
    %73 = arith.divf %71, %72 : vector<8x40xf32>
    %74 = vector.extract_strided_slice %67 {offsets = [8, 0], sizes = [8, 40], strides = [1, 1]} : vector<16x40xf32> to vector<8x40xf32>
    %75 = math.tanh %74 : vector<8x40xf32>
    %76 = arith.mulf %73, %75 : vector<8x40xf32>
    %cst_39 = arith.constant dense<0.000000e+00> : vector<16x40xf32>
    %77 = tpu.matmul %60, %76, %cst_39 {dimension_numbers = #tpu.dot_dimension_numbers<[1], [0], [0], [1], [0, 0, 1, 1], [], []>} : vector<16x8xf32>, vector<8x40xf32>, vector<16x40xf32> -> vector<16x40xf32>
    %78 = vector.broadcast %61 : vector<16x1xf32> to vector<16x40xf32>
    %79 = arith.addf %77, %78 : vector<16x40xf32>
    %cst_40 = arith.constant 0.000000e+00 : f32
    %80 = vector.broadcast %cst_40 : f32 to vector<16x40xf32>
    %81 = arith.cmpf oge, %79, %80 : vector<16x40xf32>
    %cst_41 = arith.constant 4.000000e-01 : f32
    %82 = vector.broadcast %cst_41 : f32 to vector<16x40xf32>
    %83 = arith.mulf %82, %79 : vector<16x40xf32>
    %84 = arith.select %81, %79, %83 : vector<16x40xi1>, vector<16x40xf32>
    %85 = vector.extract_strided_slice %84 {offsets = [0, 0], sizes = [8, 40], strides = [1, 1]} : vector<16x40xf32> to vector<8x40xf32>
    %86 = arith.addf %27, %85 : vector<8x40xf32>
    %cst_42 = arith.constant 0.707106769 : f32
    %87 = vector.broadcast %cst_42 : f32 to vector<8x40xf32>
    %88 = arith.mulf %86, %87 : vector<8x40xf32>
    %89 = vector.extract_strided_slice %84 {offsets = [8, 0], sizes = [8, 40], strides = [1, 1]} : vector<16x40xf32> to vector<8x40xf32>
    %90 = arith.addf %58, %89 : vector<8x40xf32>
    %c224 = arith.constant 224 : index
    %c0_43 = arith.constant 0 : index
    %91 = vector.load %arg1[%c224, %c0_43] : memref<648x64xf32, #tpu.memory_space<vmem>>, vector<16x24xf32>
    %c352 = arith.constant 352 : index
    %c0_44 = arith.constant 0 : index
    %92 = vector.load %arg1[%c352, %c0_44] : memref<648x64xf32, #tpu.memory_space<vmem>>, vector<16x8xf32>
    %c352_45 = arith.constant 352 : index
    %c8_46 = arith.constant 8 : index
    %93 = vector.load %arg1[%c352_45, %c8_46] : memref<648x64xf32, #tpu.memory_space<vmem>>, vector<16x1xf32>
    %cst_47 = arith.constant dense<0.000000e+00> : vector<8x40xf32>
    %94 = tpu.matmul %88, %12, %cst_47 {dimension_numbers = #tpu.dot_dimension_numbers<[1], [0], [0], [1], [0, 0, 1, 1], [], []>} : vector<8x40xf32>, vector<40x40xf32>, vector<8x40xf32> -> vector<8x40xf32>
    %cst_48 = arith.constant dense<0.000000e+00> : vector<8x40xf32>
    %95 = tpu.matmul %88, %13, %cst_48 {dimension_numbers = #tpu.dot_dimension_numbers<[1], [0], [0], [1], [0, 0, 1, 1], [], []>} : vector<8x40xf32>, vector<40x40xf32>, vector<8x40xf32> -> vector<8x40xf32>
    %96 = tpu.concatenate %94, %88, %95 in 0 : vector<8x40xf32>, vector<8x40xf32>, vector<8x40xf32> -> vector<24x40xf32>
    %cst_49 = arith.constant dense<0.000000e+00> : vector<16x40xf32>
    %97 = tpu.matmul %91, %96, %cst_49 {dimension_numbers = #tpu.dot_dimension_numbers<[1], [0], [0], [1], [0, 0, 1, 1], [], []>} : vector<16x24xf32>, vector<24x40xf32>, vector<16x40xf32> -> vector<16x40xf32>
    %98 = vector.extract_strided_slice %57 {offsets = [16, 0], sizes = [16, 40], strides = [1, 1]} : vector<128x40xf32> to vector<16x40xf32>
    %99 = arith.addf %97, %98 : vector<16x40xf32>
    %100 = vector.extract_strided_slice %99 {offsets = [0, 0], sizes = [8, 40], strides = [1, 1]} : vector<16x40xf32> to vector<8x40xf32>
    %101 = arith.negf %100 : vector<8x40xf32>
    %102 = math.exp %101 : vector<8x40xf32>
    %cst_50 = arith.constant 1.000000e+00 : f32
    %103 = vector.broadcast %cst_50 : f32 to vector<8x40xf32>
    %104 = arith.addf %103, %102 : vector<8x40xf32>
    %105 = arith.divf %103, %104 : vector<8x40xf32>
    %106 = vector.extract_strided_slice %99 {offsets = [8, 0], sizes = [8, 40], strides = [1, 1]} : vector<16x40xf32> to vector<8x40xf32>
    %107 = math.tanh %106 : vector<8x40xf32>
    %108 = arith.mulf %105, %107 : vector<8x40xf32>
    %cst_51 = arith.constant dense<0.000000e+00> : vector<16x40xf32>
    %109 = tpu.matmul %92, %108, %cst_51 {dimension_numbers = #tpu.dot_dimension_numbers<[1], [0], [0], [1], [0, 0, 1, 1], [], []>} : vector<16x8xf32>, vector<8x40xf32>, vector<16x40xf32> -> vector<16x40xf32>
    %110 = vector.broadcast %93 : vector<16x1xf32> to vector<16x40xf32>
    %111 = arith.addf %109, %110 : vector<16x40xf32>
    %cst_52 = arith.constant 0.000000e+00 : f32
    %112 = vector.broadcast %cst_52 : f32 to vector<16x40xf32>
    %113 = arith.cmpf oge, %111, %112 : vector<16x40xf32>
    %cst_53 = arith.constant 4.000000e-01 : f32
    %114 = vector.broadcast %cst_53 : f32 to vector<16x40xf32>
    %115 = arith.mulf %114, %111 : vector<16x40xf32>
    %116 = arith.select %113, %111, %115 : vector<16x40xi1>, vector<16x40xf32>
    %117 = vector.extract_strided_slice %116 {offsets = [0, 0], sizes = [8, 40], strides = [1, 1]} : vector<16x40xf32> to vector<8x40xf32>
    %118 = arith.addf %88, %117 : vector<8x40xf32>
    %cst_54 = arith.constant 0.707106769 : f32
    %119 = vector.broadcast %cst_54 : f32 to vector<8x40xf32>
    %120 = arith.mulf %118, %119 : vector<8x40xf32>
    %121 = vector.extract_strided_slice %116 {offsets = [8, 0], sizes = [8, 40], strides = [1, 1]} : vector<16x40xf32> to vector<8x40xf32>
    %122 = arith.addf %90, %121 : vector<8x40xf32>
    %c240 = arith.constant 240 : index
    %c0_55 = arith.constant 0 : index
    %123 = vector.load %arg1[%c240, %c0_55] : memref<648x64xf32, #tpu.memory_space<vmem>>, vector<16x24xf32>
    %c368 = arith.constant 368 : index
    %c0_56 = arith.constant 0 : index
    %124 = vector.load %arg1[%c368, %c0_56] : memref<648x64xf32, #tpu.memory_space<vmem>>, vector<16x8xf32>
    %c368_57 = arith.constant 368 : index
    %c8_58 = arith.constant 8 : index
    %125 = vector.load %arg1[%c368_57, %c8_58] : memref<648x64xf32, #tpu.memory_space<vmem>>, vector<16x1xf32>
    %cst_59 = arith.constant dense<0.000000e+00> : vector<8x40xf32>
    %126 = tpu.matmul %120, %10, %cst_59 {dimension_numbers = #tpu.dot_dimension_numbers<[1], [0], [0], [1], [0, 0, 1, 1], [], []>} : vector<8x40xf32>, vector<40x40xf32>, vector<8x40xf32> -> vector<8x40xf32>
    %cst_60 = arith.constant dense<0.000000e+00> : vector<8x40xf32>
    %127 = tpu.matmul %120, %11, %cst_60 {dimension_numbers = #tpu.dot_dimension_numbers<[1], [0], [0], [1], [0, 0, 1, 1], [], []>} : vector<8x40xf32>, vector<40x40xf32>, vector<8x40xf32> -> vector<8x40xf32>
    %128 = tpu.concatenate %126, %120, %127 in 0 : vector<8x40xf32>, vector<8x40xf32>, vector<8x40xf32> -> vector<24x40xf32>
    %cst_61 = arith.constant dense<0.000000e+00> : vector<16x40xf32>
    %129 = tpu.matmul %123, %128, %cst_61 {dimension_numbers = #tpu.dot_dimension_numbers<[1], [0], [0], [1], [0, 0, 1, 1], [], []>} : vector<16x24xf32>, vector<24x40xf32>, vector<16x40xf32> -> vector<16x40xf32>
    %130 = vector.extract_strided_slice %57 {offsets = [32, 0], sizes = [16, 40], strides = [1, 1]} : vector<128x40xf32> to vector<16x40xf32>
    %131 = arith.addf %129, %130 : vector<16x40xf32>
    %132 = vector.extract_strided_slice %131 {offsets = [0, 0], sizes = [8, 40], strides = [1, 1]} : vector<16x40xf32> to vector<8x40xf32>
    %133 = arith.negf %132 : vector<8x40xf32>
    %134 = math.exp %133 : vector<8x40xf32>
    %cst_62 = arith.constant 1.000000e+00 : f32
    %135 = vector.broadcast %cst_62 : f32 to vector<8x40xf32>
    %136 = arith.addf %135, %134 : vector<8x40xf32>
    %137 = arith.divf %135, %136 : vector<8x40xf32>
    %138 = vector.extract_strided_slice %131 {offsets = [8, 0], sizes = [8, 40], strides = [1, 1]} : vector<16x40xf32> to vector<8x40xf32>
    %139 = math.tanh %138 : vector<8x40xf32>
    %140 = arith.mulf %137, %139 : vector<8x40xf32>
    %cst_63 = arith.constant dense<0.000000e+00> : vector<16x40xf32>
    %141 = tpu.matmul %124, %140, %cst_63 {dimension_numbers = #tpu.dot_dimension_numbers<[1], [0], [0], [1], [0, 0, 1, 1], [], []>} : vector<16x8xf32>, vector<8x40xf32>, vector<16x40xf32> -> vector<16x40xf32>
    %142 = vector.broadcast %125 : vector<16x1xf32> to vector<16x40xf32>
    %143 = arith.addf %141, %142 : vector<16x40xf32>
    %cst_64 = arith.constant 0.000000e+00 : f32
    %144 = vector.broadcast %cst_64 : f32 to vector<16x40xf32>
    %145 = arith.cmpf oge, %143, %144 : vector<16x40xf32>
    %cst_65 = arith.constant 4.000000e-01 : f32
    %146 = vector.broadcast %cst_65 : f32 to vector<16x40xf32>
    %147 = arith.mulf %146, %143 : vector<16x40xf32>
    %148 = arith.select %145, %143, %147 : vector<16x40xi1>, vector<16x40xf32>
    %149 = vector.extract_strided_slice %148 {offsets = [0, 0], sizes = [8, 40], strides = [1, 1]} : vector<16x40xf32> to vector<8x40xf32>
    %150 = arith.addf %120, %149 : vector<8x40xf32>
    %cst_66 = arith.constant 0.707106769 : f32
    %151 = vector.broadcast %cst_66 : f32 to vector<8x40xf32>
    %152 = arith.mulf %150, %151 : vector<8x40xf32>
    %153 = vector.extract_strided_slice %148 {offsets = [8, 0], sizes = [8, 40], strides = [1, 1]} : vector<16x40xf32> to vector<8x40xf32>
    %154 = arith.addf %122, %153 : vector<8x40xf32>
    %c256 = arith.constant 256 : index
    %c0_67 = arith.constant 0 : index
    %155 = vector.load %arg1[%c256, %c0_67] : memref<648x64xf32, #tpu.memory_space<vmem>>, vector<16x24xf32>
    %c384 = arith.constant 384 : index
    %c0_68 = arith.constant 0 : index
    %156 = vector.load %arg1[%c384, %c0_68] : memref<648x64xf32, #tpu.memory_space<vmem>>, vector<16x8xf32>
    %c384_69 = arith.constant 384 : index
    %c8_70 = arith.constant 8 : index
    %157 = vector.load %arg1[%c384_69, %c8_70] : memref<648x64xf32, #tpu.memory_space<vmem>>, vector<16x1xf32>
    %cst_71 = arith.constant dense<0.000000e+00> : vector<8x40xf32>
    %158 = tpu.matmul %152, %12, %cst_71 {dimension_numbers = #tpu.dot_dimension_numbers<[1], [0], [0], [1], [0, 0, 1, 1], [], []>} : vector<8x40xf32>, vector<40x40xf32>, vector<8x40xf32> -> vector<8x40xf32>
    %cst_72 = arith.constant dense<0.000000e+00> : vector<8x40xf32>
    %159 = tpu.matmul %152, %13, %cst_72 {dimension_numbers = #tpu.dot_dimension_numbers<[1], [0], [0], [1], [0, 0, 1, 1], [], []>} : vector<8x40xf32>, vector<40x40xf32>, vector<8x40xf32> -> vector<8x40xf32>
    %160 = tpu.concatenate %158, %152, %159 in 0 : vector<8x40xf32>, vector<8x40xf32>, vector<8x40xf32> -> vector<24x40xf32>
    %cst_73 = arith.constant dense<0.000000e+00> : vector<16x40xf32>
    %161 = tpu.matmul %155, %160, %cst_73 {dimension_numbers = #tpu.dot_dimension_numbers<[1], [0], [0], [1], [0, 0, 1, 1], [], []>} : vector<16x24xf32>, vector<24x40xf32>, vector<16x40xf32> -> vector<16x40xf32>
    %162 = vector.extract_strided_slice %57 {offsets = [48, 0], sizes = [16, 40], strides = [1, 1]} : vector<128x40xf32> to vector<16x40xf32>
    %163 = arith.addf %161, %162 : vector<16x40xf32>
    %164 = vector.extract_strided_slice %163 {offsets = [0, 0], sizes = [8, 40], strides = [1, 1]} : vector<16x40xf32> to vector<8x40xf32>
    %165 = arith.negf %164 : vector<8x40xf32>
    %166 = math.exp %165 : vector<8x40xf32>
    %cst_74 = arith.constant 1.000000e+00 : f32
    %167 = vector.broadcast %cst_74 : f32 to vector<8x40xf32>
    %168 = arith.addf %167, %166 : vector<8x40xf32>
    %169 = arith.divf %167, %168 : vector<8x40xf32>
    %170 = vector.extract_strided_slice %163 {offsets = [8, 0], sizes = [8, 40], strides = [1, 1]} : vector<16x40xf32> to vector<8x40xf32>
    %171 = math.tanh %170 : vector<8x40xf32>
    %172 = arith.mulf %169, %171 : vector<8x40xf32>
    %cst_75 = arith.constant dense<0.000000e+00> : vector<16x40xf32>
    %173 = tpu.matmul %156, %172, %cst_75 {dimension_numbers = #tpu.dot_dimension_numbers<[1], [0], [0], [1], [0, 0, 1, 1], [], []>} : vector<16x8xf32>, vector<8x40xf32>, vector<16x40xf32> -> vector<16x40xf32>
    %174 = vector.broadcast %157 : vector<16x1xf32> to vector<16x40xf32>
    %175 = arith.addf %173, %174 : vector<16x40xf32>
    %cst_76 = arith.constant 0.000000e+00 : f32
    %176 = vector.broadcast %cst_76 : f32 to vector<16x40xf32>
    %177 = arith.cmpf oge, %175, %176 : vector<16x40xf32>
    %cst_77 = arith.constant 4.000000e-01 : f32
    %178 = vector.broadcast %cst_77 : f32 to vector<16x40xf32>
    %179 = arith.mulf %178, %175 : vector<16x40xf32>
    %180 = arith.select %177, %175, %179 : vector<16x40xi1>, vector<16x40xf32>
    %181 = vector.extract_strided_slice %180 {offsets = [0, 0], sizes = [8, 40], strides = [1, 1]} : vector<16x40xf32> to vector<8x40xf32>
    %182 = arith.addf %152, %181 : vector<8x40xf32>
    %cst_78 = arith.constant 0.707106769 : f32
    %183 = vector.broadcast %cst_78 : f32 to vector<8x40xf32>
    %184 = arith.mulf %182, %183 : vector<8x40xf32>
    %185 = vector.extract_strided_slice %180 {offsets = [8, 0], sizes = [8, 40], strides = [1, 1]} : vector<16x40xf32> to vector<8x40xf32>
    %186 = arith.addf %154, %185 : vector<8x40xf32>
    %c272 = arith.constant 272 : index
    %c0_79 = arith.constant 0 : index
    %187 = vector.load %arg1[%c272, %c0_79] : memref<648x64xf32, #tpu.memory_space<vmem>>, vector<16x24xf32>
    %c400 = arith.constant 400 : index
    %c0_80 = arith.constant 0 : index
    %188 = vector.load %arg1[%c400, %c0_80] : memref<648x64xf32, #tpu.memory_space<vmem>>, vector<16x8xf32>
    %c400_81 = arith.constant 400 : index
    %c8_82 = arith.constant 8 : index
    %189 = vector.load %arg1[%c400_81, %c8_82] : memref<648x64xf32, #tpu.memory_space<vmem>>, vector<16x1xf32>
    %cst_83 = arith.constant dense<0.000000e+00> : vector<8x40xf32>
    %190 = tpu.matmul %184, %10, %cst_83 {dimension_numbers = #tpu.dot_dimension_numbers<[1], [0], [0], [1], [0, 0, 1, 1], [], []>} : vector<8x40xf32>, vector<40x40xf32>, vector<8x40xf32> -> vector<8x40xf32>
    %cst_84 = arith.constant dense<0.000000e+00> : vector<8x40xf32>
    %191 = tpu.matmul %184, %11, %cst_84 {dimension_numbers = #tpu.dot_dimension_numbers<[1], [0], [0], [1], [0, 0, 1, 1], [], []>} : vector<8x40xf32>, vector<40x40xf32>, vector<8x40xf32> -> vector<8x40xf32>
    %192 = tpu.concatenate %190, %184, %191 in 0 : vector<8x40xf32>, vector<8x40xf32>, vector<8x40xf32> -> vector<24x40xf32>
    %cst_85 = arith.constant dense<0.000000e+00> : vector<16x40xf32>
    %193 = tpu.matmul %187, %192, %cst_85 {dimension_numbers = #tpu.dot_dimension_numbers<[1], [0], [0], [1], [0, 0, 1, 1], [], []>} : vector<16x24xf32>, vector<24x40xf32>, vector<16x40xf32> -> vector<16x40xf32>
    %194 = vector.extract_strided_slice %57 {offsets = [64, 0], sizes = [16, 40], strides = [1, 1]} : vector<128x40xf32> to vector<16x40xf32>
    %195 = arith.addf %193, %194 : vector<16x40xf32>
    %196 = vector.extract_strided_slice %195 {offsets = [0, 0], sizes = [8, 40], strides = [1, 1]} : vector<16x40xf32> to vector<8x40xf32>
    %197 = arith.negf %196 : vector<8x40xf32>
    %198 = math.exp %197 : vector<8x40xf32>
    %cst_86 = arith.constant 1.000000e+00 : f32
    %199 = vector.broadcast %cst_86 : f32 to vector<8x40xf32>
    %200 = arith.addf %199, %198 : vector<8x40xf32>
    %201 = arith.divf %199, %200 : vector<8x40xf32>
    %202 = vector.extract_strided_slice %195 {offsets = [8, 0], sizes = [8, 40], strides = [1, 1]} : vector<16x40xf32> to vector<8x40xf32>
    %203 = math.tanh %202 : vector<8x40xf32>
    %204 = arith.mulf %201, %203 : vector<8x40xf32>
    %cst_87 = arith.constant dense<0.000000e+00> : vector<16x40xf32>
    %205 = tpu.matmul %188, %204, %cst_87 {dimension_numbers = #tpu.dot_dimension_numbers<[1], [0], [0], [1], [0, 0, 1, 1], [], []>} : vector<16x8xf32>, vector<8x40xf32>, vector<16x40xf32> -> vector<16x40xf32>
    %206 = vector.broadcast %189 : vector<16x1xf32> to vector<16x40xf32>
    %207 = arith.addf %205, %206 : vector<16x40xf32>
    %cst_88 = arith.constant 0.000000e+00 : f32
    %208 = vector.broadcast %cst_88 : f32 to vector<16x40xf32>
    %209 = arith.cmpf oge, %207, %208 : vector<16x40xf32>
    %cst_89 = arith.constant 4.000000e-01 : f32
    %210 = vector.broadcast %cst_89 : f32 to vector<16x40xf32>
    %211 = arith.mulf %210, %207 : vector<16x40xf32>
    %212 = arith.select %209, %207, %211 : vector<16x40xi1>, vector<16x40xf32>
    %213 = vector.extract_strided_slice %212 {offsets = [0, 0], sizes = [8, 40], strides = [1, 1]} : vector<16x40xf32> to vector<8x40xf32>
    %214 = arith.addf %184, %213 : vector<8x40xf32>
    %cst_90 = arith.constant 0.707106769 : f32
    %215 = vector.broadcast %cst_90 : f32 to vector<8x40xf32>
    %216 = arith.mulf %214, %215 : vector<8x40xf32>
    %217 = vector.extract_strided_slice %212 {offsets = [8, 0], sizes = [8, 40], strides = [1, 1]} : vector<16x40xf32> to vector<8x40xf32>
    %218 = arith.addf %186, %217 : vector<8x40xf32>
    %c288 = arith.constant 288 : index
    %c0_91 = arith.constant 0 : index
    %219 = vector.load %arg1[%c288, %c0_91] : memref<648x64xf32, #tpu.memory_space<vmem>>, vector<16x24xf32>
    %c416 = arith.constant 416 : index
    %c0_92 = arith.constant 0 : index
    %220 = vector.load %arg1[%c416, %c0_92] : memref<648x64xf32, #tpu.memory_space<vmem>>, vector<16x8xf32>
    %c416_93 = arith.constant 416 : index
    %c8_94 = arith.constant 8 : index
    %221 = vector.load %arg1[%c416_93, %c8_94] : memref<648x64xf32, #tpu.memory_space<vmem>>, vector<16x1xf32>
    %cst_95 = arith.constant dense<0.000000e+00> : vector<8x40xf32>
    %222 = tpu.matmul %216, %12, %cst_95 {dimension_numbers = #tpu.dot_dimension_numbers<[1], [0], [0], [1], [0, 0, 1, 1], [], []>} : vector<8x40xf32>, vector<40x40xf32>, vector<8x40xf32> -> vector<8x40xf32>
    %cst_96 = arith.constant dense<0.000000e+00> : vector<8x40xf32>
    %223 = tpu.matmul %216, %13, %cst_96 {dimension_numbers = #tpu.dot_dimension_numbers<[1], [0], [0], [1], [0, 0, 1, 1], [], []>} : vector<8x40xf32>, vector<40x40xf32>, vector<8x40xf32> -> vector<8x40xf32>
    %224 = tpu.concatenate %222, %216, %223 in 0 : vector<8x40xf32>, vector<8x40xf32>, vector<8x40xf32> -> vector<24x40xf32>
    %cst_97 = arith.constant dense<0.000000e+00> : vector<16x40xf32>
    %225 = tpu.matmul %219, %224, %cst_97 {dimension_numbers = #tpu.dot_dimension_numbers<[1], [0], [0], [1], [0, 0, 1, 1], [], []>} : vector<16x24xf32>, vector<24x40xf32>, vector<16x40xf32> -> vector<16x40xf32>
    %226 = vector.extract_strided_slice %57 {offsets = [80, 0], sizes = [16, 40], strides = [1, 1]} : vector<128x40xf32> to vector<16x40xf32>
    %227 = arith.addf %225, %226 : vector<16x40xf32>
    %228 = vector.extract_strided_slice %227 {offsets = [0, 0], sizes = [8, 40], strides = [1, 1]} : vector<16x40xf32> to vector<8x40xf32>
    %229 = arith.negf %228 : vector<8x40xf32>
    %230 = math.exp %229 : vector<8x40xf32>
    %cst_98 = arith.constant 1.000000e+00 : f32
    %231 = vector.broadcast %cst_98 : f32 to vector<8x40xf32>
    %232 = arith.addf %231, %230 : vector<8x40xf32>
    %233 = arith.divf %231, %232 : vector<8x40xf32>
    %234 = vector.extract_strided_slice %227 {offsets = [8, 0], sizes = [8, 40], strides = [1, 1]} : vector<16x40xf32> to vector<8x40xf32>
    %235 = math.tanh %234 : vector<8x40xf32>
    %236 = arith.mulf %233, %235 : vector<8x40xf32>
    %cst_99 = arith.constant dense<0.000000e+00> : vector<16x40xf32>
    %237 = tpu.matmul %220, %236, %cst_99 {dimension_numbers = #tpu.dot_dimension_numbers<[1], [0], [0], [1], [0, 0, 1, 1], [], []>} : vector<16x8xf32>, vector<8x40xf32>, vector<16x40xf32> -> vector<16x40xf32>
    %238 = vector.broadcast %221 : vector<16x1xf32> to vector<16x40xf32>
    %239 = arith.addf %237, %238 : vector<16x40xf32>
    %cst_100 = arith.constant 0.000000e+00 : f32
    %240 = vector.broadcast %cst_100 : f32 to vector<16x40xf32>
    %241 = arith.cmpf oge, %239, %240 : vector<16x40xf32>
    %cst_101 = arith.constant 4.000000e-01 : f32
    %242 = vector.broadcast %cst_101 : f32 to vector<16x40xf32>
    %243 = arith.mulf %242, %239 : vector<16x40xf32>
    %244 = arith.select %241, %239, %243 : vector<16x40xi1>, vector<16x40xf32>
    %245 = vector.extract_strided_slice %244 {offsets = [0, 0], sizes = [8, 40], strides = [1, 1]} : vector<16x40xf32> to vector<8x40xf32>
    %246 = arith.addf %216, %245 : vector<8x40xf32>
    %cst_102 = arith.constant 0.707106769 : f32
    %247 = vector.broadcast %cst_102 : f32 to vector<8x40xf32>
    %248 = arith.mulf %246, %247 : vector<8x40xf32>
    %249 = vector.extract_strided_slice %244 {offsets = [8, 0], sizes = [8, 40], strides = [1, 1]} : vector<16x40xf32> to vector<8x40xf32>
    %250 = arith.addf %218, %249 : vector<8x40xf32>
    %c304 = arith.constant 304 : index
    %c0_103 = arith.constant 0 : index
    %251 = vector.load %arg1[%c304, %c0_103] : memref<648x64xf32, #tpu.memory_space<vmem>>, vector<16x24xf32>
    %c432 = arith.constant 432 : index
    %c0_104 = arith.constant 0 : index
    %252 = vector.load %arg1[%c432, %c0_104] : memref<648x64xf32, #tpu.memory_space<vmem>>, vector<16x8xf32>
    %c432_105 = arith.constant 432 : index
    %c8_106 = arith.constant 8 : index
    %253 = vector.load %arg1[%c432_105, %c8_106] : memref<648x64xf32, #tpu.memory_space<vmem>>, vector<16x1xf32>
    %cst_107 = arith.constant dense<0.000000e+00> : vector<8x40xf32>
    %254 = tpu.matmul %248, %10, %cst_107 {dimension_numbers = #tpu.dot_dimension_numbers<[1], [0], [0], [1], [0, 0, 1, 1], [], []>} : vector<8x40xf32>, vector<40x40xf32>, vector<8x40xf32> -> vector<8x40xf32>
    %cst_108 = arith.constant dense<0.000000e+00> : vector<8x40xf32>
    %255 = tpu.matmul %248, %11, %cst_108 {dimension_numbers = #tpu.dot_dimension_numbers<[1], [0], [0], [1], [0, 0, 1, 1], [], []>} : vector<8x40xf32>, vector<40x40xf32>, vector<8x40xf32> -> vector<8x40xf32>
    %256 = tpu.concatenate %254, %248, %255 in 0 : vector<8x40xf32>, vector<8x40xf32>, vector<8x40xf32> -> vector<24x40xf32>
    %cst_109 = arith.constant dense<0.000000e+00> : vector<16x40xf32>
    %257 = tpu.matmul %251, %256, %cst_109 {dimension_numbers = #tpu.dot_dimension_numbers<[1], [0], [0], [1], [0, 0, 1, 1], [], []>} : vector<16x24xf32>, vector<24x40xf32>, vector<16x40xf32> -> vector<16x40xf32>
    %258 = vector.extract_strided_slice %57 {offsets = [96, 0], sizes = [16, 40], strides = [1, 1]} : vector<128x40xf32> to vector<16x40xf32>
    %259 = arith.addf %257, %258 : vector<16x40xf32>
    %260 = vector.extract_strided_slice %259 {offsets = [0, 0], sizes = [8, 40], strides = [1, 1]} : vector<16x40xf32> to vector<8x40xf32>
    %261 = arith.negf %260 : vector<8x40xf32>
    %262 = math.exp %261 : vector<8x40xf32>
    %cst_110 = arith.constant 1.000000e+00 : f32
    %263 = vector.broadcast %cst_110 : f32 to vector<8x40xf32>
    %264 = arith.addf %263, %262 : vector<8x40xf32>
    %265 = arith.divf %263, %264 : vector<8x40xf32>
    %266 = vector.extract_strided_slice %259 {offsets = [8, 0], sizes = [8, 40], strides = [1, 1]} : vector<16x40xf32> to vector<8x40xf32>
    %267 = math.tanh %266 : vector<8x40xf32>
    %268 = arith.mulf %265, %267 : vector<8x40xf32>
    %cst_111 = arith.constant dense<0.000000e+00> : vector<16x40xf32>
    %269 = tpu.matmul %252, %268, %cst_111 {dimension_numbers = #tpu.dot_dimension_numbers<[1], [0], [0], [1], [0, 0, 1, 1], [], []>} : vector<16x8xf32>, vector<8x40xf32>, vector<16x40xf32> -> vector<16x40xf32>
    %270 = vector.broadcast %253 : vector<16x1xf32> to vector<16x40xf32>
    %271 = arith.addf %269, %270 : vector<16x40xf32>
    %cst_112 = arith.constant 0.000000e+00 : f32
    %272 = vector.broadcast %cst_112 : f32 to vector<16x40xf32>
    %273 = arith.cmpf oge, %271, %272 : vector<16x40xf32>
    %cst_113 = arith.constant 4.000000e-01 : f32
    %274 = vector.broadcast %cst_113 : f32 to vector<16x40xf32>
    %275 = arith.mulf %274, %271 : vector<16x40xf32>
    %276 = arith.select %273, %271, %275 : vector<16x40xi1>, vector<16x40xf32>
    %277 = vector.extract_strided_slice %276 {offsets = [0, 0], sizes = [8, 40], strides = [1, 1]} : vector<16x40xf32> to vector<8x40xf32>
    %278 = arith.addf %248, %277 : vector<8x40xf32>
    %cst_114 = arith.constant 0.707106769 : f32
    %279 = vector.broadcast %cst_114 : f32 to vector<8x40xf32>
    %280 = arith.mulf %278, %279 : vector<8x40xf32>
    %281 = vector.extract_strided_slice %276 {offsets = [8, 0], sizes = [8, 40], strides = [1, 1]} : vector<16x40xf32> to vector<8x40xf32>
    %282 = arith.addf %250, %281 : vector<8x40xf32>
    %c320 = arith.constant 320 : index
    %c0_115 = arith.constant 0 : index
    %283 = vector.load %arg1[%c320, %c0_115] : memref<648x64xf32, #tpu.memory_space<vmem>>, vector<16x24xf32>
    %c448 = arith.constant 448 : index
    %c0_116 = arith.constant 0 : index
    %284 = vector.load %arg1[%c448, %c0_116] : memref<648x64xf32, #tpu.memory_space<vmem>>, vector<16x8xf32>
    %c448_117 = arith.constant 448 : index
    %c8_118 = arith.constant 8 : index
    %285 = vector.load %arg1[%c448_117, %c8_118] : memref<648x64xf32, #tpu.memory_space<vmem>>, vector<16x1xf32>
    %cst_119 = arith.constant dense<0.000000e+00> : vector<8x40xf32>
    %286 = tpu.matmul %280, %12, %cst_119 {dimension_numbers = #tpu.dot_dimension_numbers<[1], [0], [0], [1], [0, 0, 1, 1], [], []>} : vector<8x40xf32>, vector<40x40xf32>, vector<8x40xf32> -> vector<8x40xf32>
    %cst_120 = arith.constant dense<0.000000e+00> : vector<8x40xf32>
    %287 = tpu.matmul %280, %13, %cst_120 {dimension_numbers = #tpu.dot_dimension_numbers<[1], [0], [0], [1], [0, 0, 1, 1], [], []>} : vector<8x40xf32>, vector<40x40xf32>, vector<8x40xf32> -> vector<8x40xf32>
    %288 = tpu.concatenate %286, %280, %287 in 0 : vector<8x40xf32>, vector<8x40xf32>, vector<8x40xf32> -> vector<24x40xf32>
    %cst_121 = arith.constant dense<0.000000e+00> : vector<16x40xf32>
    %289 = tpu.matmul %283, %288, %cst_121 {dimension_numbers = #tpu.dot_dimension_numbers<[1], [0], [0], [1], [0, 0, 1, 1], [], []>} : vector<16x24xf32>, vector<24x40xf32>, vector<16x40xf32> -> vector<16x40xf32>
    %290 = vector.extract_strided_slice %57 {offsets = [112, 0], sizes = [16, 40], strides = [1, 1]} : vector<128x40xf32> to vector<16x40xf32>
    %291 = arith.addf %289, %290 : vector<16x40xf32>
    %292 = vector.extract_strided_slice %291 {offsets = [0, 0], sizes = [8, 40], strides = [1, 1]} : vector<16x40xf32> to vector<8x40xf32>
    %293 = arith.negf %292 : vector<8x40xf32>
    %294 = math.exp %293 : vector<8x40xf32>
    %cst_122 = arith.constant 1.000000e+00 : f32
    %295 = vector.broadcast %cst_122 : f32 to vector<8x40xf32>
    %296 = arith.addf %295, %294 : vector<8x40xf32>
    %297 = arith.divf %295, %296 : vector<8x40xf32>
    %298 = vector.extract_strided_slice %291 {offsets = [8, 0], sizes = [8, 40], strides = [1, 1]} : vector<16x40xf32> to vector<8x40xf32>
    %299 = math.tanh %298 : vector<8x40xf32>
    %300 = arith.mulf %297, %299 : vector<8x40xf32>
    %cst_123 = arith.constant dense<0.000000e+00> : vector<16x40xf32>
    %301 = tpu.matmul %284, %300, %cst_123 {dimension_numbers = #tpu.dot_dimension_numbers<[1], [0], [0], [1], [0, 0, 1, 1], [], []>} : vector<16x8xf32>, vector<8x40xf32>, vector<16x40xf32> -> vector<16x40xf32>
    %302 = vector.broadcast %285 : vector<16x1xf32> to vector<16x40xf32>
    %303 = arith.addf %301, %302 : vector<16x40xf32>
    %cst_124 = arith.constant 0.000000e+00 : f32
    %304 = vector.broadcast %cst_124 : f32 to vector<16x40xf32>
    %305 = arith.cmpf oge, %303, %304 : vector<16x40xf32>
    %cst_125 = arith.constant 4.000000e-01 : f32
    %306 = vector.broadcast %cst_125 : f32 to vector<16x40xf32>
    %307 = arith.mulf %306, %303 : vector<16x40xf32>
    %308 = arith.select %305, %303, %307 : vector<16x40xi1>, vector<16x40xf32>
    %309 = vector.extract_strided_slice %308 {offsets = [8, 0], sizes = [8, 40], strides = [1, 1]} : vector<16x40xf32> to vector<8x40xf32>
    %310 = arith.addf %282, %309 : vector<8x40xf32>
    %cst_126 = arith.constant 0.353553385 : f32
    %311 = vector.broadcast %cst_126 : f32 to vector<8x40xf32>
    %312 = arith.mulf %310, %311 : vector<8x40xf32>
    %cst_127 = arith.constant dense<0.000000e+00> : vector<8x40xf32>
    %313 = tpu.matmul %312, %11, %cst_127 {dimension_numbers = #tpu.dot_dimension_numbers<[1], [0], [0], [1], [0, 0, 1, 1], [], []>} : vector<8x40xf32>, vector<40x40xf32>, vector<8x40xf32> -> vector<8x40xf32>
    %cst_128 = arith.constant dense<0.000000e+00> : vector<8x40xf32>
    %314 = tpu.matmul %312, %13, %cst_128 {dimension_numbers = #tpu.dot_dimension_numbers<[1], [0], [0], [1], [0, 0, 1, 1], [], []>} : vector<8x40xf32>, vector<40x40xf32>, vector<8x40xf32> -> vector<8x40xf32>
    %315 = tpu.concatenate %312, %313, %314 in 0 : vector<8x40xf32>, vector<8x40xf32>, vector<8x40xf32> -> vector<24x40xf32>
    %c464 = arith.constant 464 : index
    %c0_129 = arith.constant 0 : index
    %316 = vector.load %arg1[%c464, %c0_129] : memref<648x64xf32, #tpu.memory_space<vmem>>, vector<8x24xf32>
    %c464_130 = arith.constant 464 : index
    %c24_131 = arith.constant 24 : index
    %317 = vector.load %arg1[%c464_130, %c24_131] : memref<648x64xf32, #tpu.memory_space<vmem>>, vector<8x1xf32>
    %cst_132 = arith.constant dense<0.000000e+00> : vector<8x40xf32>
    %318 = tpu.matmul %316, %315, %cst_132 {dimension_numbers = #tpu.dot_dimension_numbers<[1], [0], [0], [1], [0, 0, 1, 1], [], []>} : vector<8x24xf32>, vector<24x40xf32>, vector<8x40xf32> -> vector<8x40xf32>
    %319 = vector.broadcast %317 : vector<8x1xf32> to vector<8x40xf32>
    %320 = arith.addf %318, %319 : vector<8x40xf32>
    %cst_133 = arith.constant 0.000000e+00 : f32
    %321 = vector.broadcast %cst_133 : f32 to vector<8x40xf32>
    %322 = arith.cmpf oge, %320, %321 : vector<8x40xf32>
    %cst_134 = arith.constant 4.000000e-01 : f32
    %323 = vector.broadcast %cst_134 : f32 to vector<8x40xf32>
    %324 = arith.mulf %323, %320 : vector<8x40xf32>
    %325 = arith.select %322, %320, %324 : vector<8x40xi1>, vector<8x40xf32>
    %cst_135 = arith.constant dense<0.000000e+00> : vector<8x40xf32>
    %326 = tpu.matmul %325, %11, %cst_135 {dimension_numbers = #tpu.dot_dimension_numbers<[1], [0], [0], [1], [0, 0, 1, 1], [], []>} : vector<8x40xf32>, vector<40x40xf32>, vector<8x40xf32> -> vector<8x40xf32>
    %cst_136 = arith.constant dense<0.000000e+00> : vector<8x40xf32>
    %327 = tpu.matmul %325, %13, %cst_136 {dimension_numbers = #tpu.dot_dimension_numbers<[1], [0], [0], [1], [0, 0, 1, 1], [], []>} : vector<8x40xf32>, vector<40x40xf32>, vector<8x40xf32> -> vector<8x40xf32>
    %328 = tpu.concatenate %325, %326, %327 in 0 : vector<8x40xf32>, vector<8x40xf32>, vector<8x40xf32> -> vector<24x40xf32>
    %c472 = arith.constant 472 : index
    %c0_137 = arith.constant 0 : index
    %329 = vector.load %arg1[%c472, %c0_137] : memref<648x64xf32, #tpu.memory_space<vmem>>, vector<1x24xf32>
    %c472_138 = arith.constant 472 : index
    %c24_139 = arith.constant 24 : index
    %330 = vector.load %arg1[%c472_138, %c24_139] : memref<648x64xf32, #tpu.memory_space<vmem>>, vector<1x1xf32>
    %cst_140 = arith.constant dense<0.000000e+00> : vector<1x40xf32>
    %331 = tpu.matmul %329, %328, %cst_140 {dimension_numbers = #tpu.dot_dimension_numbers<[1], [0], [0], [1], [0, 0, 1, 1], [], []>} : vector<1x24xf32>, vector<24x40xf32>, vector<1x40xf32> -> vector<1x40xf32>
    %332 = vector.broadcast %330 : vector<1x1xf32> to vector<1x40xf32>
    %333 = arith.addf %331, %332 : vector<1x40xf32>
    %c0_141 = arith.constant 0 : index
    %c0_142 = arith.constant 0 : index
    %334 = vector.load %arg2[%c0_141, %c0_142] : memref<1x40xf32, #tpu.memory_space<vmem>>, vector<1x40xf32>
    tpu.vector_store %arg2[%c0_141, %c0_142], %333 {strides = array<i32>} : memref<1x40xf32, #tpu.memory_space<vmem>>, vector<1x40xf32>,
    return
  }
}

</mosaic_0001>

<llo_original>
// kernel: epsilon_theta_pallas.1
$region0: #{epsilon_theta_pallas.1}
  #allocation0 [shape = 'u32[]', space=smem, size = 0x4, offset = 0x4, fixed_abs, tag = 'smem constant byte address 0x4 - core index']
  #allocation1 [shape = 'u32[144,128]{1,0:T(1,128)}', space=vmem, size = 0x12000, scoped, tag = 'internal scratch']
  %s0 = inlined_call_operand.vmem [shape: f32[3,40], index: 0, kind: input, shape index: {}]
  %s1 = inlined_call_operand.vmem [shape: f32[648,64], index: 1, kind: input, shape index: {}]
  %s2 = inlined_call_operand.vmem [shape: f32[1,40], index: 2, kind: output, shape index: {}]
  %s3 = sld [smem:[#allocation0]]
  $region18: #{epsilon_theta_pallas.1} parent=0
    _
  %s5 = ssub.s32 1, %s3
  %s6 = scalar_select 0, %s5, %s3
  // Predicated region
  $region2: #{epsilon_theta_pallas.1} parent=0 // pred_check
    _
  $region3: #{epsilon_theta_pallas.1} parent=0 // pred_check_branch
    %8 = sbr.rel (0) target = $region5
  $region4: #{epsilon_theta_pallas.1} parent=0 // pred_region
    _
  $region5: #{epsilon_theta_pallas.1} parent=0 // pred_fallthru
    _
  // Predicated region
  $region6: #{epsilon_theta_pallas.1} parent=0 // pred_check
    _
  $region7: #{epsilon_theta_pallas.1} parent=0 // pred_check_branch
    %10 = sbr.rel (0) target = $region9
  $region8: #{epsilon_theta_pallas.1} parent=0 // pred_region
    _
  $region9: #{epsilon_theta_pallas.1} parent=0 // pred_fallthru
    _
  %v11 = vld [vmem:[%s1] sm:$0xff]
  %v12 = vld [vmem:[%s1 + $0x8] sm:$0xff]
  %v13 = vld [vmem:[%s1 + $0x10] sm:$0xff]
  %v14 = vld [vmem:[%s1 + $0x18] sm:$0xff]
  %v15 = vld [vmem:[%s1 + $0x20] sm:$0xff]
  %v16 = vld [vmem:[%s1 + $0x28] sm:$0xff]
  %v17 = vld [vmem:[%s1 + $0x30] sm:$0xff]
  %v18 = vld [vmem:[%s1 + $0x38] sm:$0xff]
  %v19 = vld [vmem:[%s1 + $0x40] sm:$0xff]
  %v20 = vld [vmem:[%s1 + $0x48] sm:$0x1]
  %v21 = vld [vmem:[%s1 + $0x49] sm:$0x1]
  %v22 = vld [vmem:[%s1 + $0x50] sm:$0xff]
  %v23 = vld [vmem:[%s1 + $0x58] sm:$0xff]
  %v24 = vld [vmem:[%s1 + $0x60] sm:$0xff]
  %v25 = vld [vmem:[%s1 + $0x68] sm:$0xff]
  %v26 = vld [vmem:[%s1 + $0x70] sm:$0xff]
  %v27 = vld [vmem:[%s1 + $0x78] sm:$0xff]
  %v28 = vld [vmem:[%s1 + $0x80] sm:$0xff]
  %v29 = vld [vmem:[%s1 + $0x88] sm:$0xff]
  %v30 = vld [vmem:[%s1 + $0x90] sm:$0xff]
  %v31 = vld [vmem:[%s1 + $0x98] sm:$0xff]
  %v32 = vld [vmem:[%s1 + $0xa0] sm:$0xff]
  %v33 = vld [vmem:[%s1 + $0xa8] sm:$0xff]
  %v34 = vld [vmem:[%s1 + $0xb0] sm:$0xff]
  %v35 = vld [vmem:[%s1 + $0xb8] sm:$0xff]
  %v36 = vld [vmem:[%s1 + $0xc0] sm:$0xff]
  %v37 = vld [vmem:[%s1 + $0xc8] sm:$0xff]
  %v38 = vld [vmem:[%s1 + $0xd0] sm:$0xff]
  %v39 = vld [vmem:[%s1 + $0xd8] sm:$0xff]
  %v40 = vld [vmem:[%s1 + $0xe0] sm:$0xff]
  %v41 = vld [vmem:[%s1 + $0xe8] sm:$0xff]
  %v42 = vld [vmem:[%s1 + $0xf0] sm:$0xff]
  %v43 = vld [vmem:[%s1 + $0xf8] sm:$0xff]
  %v44 = vld [vmem:[%s1 + $0x100] sm:$0xff]
  %v45 = vld [vmem:[%s1 + $0x108] sm:$0xff]
  %v46 = vld [vmem:[%s1 + $0x110] sm:$0xff]
  %v47 = vld [vmem:[%s1 + $0x118] sm:$0xff]
  %v48 = vld [vmem:[%s1 + $0x120] sm:$0xff]
  %v49 = vld [vmem:[%s1 + $0x128] sm:$0xff]
  %v50 = vld [vmem:[%s1 + $0x130] sm:$0xff]
  %v51 = vld [vmem:[%s1 + $0x138] sm:$0xff]
  %v52 = vld [vmem:[%s1 + $0x140] sm:$0xff]
  %v53 = vld [vmem:[%s1 + $0x148] sm:$0xff]
  %v54 = vld [vmem:[%s1 + $0x1e0] sm:$0xff]
  %v55 = vld [vmem:[%s1 + $0x1e8] sm:$0xff]
  %v56 = vld [vmem:[%s1 + $0x1f0] sm:$0xff]
  %v57 = vld [vmem:[%s1 + $0x1f8] sm:$0xff]
  %v58 = vld [vmem:[%s1 + $0x200] sm:$0xff]
  %v59 = vld [vmem:[%s1 + $0x208] sm:$0xff]
  %v60 = vld [vmem:[%s1 + $0x210] sm:$0xff]
  %v61 = vld [vmem:[%s1 + $0x218] sm:$0xff]
  %v62 = vld [vmem:[%s1 + $0x220] sm:$0xff]
  %v63 = vld [vmem:[%s1 + $0x228] sm:$0xff]
  %v64 = vld [vmem:[%s1 + $0x230] sm:$0xff]
  %v65 = vld [vmem:[%s1 + $0x238] sm:$0xff]
  %v66 = vld [vmem:[%s1 + $0x240] sm:$0xff]
  %v67 = vld [vmem:[%s1 + $0x248] sm:$0xff]
  %v68 = vld [vmem:[%s1 + $0x250] sm:$0xff]
  %v69 = vld [vmem:[%s1 + $0x258] sm:$0xff]
  %v70 = vld [vmem:[%s1 + $0x260] sm:$0xff]
  %v71 = vld [vmem:[%s1 + $0x268] sm:$0xff]
  %v72 = vld [vmem:[%s1 + $0x270] sm:$0xff]
  %v73 = vld [vmem:[%s1 + $0x278] sm:$0xff]
  %v74 = vld [vmem:[%s1 + $0x280] sm:$0x3]
  %v75 = vld [vmem:[%s0] sm:$0x1]
  %v76 = vld [vmem:[%s0 + $0x1] sm:$0x1]
  %v77 = vld [vmem:[%s0 + $0x2] sm:$0x1]
  %79 = vset.pattern.permute.xlu0 0
  %80 = vperm.xlu0 %79, %v11
  %v81 = vpop.permute.xlu0 %80
  %v83 = vlaneseq
  %v84 = vshrl.u32 %v83, 7
  %v85 = vsub.s32 0, %v84
  %v86 = vrot.slane %v75, %v85
  %v87 = vmul.f32 %v81, %v86
  %88 = vset.pattern.permute.xlu0 1
  %89 = vperm.xlu0 %88, %v11
  %v90 = vpop.permute.xlu0 %89
  %v92 = vadd.f32 %v87, %v90
  %vm93 = vcmp.ge.f32.partialorder %v92, 0.0
  %v94 = vmul.f32 %v92, 0.4
  %v95 = vsel %vm93, %v92, %v94
  %97 = vset.pattern.permute.xlu0 0
  %98 = vperm.xlu0 %97, %v12
  %v99 = vpop.permute.xlu0 %98
  %102 = vset.pattern.permute.xlu0 0
  %103 = vperm.xlu0 %102, %v13
  %v104 = vpop.permute.xlu0 %103
  %107 = vset.pattern.permute.xlu0 0
  %108 = vperm.xlu0 %107, %v14
  %v109 = vpop.permute.xlu0 %108
  %112 = vset.pattern.permute.xlu0 0
  %113 = vperm.xlu0 %112, %v15
  %v114 = vpop.permute.xlu0 %113
  %v116 = vlaneseq
  %v117 = vshrl.u32 %v116, 7
  %v118 = vsub.s32 0, %v117
  %v119 = vrot.slane %v77, %v118
  %v120 = vmul.f32 %v99, %v119
  %v121 = vmul.f32 %v104, %v119
  %v122 = vmul.f32 %v109, %v119
  %v123 = vmul.f32 %v114, %v119
  %v124 = vmul.f32 %v120, 6.2831855
  %v125 = vmul.f32 %v121, 6.2831855
  %v126 = vmul.f32 %v122, 6.2831855
  %v127 = vmul.f32 %v123, 6.2831855
  %v128 = vand.u32 2147483647, %v124
  %vm129 = vcmp.le.f32.partialorder %v128, 0.7853982
  %vm130 = vcmp.lt.s32.totalorder %v124, 0
  %v131 = vand.u32 %v124, 2139095040
  %v132 = vshrl.u32 %v131, 23
  %v133 = vsub.s32 %v132, 127
  %v134 = vand.u32 2147483647, %v124
  %v135 = vand.u32 %v134, 8388607
  %v136 = vor.u32 %v135, 8388608
  %v137 = vsub.s32 0, %v136
  %v138 = vadd.s32 %v133, 1
  %vm139 = vcmp.gt.s32.totalorder %v138, 0
  %v140 = vsel %vm139, %v138, 0
  %v141 = vshrl.u32 %v140, 5
  %v142 = vand.u32 %v140, 31
  %v143 = vsub.s32 32, %v142
  %v144 = vshrl.u32 683565275, %v143
  %v145 = vshll.u32 683565275, %v142
  %v146 = vshrl.u32 2475754826, %v143
  %v147 = vor.u32 %v145, %v146
  %v148 = vshll.u32 2475754826, %v142
  %v149 = vshrl.u32 2131351028, %v143
  %v150 = vor.u32 %v148, %v149
  %v151 = vshll.u32 2131351028, %v142
  %v152 = vshrl.u32 2102212464, %v143
  %v153 = vor.u32 %v151, %v152
  %v154 = vshll.u32 2102212464, %v142
  %v155 = vshrl.u32 920167782, %v143
  %v156 = vor.u32 %v154, %v155
  %v157 = vshll.u32 920167782, %v142
  %v158 = vshrl.u32 1326507024, %v143
  %v159 = vor.u32 %v157, %v158
  %vm160 = vcmp.lt.s32.totalorder %v141, 1
  %vm161 = vcmp.lt.s32.totalorder %v141, 2
  %vm162 = vcmp.lt.s32.totalorder %v141, 3
  %vm163 = vcmp.lt.s32.totalorder %v141, 4
  %v164 = vsel %vm160, %v144, %v147
  %v165 = vsel %vm163, %v153, 2102212464
  %v166 = vsel %vm162, %v150, %v165
  %v167 = vsel %vm161, %v164, %v166
  %v168 = vsel %vm160, %v147, %v150
  %v169 = vsel %vm163, %v156, 920167782
  %v170 = vsel %vm162, %v153, %v169
  %v171 = vsel %vm161, %v168, %v170
  %v172 = vsel %vm160, %v150, %v153
  %v173 = vsel %vm163, %v159, 1326507024
  %v174 = vsel %vm162, %v156, %v173
  %v175 = vsel %vm161, %v172, %v174
  %v176 = vshll.u32 %v136, 8
  %v177 = vmul.u32.u64.compose %v176, %v175
  %v178 = vextract.low.u32 %v177
  %v179 = vextract.high.u32 %v177
  %v180 = vmul.u32.u64.compose %v176, %v171
  %v181 = vextract.low.u32 %v180
  %v182 = vextract.high.u32 %v180
  %v183 = vmul.u32 %v176, %v167
  %v184 = vadd.s32 %v179, %v181
  %vm185 = vc.u32 %v179, %v181
  %v186 = vadd.s32 %v182, 1
  %v187 = vsel %vm185, %v186, %v182
  %v188 = vadd.s32 %v183, %v187
  %v189 = vadd.s32 %v188, 536870912
  %v190 = vshrl.u32 %v189, 30
  %v191 = vshll.u32 %v190, 30
  %v192 = vsub.s32 %v188, %v191
  %vm193 = vcmp.lt.s32.totalorder %v192, 0
  %v194 = vsub.s32 0, %v192
  %v195 = vsel %vm193, %v194, %v192
  %v196 = vclz %v195
  %v197 = vsub.s32 %v196, 2
  %vm198 = vcmp.gt.s32.totalorder 0, %v197
  %v199 = vsel %vm198, 0, %v197
  %v200 = vsub.s32 32, %v199
  %v201 = vshll.u32 %v192, %v199
  %v202 = vshrl.u32 %v184, %v200
  %v203 = vor.u32 %v201, %v202
  %v204 = vsub.s32 4294967266, %v199
  %v205 = vadd.s32 %v204, 127
  %v206 = vshll.u32 %v205, 23
  %v207 = vor.u32 4788187, %v206
  %v208 = vand.u32 2147483647, %v207
  %v210 = vcvt.s32.f32 %v203
  %v211 = vmul.f32 %v210, %v208
  %v212 = vxor.u32 %v211, 2147483648
  %v213 = vsel %vm130, %v212, %v211
  %v214 = vsub.s32 4, %v190
  %v215 = vsel %vm130, %v214, %v190
  %v216 = vsel %vm129, %v124, %v213
  %v217 = vsel %vm129, 0, %v215
  %v218 = vcosq.f32.pop %v216
  %v219 = vsinq.f32.pop %v216
  %vm220 = vweird.f32 %v124
  %v221 = vadd.s32 %v217, 3
  %v222 = vand.u32 %v221, 3
  %vm223 = vcmp.lt.s32.totalorder %v222, 2
  %vm224 = vcmp.eq.s32.totalorder %v222, 0
  %v225 = vxor.u32 %v219, 2147483648
  %v226 = vsel %vm224, %v218, %v225
  %vm227 = vcmp.eq.s32.totalorder %v222, 2
  %v228 = vxor.u32 %v218, 2147483648
  %v229 = vsel %vm227, %v228, %v219
  %v230 = vsel %vm223, %v226, %v229
  %v231 = vsel %vm220, nan, %v230
  %v232 = vand.u32 2147483647, %v125
  %vm233 = vcmp.le.f32.partialorder %v232, 0.7853982
  %vm234 = vcmp.lt.s32.totalorder %v125, 0
  %v235 = vand.u32 %v125, 2139095040
  %v236 = vshrl.u32 %v235, 23
  %v237 = vsub.s32 %v236, 127
  %v238 = vand.u32 2147483647, %v125
  %v239 = vand.u32 %v238, 8388607
  %v240 = vor.u32 %v239, 8388608
  %v241 = vsub.s32 0, %v240
  %v242 = vadd.s32 %v237, 1
  %vm243 = vcmp.gt.s32.totalorder %v242, 0
  %v244 = vsel %vm243, %v242, 0
  %v245 = vshrl.u32 %v244, 5
  %v246 = vand.u32 %v244, 31
  %v247 = vsub.s32 32, %v246
  %v248 = vshrl.u32 683565275, %v247
  %v249 = vshll.u32 683565275, %v246
  %v250 = vshrl.u32 2475754826, %v247
  %v251 = vor.u32 %v249, %v250
  %v252 = vshll.u32 2475754826, %v246
  %v253 = vshrl.u32 2131351028, %v247
  %v254 = vor.u32 %v252, %v253
  %v255 = vshll.u32 2131351028, %v246
  %v256 = vshrl.u32 2102212464, %v247
  %v257 = vor.u32 %v255, %v256
  %v258 = vshll.u32 2102212464, %v246
  %v259 = vshrl.u32 920167782, %v247
  %v260 = vor.u32 %v258, %v259
  %v261 = vshll.u32 920167782, %v246
  %v262 = vshrl.u32 1326507024, %v247
  %v263 = vor.u32 %v261, %v262
  %vm264 = vcmp.lt.s32.totalorder %v245, 1
  %vm265 = vcmp.lt.s32.totalorder %v245, 2
  %vm266 = vcmp.lt.s32.totalorder %v245, 3
  %vm267 = vcmp.lt.s32.totalorder %v245, 4
  %v268 = vsel %vm264, %v248, %v251
  %v269 = vsel %vm267, %v257, 2102212464
  %v270 = vsel %vm266, %v254, %v269
  %v271 = vsel %vm265, %v268, %v270
  %v272 = vsel %vm264, %v251, %v254
  %v273 = vsel %vm267, %v260, 920167782
  %v274 = vsel %vm266, %v257, %v273
  %v275 = vsel %vm265, %v272, %v274
  %v276 = vsel %vm264, %v254, %v257
  %v277 = vsel %vm267, %v263, 1326507024
  %v278 = vsel %vm266, %v260, %v277
  %v279 = vsel %vm265, %v276, %v278
  %v280 = vshll.u32 %v240, 8
  %v281 = vmul.u32.u64.compose %v280, %v279
  %v282 = vextract.low.u32 %v281
  %v283 = vextract.high.u32 %v281
  %v284 = vmul.u32.u64.compose %v280, %v275
  %v285 = vextract.low.u32 %v284
  %v286 = vextract.high.u32 %v284
  %v287 = vmul.u32 %v280, %v271
  %v288 = vadd.s32 %v283, %v285
  %vm289 = vc.u32 %v283, %v285
  %v290 = vadd.s32 %v286, 1
  %v291 = vsel %vm289, %v290, %v286
  %v292 = vadd.s32 %v287, %v291
  %v293 = vadd.s32 %v292, 536870912
  %v294 = vshrl.u32 %v293, 30
  %v295 = vshll.u32 %v294, 30
  %v296 = vsub.s32 %v292, %v295
  %vm297 = vcmp.lt.s32.totalorder %v296, 0
  %v298 = vsub.s32 0, %v296
  %v299 = vsel %vm297, %v298, %v296
  %v300 = vclz %v299
  %v301 = vsub.s32 %v300, 2
  %vm302 = vcmp.gt.s32.totalorder 0, %v301
  %v303 = vsel %vm302, 0, %v301
  %v304 = vsub.s32 32, %v303
  %v305 = vshll.u32 %v296, %v303
  %v306 = vshrl.u32 %v288, %v304
  %v307 = vor.u32 %v305, %v306
  %v308 = vsub.s32 4294967266, %v303
  %v309 = vadd.s32 %v308, 127
  %v310 = vshll.u32 %v309, 23
  %v311 = vor.u32 4788187, %v310
  %v312 = vand.u32 2147483647, %v311
  %v314 = vcvt.s32.f32 %v307
  %v315 = vmul.f32 %v314, %v312
  %v316 = vxor.u32 %v315, 2147483648
  %v317 = vsel %vm234, %v316, %v315
  %v318 = vsub.s32 4, %v294
  %v319 = vsel %vm234, %v318, %v294
  %v320 = vsel %vm233, %v125, %v317
  %v321 = vsel %vm233, 0, %v319
  %v322 = vcosq.f32.pop %v320
  %v323 = vsinq.f32.pop %v320
  %vm324 = vweird.f32 %v125
  %v325 = vadd.s32 %v321, 3
  %v326 = vand.u32 %v325, 3
  %vm327 = vcmp.lt.s32.totalorder %v326, 2
  %vm328 = vcmp.eq.s32.totalorder %v326, 0
  %v329 = vxor.u32 %v323, 2147483648
  %v330 = vsel %vm328, %v322, %v329
  %vm331 = vcmp.eq.s32.totalorder %v326, 2
  %v332 = vxor.u32 %v322, 2147483648
  %v333 = vsel %vm331, %v332, %v323
  %v334 = vsel %vm327, %v330, %v333
  %v335 = vsel %vm324, nan, %v334
  %v336 = vand.u32 2147483647, %v126
  %vm337 = vcmp.le.f32.partialorder %v336, 0.7853982
  %vm338 = vcmp.lt.s32.totalorder %v126, 0
  %v339 = vand.u32 %v126, 2139095040
  %v340 = vshrl.u32 %v339, 23
  %v341 = vsub.s32 %v340, 127
  %v342 = vand.u32 2147483647, %v126
  %v343 = vand.u32 %v342, 8388607
  %v344 = vor.u32 %v343, 8388608
  %v345 = vsub.s32 0, %v344
  %v346 = vadd.s32 %v341, 1
  %vm347 = vcmp.gt.s32.totalorder %v346, 0
  %v348 = vsel %vm347, %v346, 0
  %v349 = vshrl.u32 %v348, 5
  %v350 = vand.u32 %v348, 31
  %v351 = vsub.s32 32, %v350
  %v352 = vshrl.u32 683565275, %v351
  %v353 = vshll.u32 683565275, %v350
  %v354 = vshrl.u32 2475754826, %v351
  %v355 = vor.u32 %v353, %v354
  %v356 = vshll.u32 2475754826, %v350
  %v357 = vshrl.u32 2131351028, %v351
  %v358 = vor.u32 %v356, %v357
  %v359 = vshll.u32 2131351028, %v350
  %v360 = vshrl.u32 2102212464, %v351
  %v361 = vor.u32 %v359, %v360
  %v362 = vshll.u32 2102212464, %v350
  %v363 = vshrl.u32 920167782, %v351
  %v364 = vor.u32 %v362, %v363
  %v365 = vshll.u32 920167782, %v350
  %v366 = vshrl.u32 1326507024, %v351
  %v367 = vor.u32 %v365, %v366
  %vm368 = vcmp.lt.s32.totalorder %v349, 1
  %vm369 = vcmp.lt.s32.totalorder %v349, 2
  %vm370 = vcmp.lt.s32.totalorder %v349, 3
  %vm371 = vcmp.lt.s32.totalorder %v349, 4
  %v372 = vsel %vm368, %v352, %v355
  %v373 = vsel %vm371, %v361, 2102212464
  %v374 = vsel %vm370, %v358, %v373
  %v375 = vsel %vm369, %v372, %v374
  %v376 = vsel %vm368, %v355, %v358
  %v377 = vsel %vm371, %v364, 920167782
  %v378 = vsel %vm370, %v361, %v377
  %v379 = vsel %vm369, %v376, %v378
  %v380 = vsel %vm368, %v358, %v361
  %v381 = vsel %vm371, %v367, 1326507024
  %v382 = vsel %vm370, %v364, %v381
  %v383 = vsel %vm369, %v380, %v382
  %v384 = vshll.u32 %v344, 8
  %v385 = vmul.u32.u64.compose %v384, %v383
  %v386 = vextract.low.u32 %v385
  %v387 = vextract.high.u32 %v385
  %v388 = vmul.u32.u64.compose %v384, %v379
  %v389 = vextract.low.u32 %v388
  %v390 = vextract.high.u32 %v388
  %v391 = vmul.u32 %v384, %v375
  %v392 = vadd.s32 %v387, %v389
  %vm393 = vc.u32 %v387, %v389
  %v394 = vadd.s32 %v390, 1
  %v395 = vsel %vm393, %v394, %v390
  %v396 = vadd.s32 %v391, %v395
  %v397 = vadd.s32 %v396, 536870912
  %v398 = vshrl.u32 %v397, 30
  %v399 = vshll.u32 %v398, 30
  %v400 = vsub.s32 %v396, %v399
  %vm401 = vcmp.lt.s32.totalorder %v400, 0
  %v402 = vsub.s32 0, %v400
  %v403 = vsel %vm401, %v402, %v400
  %v404 = vclz %v403
  %v405 = vsub.s32 %v404, 2
  %vm406 = vcmp.gt.s32.totalorder 0, %v405
  %v407 = vsel %vm406, 0, %v405
  %v408 = vsub.s32 32, %v407
  %v409 = vshll.u32 %v400, %v407
  %v410 = vshrl.u32 %v392, %v408
  %v411 = vor.u32 %v409, %v410
  %v412 = vsub.s32 4294967266, %v407
  %v413 = vadd.s32 %v412, 127
  %v414 = vshll.u32 %v413, 23
  %v415 = vor.u32 4788187, %v414
  %v416 = vand.u32 2147483647, %v415
  %v418 = vcvt.s32.f32 %v411
  %v419 = vmul.f32 %v418, %v416
  %v420 = vxor.u32 %v419, 2147483648
  %v421 = vsel %vm338, %v420, %v419
  %v422 = vsub.s32 4, %v398
  %v423 = vsel %vm338, %v422, %v398
  %v424 = vsel %vm337, %v126, %v421
  %v425 = vsel %vm337, 0, %v423
  %v426 = vcosq.f32.pop %v424
  %v427 = vsinq.f32.pop %v424
  %vm428 = vweird.f32 %v126
  %v429 = vadd.s32 %v425, 3
  %v430 = vand.u32 %v429, 3
  %vm431 = vcmp.lt.s32.totalorder %v430, 2
  %vm432 = vcmp.eq.s32.totalorder %v430, 0
  %v433 = vxor.u32 %v427, 2147483648
  %v434 = vsel %vm432, %v426, %v433
  %vm435 = vcmp.eq.s32.totalorder %v430, 2
  %v436 = vxor.u32 %v426, 2147483648
  %v437 = vsel %vm435, %v436, %v427
  %v438 = vsel %vm431, %v434, %v437
  %v439 = vsel %vm428, nan, %v438
  %v440 = vand.u32 2147483647, %v127
  %vm441 = vcmp.le.f32.partialorder %v440, 0.7853982
  %vm442 = vcmp.lt.s32.totalorder %v127, 0
  %v443 = vand.u32 %v127, 2139095040
  %v444 = vshrl.u32 %v443, 23
  %v445 = vsub.s32 %v444, 127
  %v446 = vand.u32 2147483647, %v127
  %v447 = vand.u32 %v446, 8388607
  %v448 = vor.u32 %v447, 8388608
  %v449 = vsub.s32 0, %v448
  %v450 = vadd.s32 %v445, 1
  %vm451 = vcmp.gt.s32.totalorder %v450, 0
  %v452 = vsel %vm451, %v450, 0
  %v453 = vshrl.u32 %v452, 5
  %v454 = vand.u32 %v452, 31
  %v455 = vsub.s32 32, %v454
  %v456 = vshrl.u32 683565275, %v455
  %v457 = vshll.u32 683565275, %v454
  %v458 = vshrl.u32 2475754826, %v455
  %v459 = vor.u32 %v457, %v458
  %v460 = vshll.u32 2475754826, %v454
  %v461 = vshrl.u32 2131351028, %v455
  %v462 = vor.u32 %v460, %v461
  %v463 = vshll.u32 2131351028, %v454
  %v464 = vshrl.u32 2102212464, %v455
  %v465 = vor.u32 %v463, %v464
  %v466 = vshll.u32 2102212464, %v454
  %v467 = vshrl.u32 920167782, %v455
  %v468 = vor.u32 %v466, %v467
  %v469 = vshll.u32 920167782, %v454
  %v470 = vshrl.u32 1326507024, %v455
  %v471 = vor.u32 %v469, %v470
  %vm472 = vcmp.lt.s32.totalorder %v453, 1
  %vm473 = vcmp.lt.s32.totalorder %v453, 2
  %vm474 = vcmp.lt.s32.totalorder %v453, 3
  %vm475 = vcmp.lt.s32.totalorder %v453, 4
  %v476 = vsel %vm472, %v456, %v459
  %v477 = vsel %vm475, %v465, 2102212464
  %v478 = vsel %vm474, %v462, %v477
  %v479 = vsel %vm473, %v476, %v478
  %v480 = vsel %vm472, %v459, %v462
  %v481 = vsel %vm475, %v468, 920167782
  %v482 = vsel %vm474, %v465, %v481
  %v483 = vsel %vm473, %v480, %v482
  %v484 = vsel %vm472, %v462, %v465
  %v485 = vsel %vm475, %v471, 1326507024
  %v486 = vsel %vm474, %v468, %v485
  %v487 = vsel %vm473, %v484, %v486
  %v488 = vshll.u32 %v448, 8
  %v489 = vmul.u32.u64.compose %v488, %v487
  %v490 = vextract.low.u32 %v489
  %v491 = vextract.high.u32 %v489
  %v492 = vmul.u32.u64.compose %v488, %v483
  %v493 = vextract.low.u32 %v492
  %v494 = vextract.high.u32 %v492
  %v495 = vmul.u32 %v488, %v479
  %v496 = vadd.s32 %v491, %v493
  %vm497 = vc.u32 %v491, %v493
  %v498 = vadd.s32 %v494, 1
  %v499 = vsel %vm497, %v498, %v494
  %v500 = vadd.s32 %v495, %v499
  %v501 = vadd.s32 %v500, 536870912
  %v502 = vshrl.u32 %v501, 30
  %v503 = vshll.u32 %v502, 30
  %v504 = vsub.s32 %v500, %v503
  %vm505 = vcmp.lt.s32.totalorder %v504, 0
  %v506 = vsub.s32 0, %v504
  %v507 = vsel %vm505, %v506, %v504
  %v508 = vclz %v507
  %v509 = vsub.s32 %v508, 2
  %vm510 = vcmp.gt.s32.totalorder 0, %v509
  %v511 = vsel %vm510, 0, %v509
  %v512 = vsub.s32 32, %v511
  %v513 = vshll.u32 %v504, %v511
  %v514 = vshrl.u32 %v496, %v512
  %v515 = vor.u32 %v513, %v514
  %v516 = vsub.s32 4294967266, %v511
  %v517 = vadd.s32 %v516, 127
  %v518 = vshll.u32 %v517, 23
  %v519 = vor.u32 4788187, %v518
  %v520 = vand.u32 2147483647, %v519
  %v522 = vcvt.s32.f32 %v515
  %v523 = vmul.f32 %v522, %v520
  %v524 = vxor.u32 %v523, 2147483648
  %v525 = vsel %vm442, %v524, %v523
  %v526 = vsub.s32 4, %v502
  %v527 = vsel %vm442, %v526, %v502
  %v528 = vsel %vm441, %v127, %v525
  %v529 = vsel %vm441, 0, %v527
  %v530 = vcosq.f32.pop %v528
  %v531 = vsinq.f32.pop %v528
  %vm532 = vweird.f32 %v127
  %v533 = vadd.s32 %v529, 3
  %v534 = vand.u32 %v533, 3
  %vm535 = vcmp.lt.s32.totalorder %v534, 2
  %vm536 = vcmp.eq.s32.totalorder %v534, 0
  %v537 = vxor.u32 %v531, 2147483648
  %v538 = vsel %vm536, %v530, %v537
  %vm539 = vcmp.eq.s32.totalorder %v534, 2
  %v540 = vxor.u32 %v530, 2147483648
  %v541 = vsel %vm539, %v540, %v531
  %v542 = vsel %vm535, %v538, %v541
  %v543 = vsel %vm532, nan, %v542
  %v544 = vand.u32 2147483647, %v124
  %vm545 = vcmp.le.f32.partialorder %v544, 0.7853982
  %vm546 = vcmp.lt.s32.totalorder %v124, 0
  %v547 = vand.u32 %v124, 2139095040
  %v548 = vshrl.u32 %v547, 23
  %v549 = vsub.s32 %v548, 127
  %v550 = vand.u32 2147483647, %v124
  %v551 = vand.u32 %v550, 8388607
  %v552 = vor.u32 %v551, 8388608
  %v553 = vsub.s32 0, %v552
  %v554 = vadd.s32 %v549, 1
  %vm555 = vcmp.gt.s32.totalorder %v554, 0
  %v556 = vsel %vm555, %v554, 0
  %v557 = vshrl.u32 %v556, 5
  %v558 = vand.u32 %v556, 31
  %v559 = vsub.s32 32, %v558
  %v560 = vshrl.u32 683565275, %v559
  %v561 = vshll.u32 683565275, %v558
  %v562 = vshrl.u32 2475754826, %v559
  %v563 = vor.u32 %v561, %v562
  %v564 = vshll.u32 2475754826, %v558
  %v565 = vshrl.u32 2131351028, %v559
  %v566 = vor.u32 %v564, %v565
  %v567 = vshll.u32 2131351028, %v558
  %v568 = vshrl.u32 2102212464, %v559
  %v569 = vor.u32 %v567, %v568
  %v570 = vshll.u32 2102212464, %v558
  %v571 = vshrl.u32 920167782, %v559
  %v572 = vor.u32 %v570, %v571
  %v573 = vshll.u32 920167782, %v558
  %v574 = vshrl.u32 1326507024, %v559
  %v575 = vor.u32 %v573, %v574
  %vm576 = vcmp.lt.s32.totalorder %v557, 1
  %vm577 = vcmp.lt.s32.totalorder %v557, 2
  %vm578 = vcmp.lt.s32.totalorder %v557, 3
  %vm579 = vcmp.lt.s32.totalorder %v557, 4
  %v580 = vsel %vm576, %v560, %v563
  %v581 = vsel %vm579, %v569, 2102212464
  %v582 = vsel %vm578, %v566, %v581
  %v583 = vsel %vm577, %v580, %v582
  %v584 = vsel %vm576, %v563, %v566
  %v585 = vsel %vm579, %v572, 920167782
  %v586 = vsel %vm578, %v569, %v585
  %v587 = vsel %vm577, %v584, %v586
  %v588 = vsel %vm576, %v566, %v569
  %v589 = vsel %vm579, %v575, 1326507024
  %v590 = vsel %vm578, %v572, %v589
  %v591 = vsel %vm577, %v588, %v590
  %v592 = vshll.u32 %v552, 8
  %v593 = vmul.u32.u64.compose %v592, %v591
  %v594 = vextract.low.u32 %v593
  %v595 = vextract.high.u32 %v593
  %v596 = vmul.u32.u64.compose %v592, %v587
  %v597 = vextract.low.u32 %v596
  %v598 = vextract.high.u32 %v596
  %v599 = vmul.u32 %v592, %v583
  %v600 = vadd.s32 %v595, %v597
  %vm601 = vc.u32 %v595, %v597
  %v602 = vadd.s32 %v598, 1
  %v603 = vsel %vm601, %v602, %v598
  %v604 = vadd.s32 %v599, %v603
  %v605 = vadd.s32 %v604, 536870912
  %v606 = vshrl.u32 %v605, 30
  %v607 = vshll.u32 %v606, 30
  %v608 = vsub.s32 %v604, %v607
  %vm609 = vcmp.lt.s32.totalorder %v608, 0
  %v610 = vsub.s32 0, %v608
  %v611 = vsel %vm609, %v610, %v608
  %v612 = vclz %v611
  %v613 = vsub.s32 %v612, 2
  %vm614 = vcmp.gt.s32.totalorder 0, %v613
  %v615 = vsel %vm614, 0, %v613
  %v616 = vsub.s32 32, %v615
  %v617 = vshll.u32 %v608, %v615
  %v618 = vshrl.u32 %v600, %v616
  %v619 = vor.u32 %v617, %v618
  %v620 = vsub.s32 4294967266, %v615
  %v621 = vadd.s32 %v620, 127
  %v622 = vshll.u32 %v621, 23
  %v623 = vor.u32 4788187, %v622
  %v624 = vand.u32 2147483647, %v623
  %v626 = vcvt.s32.f32 %v619
  %v627 = vmul.f32 %v626, %v624
  %v628 = vxor.u32 %v627, 2147483648
  %v629 = vsel %vm546, %v628, %v627
  %v630 = vsub.s32 4, %v606
  %v631 = vsel %vm546, %v630, %v606
  %v632 = vsel %vm545, %v124, %v629
  %v633 = vsel %vm545, 0, %v631
  %v634 = vcosq.f32.pop %v632
  %v635 = vsinq.f32.pop %v632
  %vm636 = vweird.f32 %v124
  %v637 = vand.u32 %v633, 3
  %vm638 = vcmp.lt.s32.totalorder %v637, 2
  %vm639 = vcmp.eq.s32.totalorder %v637, 0
  %v640 = vxor.u32 %v635, 2147483648
  %v641 = vsel %vm639, %v634, %v640
  %vm642 = vcmp.eq.s32.totalorder %v637, 2
  %v643 = vxor.u32 %v634, 2147483648
  %v644 = vsel %vm642, %v643, %v635
  %v645 = vsel %vm638, %v641, %v644
  %v646 = vsel %vm636, nan, %v645
  %v647 = vand.u32 2147483647, %v125
  %vm648 = vcmp.le.f32.partialorder %v647, 0.7853982
  %vm649 = vcmp.lt.s32.totalorder %v125, 0
  %v650 = vand.u32 %v125, 2139095040
  %v651 = vshrl.u32 %v650, 23
  %v652 = vsub.s32 %v651, 127
  %v653 = vand.u32 2147483647, %v125
  %v654 = vand.u32 %v653, 8388607
  %v655 = vor.u32 %v654, 8388608
  %v656 = vsub.s32 0, %v655
  %v657 = vadd.s32 %v652, 1
  %vm658 = vcmp.gt.s32.totalorder %v657, 0
  %v659 = vsel %vm658, %v657, 0
  %v660 = vshrl.u32 %v659, 5
  %v661 = vand.u32 %v659, 31
  %v662 = vsub.s32 32, %v661
  %v663 = vshrl.u32 683565275, %v662
  %v664 = vshll.u32 683565275, %v661
  %v665 = vshrl.u32 2475754826, %v662
  %v666 = vor.u32 %v664, %v665
  %v667 = vshll.u32 2475754826, %v661
  %v668 = vshrl.u32 2131351028, %v662
  %v669 = vor.u32 %v667, %v668
  %v670 = vshll.u32 2131351028, %v661
  %v671 = vshrl.u32 2102212464, %v662
  %v672 = vor.u32 %v670, %v671
  %v673 = vshll.u32 2102212464, %v661
  %v674 = vshrl.u32 920167782, %v662
  %v675 = vor.u32 %v673, %v674
  %v676 = vshll.u32 920167782, %v661
  %v677 = vshrl.u32 1326507024, %v662
  %v678 = vor.u32 %v676, %v677
  %vm679 = vcmp.lt.s32.totalorder %v660, 1
  %vm680 = vcmp.lt.s32.totalorder %v660, 2
  %vm681 = vcmp.lt.s32.totalorder %v660, 3
  %vm682 = vcmp.lt.s32.totalorder %v660, 4
  %v683 = vsel %vm679, %v663, %v666
  %v684 = vsel %vm682, %v672, 2102212464
  %v685 = vsel %vm681, %v669, %v684
  %v686 = vsel %vm680, %v683, %v685
  %v687 = vsel %vm679, %v666, %v669
  %v688 = vsel %vm682, %v675, 920167782
  %v689 = vsel %vm681, %v672, %v688
  %v690 = vsel %vm680, %v687, %v689
  %v691 = vsel %vm679, %v669, %v672
  %v692 = vsel %vm682, %v678, 1326507024
  %v693 = vsel %vm681, %v675, %v692
  %v694 = vsel %vm680, %v691, %v693
  %v695 = vshll.u32 %v655, 8
  %v696 = vmul.u32.u64.compose %v695, %v694
  %v697 = vextract.low.u32 %v696
  %v698 = vextract.high.u32 %v696
  %v699 = vmul.u32.u64.compose %v695, %v690
  %v700 = vextract.low.u32 %v699
  %v701 = vextract.high.u32 %v699
  %v702 = vmul.u32 %v695, %v686
  %v703 = vadd.s32 %v698, %v700
  %vm704 = vc.u32 %v698, %v700
  %v705 = vadd.s32 %v701, 1
  %v706 = vsel %vm704, %v705, %v701
  %v707 = vadd.s32 %v702, %v706
  %v708 = vadd.s32 %v707, 536870912
  %v709 = vshrl.u32 %v708, 30
  %v710 = vshll.u32 %v709, 30
  %v711 = vsub.s32 %v707, %v710
  %vm712 = vcmp.lt.s32.totalorder %v711, 0
  %v713 = vsub.s32 0, %v711
  %v714 = vsel %vm712, %v713, %v711
  %v715 = vclz %v714
  %v716 = vsub.s32 %v715, 2
  %vm717 = vcmp.gt.s32.totalorder 0, %v716
  %v718 = vsel %vm717, 0, %v716
  %v719 = vsub.s32 32, %v718
  %v720 = vshll.u32 %v711, %v718
  %v721 = vshrl.u32 %v703, %v719
  %v722 = vor.u32 %v720, %v721
  %v723 = vsub.s32 4294967266, %v718
  %v724 = vadd.s32 %v723, 127
  %v725 = vshll.u32 %v724, 23
  %v726 = vor.u32 4788187, %v725
  %v727 = vand.u32 2147483647, %v726
  %v729 = vcvt.s32.f32 %v722
  %v730 = vmul.f32 %v729, %v727
  %v731 = vxor.u32 %v730, 2147483648
  %v732 = vsel %vm649, %v731, %v730
  %v733 = vsub.s32 4, %v709
  %v734 = vsel %vm649, %v733, %v709
  %v735 = vsel %vm648, %v125, %v732
  %v736 = vsel %vm648, 0, %v734
  %v737 = vcosq.f32.pop %v735
  %v738 = vsinq.f32.pop %v735
  %vm739 = vweird.f32 %v125
  %v740 = vand.u32 %v736, 3
  %vm741 = vcmp.lt.s32.totalorder %v740, 2
  %vm742 = vcmp.eq.s32.totalorder %v740, 0
  %v743 = vxor.u32 %v738, 2147483648
  %v744 = vsel %vm742, %v737, %v743
  %vm745 = vcmp.eq.s32.totalorder %v740, 2
  %v746 = vxor.u32 %v737, 2147483648
  %v747 = vsel %vm745, %v746, %v738
  %v748 = vsel %vm741, %v744, %v747
  %v749 = vsel %vm739, nan, %v748
  %v750 = vand.u32 2147483647, %v126
  %vm751 = vcmp.le.f32.partialorder %v750, 0.7853982
  %vm752 = vcmp.lt.s32.totalorder %v126, 0
  %v753 = vand.u32 %v126, 2139095040
  %v754 = vshrl.u32 %v753, 23
  %v755 = vsub.s32 %v754, 127
  %v756 = vand.u32 2147483647, %v126
  %v757 = vand.u32 %v756, 8388607
  %v758 = vor.u32 %v757, 8388608
  %v759 = vsub.s32 0, %v758
  %v760 = vadd.s32 %v755, 1
  %vm761 = vcmp.gt.s32.totalorder %v760, 0
  %v762 = vsel %vm761, %v760, 0
  %v763 = vshrl.u32 %v762, 5
  %v764 = vand.u32 %v762, 31
  %v765 = vsub.s32 32, %v764
  %v766 = vshrl.u32 683565275, %v765
  %v767 = vshll.u32 683565275, %v764
  %v768 = vshrl.u32 2475754826, %v765
  %v769 = vor.u32 %v767, %v768
  %v770 = vshll.u32 2475754826, %v764
  %v771 = vshrl.u32 2131351028, %v765
  %v772 = vor.u32 %v770, %v771
  %v773 = vshll.u32 2131351028, %v764
  %v774 = vshrl.u32 2102212464, %v765
  %v775 = vor.u32 %v773, %v774
  %v776 = vshll.u32 2102212464, %v764
  %v777 = vshrl.u32 920167782, %v765
  %v778 = vor.u32 %v776, %v777
  %v779 = vshll.u32 920167782, %v764
  %v780 = vshrl.u32 1326507024, %v765
  %v781 = vor.u32 %v779, %v780
  %vm782 = vcmp.lt.s32.totalorder %v763, 1
  %vm783 = vcmp.lt.s32.totalorder %v763, 2
  %vm784 = vcmp.lt.s32.totalorder %v763, 3
  %vm785 = vcmp.lt.s32.totalorder %v763, 4
  %v786 = vsel %vm782, %v766, %v769
  %v787 = vsel %vm785, %v775, 2102212464
  %v788 = vsel %vm784, %v772, %v787
  %v789 = vsel %vm783, %v786, %v788
  %v790 = vsel %vm782, %v769, %v772
  %v791 = vsel %vm785, %v778, 920167782
  %v792 = vsel %vm784, %v775, %v791
  %v793 = vsel %vm783, %v790, %v792
  %v794 = vsel %vm782, %v772, %v775
  %v795 = vsel %vm785, %v781, 1326507024
  %v796 = vsel %vm784, %v778, %v795
  %v797 = vsel %vm783, %v794, %v796
  %v798 = vshll.u32 %v758, 8
  %v799 = vmul.u32.u64.compose %v798, %v797
  %v800 = vextract.low.u32 %v799
  %v801 = vextract.high.u32 %v799
  %v802 = vmul.u32.u64.compose %v798, %v793
  %v803 = vextract.low.u32 %v802
  %v804 = vextract.high.u32 %v802
  %v805 = vmul.u32 %v798, %v789
  %v806 = vadd.s32 %v801, %v803
  %vm807 = vc.u32 %v801, %v803
  %v808 = vadd.s32 %v804, 1
  %v809 = vsel %vm807, %v808, %v804
  %v810 = vadd.s32 %v805, %v809
  %v811 = vadd.s32 %v810, 536870912
  %v812 = vshrl.u32 %v811, 30
  %v813 = vshll.u32 %v812, 30
  %v814 = vsub.s32 %v810, %v813
  %vm815 = vcmp.lt.s32.totalorder %v814, 0
  %v816 = vsub.s32 0, %v814
  %v817 = vsel %vm815, %v816, %v814
  %v818 = vclz %v817
  %v819 = vsub.s32 %v818, 2
  %vm820 = vcmp.gt.s32.totalorder 0, %v819
  %v821 = vsel %vm820, 0, %v819
  %v822 = vsub.s32 32, %v821
  %v823 = vshll.u32 %v814, %v821
  %v824 = vshrl.u32 %v806, %v822
  %v825 = vor.u32 %v823, %v824
  %v826 = vsub.s32 4294967266, %v821
  %v827 = vadd.s32 %v826, 127
  %v828 = vshll.u32 %v827, 23
  %v829 = vor.u32 4788187, %v828
  %v830 = vand.u32 2147483647, %v829
  %v832 = vcvt.s32.f32 %v825
  %v833 = vmul.f32 %v832, %v830
  %v834 = vxor.u32 %v833, 2147483648
  %v835 = vsel %vm752, %v834, %v833
  %v836 = vsub.s32 4, %v812
  %v837 = vsel %vm752, %v836, %v812
  %v838 = vsel %vm751, %v126, %v835
  %v839 = vsel %vm751, 0, %v837
  %v840 = vcosq.f32.pop %v838
  %v841 = vsinq.f32.pop %v838
  %vm842 = vweird.f32 %v126
  %v843 = vand.u32 %v839, 3
  %vm844 = vcmp.lt.s32.totalorder %v843, 2
  %vm845 = vcmp.eq.s32.totalorder %v843, 0
  %v846 = vxor.u32 %v841, 2147483648
  %v847 = vsel %vm845, %v840, %v846
  %vm848 = vcmp.eq.s32.totalorder %v843, 2
  %v849 = vxor.u32 %v840, 2147483648
  %v850 = vsel %vm848, %v849, %v841
  %v851 = vsel %vm844, %v847, %v850
  %v852 = vsel %vm842, nan, %v851
  %v853 = vand.u32 2147483647, %v127
  %vm854 = vcmp.le.f32.partialorder %v853, 0.7853982
  %vm855 = vcmp.lt.s32.totalorder %v127, 0
  %v856 = vand.u32 %v127, 2139095040
  %v857 = vshrl.u32 %v856, 23
  %v858 = vsub.s32 %v857, 127
  %v859 = vand.u32 2147483647, %v127
  %v860 = vand.u32 %v859, 8388607
  %v861 = vor.u32 %v860, 8388608
  %v862 = vsub.s32 0, %v861
  %v863 = vadd.s32 %v858, 1
  %vm864 = vcmp.gt.s32.totalorder %v863, 0
  %v865 = vsel %vm864, %v863, 0
  %v866 = vshrl.u32 %v865, 5
  %v867 = vand.u32 %v865, 31
  %v868 = vsub.s32 32, %v867
  %v869 = vshrl.u32 683565275, %v868
  %v870 = vshll.u32 683565275, %v867
  %v871 = vshrl.u32 2475754826, %v868
  %v872 = vor.u32 %v870, %v871
  %v873 = vshll.u32 2475754826, %v867
  %v874 = vshrl.u32 2131351028, %v868
  %v875 = vor.u32 %v873, %v874
  %v876 = vshll.u32 2131351028, %v867
  %v877 = vshrl.u32 2102212464, %v868
  %v878 = vor.u32 %v876, %v877
  %v879 = vshll.u32 2102212464, %v867
  %v880 = vshrl.u32 920167782, %v868
  %v881 = vor.u32 %v879, %v880
  %v882 = vshll.u32 920167782, %v867
  %v883 = vshrl.u32 1326507024, %v868
  %v884 = vor.u32 %v882, %v883
  %vm885 = vcmp.lt.s32.totalorder %v866, 1
  %vm886 = vcmp.lt.s32.totalorder %v866, 2
  %vm887 = vcmp.lt.s32.totalorder %v866, 3
  %vm888 = vcmp.lt.s32.totalorder %v866, 4
  %v889 = vsel %vm885, %v869, %v872
  %v890 = vsel %vm888, %v878, 2102212464
  %v891 = vsel %vm887, %v875, %v890
  %v892 = vsel %vm886, %v889, %v891
  %v893 = vsel %vm885, %v872, %v875
  %v894 = vsel %vm888, %v881, 920167782
  %v895 = vsel %vm887, %v878, %v894
  %v896 = vsel %vm886, %v893, %v895
  %v897 = vsel %vm885, %v875, %v878
  %v898 = vsel %vm888, %v884, 1326507024
  %v899 = vsel %vm887, %v881, %v898
  %v900 = vsel %vm886, %v897, %v899
  %v901 = vshll.u32 %v861, 8
  %v902 = vmul.u32.u64.compose %v901, %v900
  %v903 = vextract.low.u32 %v902
  %v904 = vextract.high.u32 %v902
  %v905 = vmul.u32.u64.compose %v901, %v896
  %v906 = vextract.low.u32 %v905
  %v907 = vextract.high.u32 %v905
  %v908 = vmul.u32 %v901, %v892
  %v909 = vadd.s32 %v904, %v906
  %vm910 = vc.u32 %v904, %v906
  %v911 = vadd.s32 %v907, 1
  %v912 = vsel %vm910, %v911, %v907
  %v913 = vadd.s32 %v908, %v912
  %v914 = vadd.s32 %v913, 536870912
  %v915 = vshrl.u32 %v914, 30
  %v916 = vshll.u32 %v915, 30
  %v917 = vsub.s32 %v913, %v916
  %vm918 = vcmp.lt.s32.totalorder %v917, 0
  %v919 = vsub.s32 0, %v917
  %v920 = vsel %vm918, %v919, %v917
  %v921 = vclz %v920
  %v922 = vsub.s32 %v921, 2
  %vm923 = vcmp.gt.s32.totalorder 0, %v922
  %v924 = vsel %vm923, 0, %v922
  %v925 = vsub.s32 32, %v924
  %v926 = vshll.u32 %v917, %v924
  %v927 = vshrl.u32 %v909, %v925
  %v928 = vor.u32 %v926, %v927
  %v929 = vsub.s32 4294967266, %v924
  %v930 = vadd.s32 %v929, 127
  %v931 = vshll.u32 %v930, 23
  %v932 = vor.u32 4788187, %v931
  %v933 = vand.u32 2147483647, %v932
  %v935 = vcvt.s32.f32 %v928
  %v936 = vmul.f32 %v935, %v933
  %v937 = vxor.u32 %v936, 2147483648
  %v938 = vsel %vm855, %v937, %v936
  %v939 = vsub.s32 4, %v915
  %v940 = vsel %vm855, %v939, %v915
  %v941 = vsel %vm854, %v127, %v938
  %v942 = vsel %vm854, 0, %v940
  %v943 = vcosq.f32.pop %v941
  %v944 = vsinq.f32.pop %v941
  %vm945 = vweird.f32 %v127
  %v946 = vand.u32 %v942, 3
  %vm947 = vcmp.lt.s32.totalorder %v946, 2
  %vm948 = vcmp.eq.s32.totalorder %v946, 0
  %v949 = vxor.u32 %v944, 2147483648
  %v950 = vsel %vm948, %v943, %v949
  %vm951 = vcmp.eq.s32.totalorder %v946, 2
  %v952 = vxor.u32 %v943, 2147483648
  %v953 = vsel %vm951, %v952, %v944
  %v954 = vsel %vm947, %v950, %v953
  %v955 = vsel %vm945, nan, %v954
  %vm956 = vcmask 523264
  %v958 = vsel %vm956, %v22, 0
  %v961 = vsel %vm956, %v23, 0
  %v964 = vsel %vm956, %v24, 0
  %v967 = vsel %vm956, %v25, 0
  %v970 = vsel %vm956, %v26, 0
  %v973 = vsel %vm956, %v27, 0
  %v976 = vsel %vm956, %v28, 0
  %v979 = vsel %vm956, %v29, 0
  %v982 = vsel %vm956, %v30, 0
  %v985 = vsel %vm956, %v31, 0
  %v988 = vsel %vm956, %v32, 0
  %v991 = vsel %vm956, %v33, 0
  %v994 = vsel %vm956, %v34, 0
  %v997 = vsel %vm956, %v35, 0
  %v1000 = vsel %vm956, %v36, 0
  %v1003 = vsel %vm956, %v37, 0
  %1005 = vmatprep.subr.mxu0 0.0
  %1006 = vmatpush1.msra.mxu0 %v231
  %1007 = vmatprep.subr.mxu0 0.0
  %1008 = vmatpush1.msra.mxu0 %v335
  %1009 = vmatprep.subr.mxu0 0.0
  %1010 = vmatpush1.msra.mxu0 %v439
  %1011 = vmatprep.subr.mxu0 0.0
  %1012 = vmatpush1.msra.mxu0 %v543
  %1013 = vmatprep.subr.mxu0 0.0
  %1014 = vmatpush1.msra.mxu0 %v646
  %1015 = vmatprep.subr.mxu0 0.0
  %1016 = vmatpush1.msra.mxu0 %v749
  %1017 = vmatprep.subr.mxu0 0.0
  %1018 = vmatpush1.msra.mxu0 %v852
  %1019 = vmatprep.subr.mxu0 0.0
  %1020 = vmatpush1.msra.mxu0 %v955
  %1021 = vmatprep.subr.mxu0 0.0
  %1022 = vmatpush1.msra.mxu0 0.0
  %1023 = vmatprep.subr.mxu0 0.0
  %1024 = vmatpush1.msra.mxu0 0.0
  %1025 = vmatprep.subr.mxu0 0.0
  %1026 = vmatpush1.msra.mxu0 0.0
  %1027 = vmatprep.subr.mxu0 0.0
  %1028 = vmatpush1.msra.mxu0 0.0
  %1029 = vmatprep.subr.mxu0 0.0
  %1030 = vmatpush1.msra.mxu0 0.0
  %1031 = vmatprep.subr.mxu0 0.0
  %1032 = vmatpush1.msra.mxu0 0.0
  %1033 = vmatprep.subr.mxu0 0.0
  %1034 = vmatpush1.msra.mxu0 0.0
  %1035 = vmatprep.subr.mxu0 0.0
  %1036 = vmatpush1.msra.mxu0 0.0
  %1037 = vmatprep.subr.mxu0 0.0
  %1038 = vmatpush1.msra.mxu0 0.0
  %1039 = vmatprep.subr.mxu0 0.0
  %1040 = vmatpush1.msra.mxu0 0.0
  %1041 = vmatprep.subr.mxu0 0.0
  %1042 = vmatpush1.msra.mxu0 0.0
  %1043 = vmatprep.subr.mxu0 0.0
  %1044 = vmatpush1.msra.mxu0 0.0
  %1045 = vmatprep.subr.mxu0 0.0
  %1046 = vmatpush1.msra.mxu0 0.0
  %1047 = vmatprep.subr.mxu0 0.0
  %1048 = vmatpush1.msra.mxu0 0.0
  %1049 = vmatprep.subr.mxu0 0.0
  %1050 = vmatpush1.msra.mxu0 0.0
  %1051 = vmatprep.subr.mxu0 0.0
  %1052 = vmatpush1.msra.mxu0 0.0
  %1053 = vmatprep.subr.mxu0 0.0
  %1054 = vmatpush1.msra.mxu0 0.0
  %1055 = vmatprep.subr.mxu0 0.0
  %1056 = vmatpush1.msra.mxu0 0.0
  %1057 = vmatprep.subr.mxu0 0.0
  %1058 = vmatpush1.msra.mxu0 0.0
  %1059 = vmatprep.subr.mxu0 0.0
  %1060 = vmatpush1.msra.mxu0 0.0
  %1061 = vmatprep.subr.mxu0 0.0
  %1062 = vmatpush1.msra.mxu0 0.0
  %1063 = vmatprep.subr.mxu0 0.0
  %1064 = vmatpush1.msra.mxu0 0.0
  %1065 = vmatprep.subr.mxu0 0.0
  %1066 = vmatpush1.msra.mxu0 0.0
  %1067 = vmatprep.subr.mxu0 0.0
  %1068 = vmatpush1.msra.mxu0 0.0
  %1069 = vmatprep.mubr.f32.mxu0 0.0
  %1070 = vmatmul.mubr.f32.gmra.mrb[0].mxu0 %v958
  %v1071 = vpop.f32.mrb[0].mxu0
  %v1072 = vadd.f32 0.0, %v1071
  %v1073 = vpop.f32.mrb[0].mxu0
  %1074 = vmatprep.mubr.f32.mxu0 0.0
  %1075 = vmatmul.mubr.f32.gmra.mrb[0].mxu0 %v961
  %v1076 = vpop.f32.mrb[0].mxu0
  %v1077 = vadd.f32 0.0, %v1076
  %v1078 = vpop.f32.mrb[0].mxu0
  %1079 = vmatprep.mubr.f32.mxu0 0.0
  %1080 = vmatmul.mubr.f32.gmra.mrb[0].mxu0 %v964
  %v1081 = vpop.f32.mrb[0].mxu0
  %v1082 = vadd.f32 0.0, %v1081
  %v1083 = vpop.f32.mrb[0].mxu0
  %1084 = vmatprep.mubr.f32.mxu0 0.0
  %1085 = vmatmul.mubr.f32.gmra.mrb[0].mxu0 %v967
  %v1086 = vpop.f32.mrb[0].mxu0
  %v1087 = vadd.f32 0.0, %v1086
  %v1088 = vpop.f32.mrb[0].mxu0
  %1089 = vmatprep.mubr.f32.mxu0 0.0
  %1090 = vmatmul.mubr.f32.gmra.mrb[0].mxu0 %v970
  %v1091 = vpop.f32.mrb[0].mxu0
  %v1092 = vadd.f32 0.0, %v1091
  %v1093 = vpop.f32.mrb[0].mxu0
  %1094 = vmatprep.mubr.f32.mxu0 0.0
  %1095 = vmatmul.mubr.f32.gmra.mrb[0].mxu0 %v973
  %v1096 = vpop.f32.mrb[0].mxu0
  %v1097 = vadd.f32 0.0, %v1096
  %v1098 = vpop.f32.mrb[0].mxu0
  %1099 = vmatprep.mubr.f32.mxu0 0.0
  %1100 = vmatmul.mubr.f32.gmra.mrb[0].mxu0 %v976
  %v1101 = vpop.f32.mrb[0].mxu0
  %v1102 = vadd.f32 0.0, %v1101
  %v1103 = vpop.f32.mrb[0].mxu0
  %1104 = vmatprep.mubr.f32.mxu0 0.0
  %1105 = vmatmul.mubr.f32.gmra.mrb[0].mxu0 %v979
  %v1106 = vpop.f32.mrb[0].mxu0
  %v1107 = vadd.f32 0.0, %v1106
  %v1108 = vpop.f32.mrb[0].mxu0
  %1109 = vmatprep.mubr.f32.mxu0 0.0
  %1110 = vmatmul.mubr.f32.gmra.mrb[0].mxu0 %v982
  %v1111 = vpop.f32.mrb[0].mxu0
  %v1112 = vadd.f32 0.0, %v1111
  %v1113 = vpop.f32.mrb[0].mxu0
  %1114 = vmatprep.mubr.f32.mxu0 0.0
  %1115 = vmatmul.mubr.f32.gmra.mrb[0].mxu0 %v985
  %v1116 = vpop.f32.mrb[0].mxu0
  %v1117 = vadd.f32 0.0, %v1116
  %v1118 = vpop.f32.mrb[0].mxu0
  %1119 = vmatprep.mubr.f32.mxu0 0.0
  %1120 = vmatmul.mubr.f32.gmra.mrb[0].mxu0 %v988
  %v1121 = vpop.f32.mrb[0].mxu0
  %v1122 = vadd.f32 0.0, %v1121
  %v1123 = vpop.f32.mrb[0].mxu0
  %1124 = vmatprep.mubr.f32.mxu0 0.0
  %1125 = vmatmul.mubr.f32.gmra.mrb[0].mxu0 %v991
  %v1126 = vpop.f32.mrb[0].mxu0
  %v1127 = vadd.f32 0.0, %v1126
  %v1128 = vpop.f32.mrb[0].mxu0
  %1129 = vmatprep.mubr.f32.mxu0 0.0
  %1130 = vmatmul.mubr.f32.gmra.mrb[0].mxu0 %v994
  %v1131 = vpop.f32.mrb[0].mxu0
  %v1132 = vadd.f32 0.0, %v1131
  %v1133 = vpop.f32.mrb[0].mxu0
  %1134 = vmatprep.mubr.f32.mxu0 0.0
  %1135 = vmatmul.mubr.f32.gmra.mrb[0].mxu0 %v997
  %v1136 = vpop.f32.mrb[0].mxu0
  %v1137 = vadd.f32 0.0, %v1136
  %v1138 = vpop.f32.mrb[0].mxu0
  %1139 = vmatprep.mubr.f32.mxu0 0.0
  %1140 = vmatmul.mubr.f32.gmra.mrb[0].mxu0 %v1000
  %v1141 = vpop.f32.mrb[0].mxu0
  %v1142 = vadd.f32 0.0, %v1141
  %v1143 = vpop.f32.mrb[0].mxu0
  %1144 = vmatprep.mubr.f32.mxu0 0.0
  %1145 = vmatmul.mubr.f32.gmra.mrb[0].mxu0 %v1003
  %v1146 = vpop.f32.mrb[0].mxu0
  %v1147 = vadd.f32 0.0, %v1146
  %v1148 = vpop.f32.mrb[0].mxu0
  %1149 = vdwg.mxu0
  %vm1150 = vcmask 130048
  %v1152 = vsel %vm1150, %v76, 0
  %1154 = vmatprep.subr.mxu0 0.0
  %1155 = vmatpush1.msra.mxu0 %v16
  %1156 = vmatprep.subr.mxu0 0.0
  %1157 = vmatpush1.msra.mxu0 %v17
  %1158 = vmatprep.subr.mxu0 0.0
  %1159 = vmatpush1.msra.mxu0 0.0
  %1160 = vmatprep.subr.mxu0 0.0
  %1161 = vmatpush1.msra.mxu0 0.0
  %1162 = vmatprep.subr.mxu0 0.0
  %1163 = vmatpush1.msra.mxu0 0.0
  %1164 = vmatprep.subr.mxu0 0.0
  %1165 = vmatpush1.msra.mxu0 0.0
  %1166 = vmatprep.subr.mxu0 0.0
  %1167 = vmatpush1.msra.mxu0 0.0
  %1168 = vmatprep.subr.mxu0 0.0
  %1169 = vmatpush1.msra.mxu0 0.0
  %1170 = vmatprep.subr.mxu0 0.0
  %1171 = vmatpush1.msra.mxu0 0.0
  %1172 = vmatprep.subr.mxu0 0.0
  %1173 = vmatpush1.msra.mxu0 0.0
  %1174 = vmatprep.subr.mxu0 0.0
  %1175 = vmatpush1.msra.mxu0 0.0
  %1176 = vmatprep.subr.mxu0 0.0
  %1177 = vmatpush1.msra.mxu0 0.0
  %1178 = vmatprep.subr.mxu0 0.0
  %1179 = vmatpush1.msra.mxu0 0.0
  %1180 = vmatprep.subr.mxu0 0.0
  %1181 = vmatpush1.msra.mxu0 0.0
  %1182 = vmatprep.subr.mxu0 0.0
  %1183 = vmatpush1.msra.mxu0 0.0
  %1184 = vmatprep.subr.mxu0 0.0
  %1185 = vmatpush1.msra.mxu0 0.0
  %1186 = vmatprep.subr.mxu0 0.0
  %1187 = vmatpush1.msra.mxu0 0.0
  %1188 = vmatprep.subr.mxu0 0.0
  %1189 = vmatpush1.msra.mxu0 0.0
  %1190 = vmatprep.subr.mxu0 0.0
  %1191 = vmatpush1.msra.mxu0 0.0
  %1192 = vmatprep.subr.mxu0 0.0
  %1193 = vmatpush1.msra.mxu0 0.0
  %1194 = vmatprep.subr.mxu0 0.0
  %1195 = vmatpush1.msra.mxu0 0.0
  %1196 = vmatprep.subr.mxu0 0.0
  %1197 = vmatpush1.msra.mxu0 0.0
  %1198 = vmatprep.subr.mxu0 0.0
  %1199 = vmatpush1.msra.mxu0 0.0
  %1200 = vmatprep.subr.mxu0 0.0
  %1201 = vmatpush1.msra.mxu0 0.0
  %1202 = vmatprep.subr.mxu0 0.0
  %1203 = vmatpush1.msra.mxu0 0.0
  %1204 = vmatprep.subr.mxu0 0.0
  %1205 = vmatpush1.msra.mxu0 0.0
  %1206 = vmatprep.subr.mxu0 0.0
  %1207 = vmatpush1.msra.mxu0 0.0
  %1208 = vmatprep.subr.mxu0 0.0
  %1209 = vmatpush1.msra.mxu0 0.0
  %1210 = vmatprep.subr.mxu0 0.0
  %1211 = vmatpush1.msra.mxu0 0.0
  %1212 = vmatprep.subr.mxu0 0.0
  %1213 = vmatpush1.msra.mxu0 0.0
  %1214 = vmatprep.subr.mxu0 0.0
  %1215 = vmatpush1.msra.mxu0 0.0
  %1216 = vmatprep.subr.mxu0 0.0
  %1217 = vmatpush1.msra.mxu0 0.0
  %1218 = vmatprep.mubr.f32.mxu0 0.0
  %1219 = vmatmul.mubr.f32.gmra.mrb[0].mxu0 %v1152
  %v1220 = vpop.f32.mrb[0].mxu0
  %v1221 = vadd.f32 %v20, %v1220
  %v1222 = vpop.f32.mrb[0].mxu0
  %1223 = vdwg.mxu0
  %vm1224 = vcmp.ge.f32.partialorder %v1221, 0.0
  %v1225 = vmul.f32 %v1221, 0.4
  %v1226 = vsel %vm1224, %v1221, %v1225
  %v1228 = vsel %vm1150, %v1226, 0
  %1230 = vmatprep.subr.mxu0 0.0
  %1231 = vmatpush1.msra.mxu0 %v18
  %1232 = vmatprep.subr.mxu0 0.0
  %1233 = vmatpush1.msra.mxu0 %v19
  %1234 = vmatprep.subr.mxu0 0.0
  %1235 = vmatpush1.msra.mxu0 0.0
  %1236 = vmatprep.subr.mxu0 0.0
  %1237 = vmatpush1.msra.mxu0 0.0
  %1238 = vmatprep.subr.mxu0 0.0
  %1239 = vmatpush1.msra.mxu0 0.0
  %1240 = vmatprep.subr.mxu0 0.0
  %1241 = vmatpush1.msra.mxu0 0.0
  %1242 = vmatprep.subr.mxu0 0.0
  %1243 = vmatpush1.msra.mxu0 0.0
  %1244 = vmatprep.subr.mxu0 0.0
  %1245 = vmatpush1.msra.mxu0 0.0
  %1246 = vmatprep.subr.mxu0 0.0
  %1247 = vmatpush1.msra.mxu0 0.0
  %1248 = vmatprep.subr.mxu0 0.0
  %1249 = vmatpush1.msra.mxu0 0.0
  %1250 = vmatprep.subr.mxu0 0.0
  %1251 = vmatpush1.msra.mxu0 0.0
  %1252 = vmatprep.subr.mxu0 0.0
  %1253 = vmatpush1.msra.mxu0 0.0
  %1254 = vmatprep.subr.mxu0 0.0
  %1255 = vmatpush1.msra.mxu0 0.0
  %1256 = vmatprep.subr.mxu0 0.0
  %1257 = vmatpush1.msra.mxu0 0.0
  %1258 = vmatprep.subr.mxu0 0.0
  %1259 = vmatpush1.msra.mxu0 0.0
  %1260 = vmatprep.subr.mxu0 0.0
  %1261 = vmatpush1.msra.mxu0 0.0
  %1262 = vmatprep.subr.mxu0 0.0
  %1263 = vmatpush1.msra.mxu0 0.0
  %1264 = vmatprep.subr.mxu0 0.0
  %1265 = vmatpush1.msra.mxu0 0.0
  %1266 = vmatprep.subr.mxu0 0.0
  %1267 = vmatpush1.msra.mxu0 0.0
  %1268 = vmatprep.subr.mxu0 0.0
  %1269 = vmatpush1.msra.mxu0 0.0
  %1270 = vmatprep.subr.mxu0 0.0
  %1271 = vmatpush1.msra.mxu0 0.0
  %1272 = vmatprep.subr.mxu0 0.0
  %1273 = vmatpush1.msra.mxu0 0.0
  %1274 = vmatprep.subr.mxu0 0.0
  %1275 = vmatpush1.msra.mxu0 0.0
  %1276 = vmatprep.subr.mxu0 0.0
  %1277 = vmatpush1.msra.mxu0 0.0
  %1278 = vmatprep.subr.mxu0 0.0
  %1279 = vmatpush1.msra.mxu0 0.0
  %1280 = vmatprep.subr.mxu0 0.0
  %1281 = vmatpush1.msra.mxu0 0.0
  %1282 = vmatprep.subr.mxu0 0.0
  %1283 = vmatpush1.msra.mxu0 0.0
  %1284 = vmatprep.subr.mxu0 0.0
  %1285 = vmatpush1.msra.mxu0 0.0
  %1286 = vmatprep.subr.mxu0 0.0
  %1287 = vmatpush1.msra.mxu0 0.0
  %1288 = vmatprep.subr.mxu0 0.0
  %1289 = vmatpush1.msra.mxu0 0.0
  %1290 = vmatprep.subr.mxu0 0.0
  %1291 = vmatpush1.msra.mxu0 0.0
  %1292 = vmatprep.subr.mxu0 0.0
  %1293 = vmatpush1.msra.mxu0 0.0
  %1294 = vmatprep.mubr.f32.mxu0 0.0
  %1295 = vmatmul.mubr.f32.gmra.mrb[0].mxu0 %v1228
  %v1296 = vpop.f32.mrb[0].mxu0
  %v1297 = vadd.f32 %v21, %v1296
  %v1298 = vpop.f32.mrb[0].mxu0
  %1299 = vdwg.mxu0
  %vm1300 = vcmp.ge.f32.partialorder %v1297, 0.0
  %v1301 = vmul.f32 %v1297, 0.4
  %v1302 = vsel %vm1300, %v1297, %v1301
  %1304 = vset.pattern.permute.xlu0 25
  %1305 = vperm.xlu0 %1304, %v38
  %v1306 = vpop.permute.xlu0 %1305
  %1309 = vset.pattern.permute.xlu0 25
  %1310 = vperm.xlu0 %1309, %v39
  %v1311 = vpop.permute.xlu0 %1310
  %1314 = vset.pattern.permute.xlu0 25
  %1315 = vperm.xlu0 %1314, %v40
  %v1316 = vpop.permute.xlu0 %1315
  %1319 = vset.pattern.permute.xlu0 25
  %1320 = vperm.xlu0 %1319, %v41
  %v1321 = vpop.permute.xlu0 %1320
  %1324 = vset.pattern.permute.xlu0 25
  %1325 = vperm.xlu0 %1324, %v42
  %v1326 = vpop.permute.xlu0 %1325
  %1329 = vset.pattern.permute.xlu0 25
  %1330 = vperm.xlu0 %1329, %v43
  %v1331 = vpop.permute.xlu0 %1330
  %1334 = vset.pattern.permute.xlu0 25
  %1335 = vperm.xlu0 %1334, %v44
  %v1336 = vpop.permute.xlu0 %1335
  %1339 = vset.pattern.permute.xlu0 25
  %1340 = vperm.xlu0 %1339, %v45
  %v1341 = vpop.permute.xlu0 %1340
  %1344 = vset.pattern.permute.xlu0 25
  %1345 = vperm.xlu0 %1344, %v46
  %v1346 = vpop.permute.xlu0 %1345
  %1349 = vset.pattern.permute.xlu0 25
  %1350 = vperm.xlu0 %1349, %v47
  %v1351 = vpop.permute.xlu0 %1350
  %1354 = vset.pattern.permute.xlu0 25
  %1355 = vperm.xlu0 %1354, %v48
  %v1356 = vpop.permute.xlu0 %1355
  %1359 = vset.pattern.permute.xlu0 25
  %1360 = vperm.xlu0 %1359, %v49
  %v1361 = vpop.permute.xlu0 %1360
  %1364 = vset.pattern.permute.xlu0 25
  %1365 = vperm.xlu0 %1364, %v50
  %v1366 = vpop.permute.xlu0 %1365
  %1369 = vset.pattern.permute.xlu0 25
  %1370 = vperm.xlu0 %1369, %v51
  %v1371 = vpop.permute.xlu0 %1370
  %1374 = vset.pattern.permute.xlu0 25
  %1375 = vperm.xlu0 %1374, %v52
  %v1376 = vpop.permute.xlu0 %1375
  %1379 = vset.pattern.permute.xlu0 25
  %1380 = vperm.xlu0 %1379, %v53
  %v1381 = vpop.permute.xlu0 %1380
  %v1383 = vlaneseq
  %v1384 = vshrl.u32 %v1383, 7
  %v1385 = vsub.s32 0, %v1384
  %v1386 = vrot.slane %v1302, %v1385
  %v1387 = vmul.f32 %v1306, %v1386
  %v1388 = vmul.f32 %v1311, %v1386
  %v1389 = vmul.f32 %v1316, %v1386
  %v1390 = vmul.f32 %v1321, %v1386
  %v1391 = vmul.f32 %v1326, %v1386
  %v1392 = vmul.f32 %v1331, %v1386
  %v1393 = vmul.f32 %v1336, %v1386
  %v1394 = vmul.f32 %v1341, %v1386
  %v1395 = vmul.f32 %v1346, %v1386
  %v1396 = vmul.f32 %v1351, %v1386
  %v1397 = vmul.f32 %v1356, %v1386
  %v1398 = vmul.f32 %v1361, %v1386
  %v1399 = vmul.f32 %v1366, %v1386
  %v1400 = vmul.f32 %v1371, %v1386
  %v1401 = vmul.f32 %v1376, %v1386
  %v1402 = vmul.f32 %v1381, %v1386
  %1403 = vset.pattern.permute.xlu0 24
  %1404 = vperm.xlu0 %1403, %v38
  %v1405 = vpop.permute.xlu0 %1404
  %1407 = vset.pattern.permute.xlu0 24
  %1408 = vperm.xlu0 %1407, %v39
  %v1409 = vpop.permute.xlu0 %1408
  %1411 = vset.pattern.permute.xlu0 24
  %1412 = vperm.xlu0 %1411, %v40
  %v1413 = vpop.permute.xlu0 %1412
  %1415 = vset.pattern.permute.xlu0 24
  %1416 = vperm.xlu0 %1415, %v41
  %v1417 = vpop.permute.xlu0 %1416
  %1419 = vset.pattern.permute.xlu0 24
  %1420 = vperm.xlu0 %1419, %v42
  %v1421 = vpop.permute.xlu0 %1420
  %1423 = vset.pattern.permute.xlu0 24
  %1424 = vperm.xlu0 %1423, %v43
  %v1425 = vpop.permute.xlu0 %1424
  %1427 = vset.pattern.permute.xlu0 24
  %1428 = vperm.xlu0 %1427, %v44
  %v1429 = vpop.permute.xlu0 %1428
  %1431 = vset.pattern.permute.xlu0 24
  %1432 = vperm.xlu0 %1431, %v45
  %v1433 = vpop.permute.xlu0 %1432
  %1435 = vset.pattern.permute.xlu0 24
  %1436 = vperm.xlu0 %1435, %v46
  %v1437 = vpop.permute.xlu0 %1436
  %1439 = vset.pattern.permute.xlu0 24
  %1440 = vperm.xlu0 %1439, %v47
  %v1441 = vpop.permute.xlu0 %1440
  %1443 = vset.pattern.permute.xlu0 24
  %1444 = vperm.xlu0 %1443, %v48
  %v1445 = vpop.permute.xlu0 %1444
  %1447 = vset.pattern.permute.xlu0 24
  %1448 = vperm.xlu0 %1447, %v49
  %v1449 = vpop.permute.xlu0 %1448
  %1451 = vset.pattern.permute.xlu0 24
  %1452 = vperm.xlu0 %1451, %v50
  %v1453 = vpop.permute.xlu0 %1452
  %1455 = vset.pattern.permute.xlu0 24
  %1456 = vperm.xlu0 %1455, %v51
  %v1457 = vpop.permute.xlu0 %1456
  %1459 = vset.pattern.permute.xlu0 24
  %1460 = vperm.xlu0 %1459, %v52
  %v1461 = vpop.permute.xlu0 %1460
  %1463 = vset.pattern.permute.xlu0 24
  %1464 = vperm.xlu0 %1463, %v53
  %v1465 = vpop.permute.xlu0 %1464
  %v1467 = vadd.f32 %v1387, %v1405
  %v1468 = vadd.f32 %v1388, %v1409
  %v1469 = vadd.f32 %v1389, %v1413
  %v1470 = vadd.f32 %v1390, %v1417
  %v1471 = vadd.f32 %v1391, %v1421
  %v1472 = vadd.f32 %v1392, %v1425
  %v1473 = vadd.f32 %v1393, %v1429
  %v1474 = vadd.f32 %v1394, %v1433
  %v1475 = vadd.f32 %v1395, %v1437
  %v1476 = vadd.f32 %v1396, %v1441
  %v1477 = vadd.f32 %v1397, %v1445
  %v1478 = vadd.f32 %v1398, %v1449
  %v1479 = vadd.f32 %v1399, %v1453
  %v1480 = vadd.f32 %v1400, %v1457
  %v1481 = vadd.f32 %v1401, %v1461
  %v1482 = vadd.f32 %v1402, %v1465
  %vm1483 = vcmask 15360
  %v1485 = vsel %vm1483, %v1072, 0
  %v1488 = vsel %vm1483, %v1077, 0
  %v1491 = vsel %vm1483, %v1082, 0
  %v1494 = vsel %vm1483, %v1087, 0
  %v1497 = vsel %vm1483, %v1092, 0
  %v1500 = vsel %vm1483, %v1097, 0
  %v1503 = vsel %vm1483, %v1102, 0
  %v1506 = vsel %vm1483, %v1107, 0
  %v1509 = vsel %vm1483, %v1112, 0
  %v1512 = vsel %vm1483, %v1117, 0
  %v1515 = vsel %vm1483, %v1122, 0
  %v1518 = vsel %vm1483, %v1127, 0
  %v1521 = vsel %vm1483, %v1132, 0
  %v1524 = vsel %vm1483, %v1137, 0
  %v1527 = vsel %vm1483, %v1142, 0
  %v1530 = vsel %vm1483, %v1147, 0
  %vm1532 = vcmask 1041408
  %v1534 = vsel %vm1532, %v74, 0
  %1536 = vmatprep.subr.mxu0 0.0
  %1537 = vmatpush1.msra.mxu0 %v1534
  %1538 = vmatprep.subr.mxu0 0.0
  %1539 = vmatpush1.msra.mxu0 0.0
  %1540 = vmatprep.subr.mxu0 0.0
  %1541 = vmatpush1.msra.mxu0 0.0
  %1542 = vmatprep.subr.mxu0 0.0
  %1543 = vmatpush1.msra.mxu0 0.0
  %1544 = vmatprep.subr.mxu0 0.0
  %1545 = vmatpush1.msra.mxu0 0.0
  %1546 = vmatprep.subr.mxu0 0.0
  %1547 = vmatpush1.msra.mxu0 0.0
  %1548 = vmatprep.subr.mxu0 0.0
  %1549 = vmatpush1.msra.mxu0 0.0
  %1550 = vmatprep.subr.mxu0 0.0
  %1551 = vmatpush1.msra.mxu0 0.0
  %1552 = vmatprep.subr.mxu0 0.0
  %1553 = vmatpush1.msra.mxu0 0.0
  %1554 = vmatprep.subr.mxu0 0.0
  %1555 = vmatpush1.msra.mxu0 0.0
  %1556 = vmatprep.subr.mxu0 0.0
  %1557 = vmatpush1.msra.mxu0 0.0
  %1558 = vmatprep.subr.mxu0 0.0
  %1559 = vmatpush1.msra.mxu0 0.0
  %1560 = vmatprep.subr.mxu0 0.0
  %1561 = vmatpush1.msra.mxu0 0.0
  %1562 = vmatprep.subr.mxu0 0.0
  %1563 = vmatpush1.msra.mxu0 0.0
  %1564 = vmatprep.subr.mxu0 0.0
  %1565 = vmatpush1.msra.mxu0 0.0
  %1566 = vmatprep.subr.mxu0 0.0
  %1567 = vmatpush1.msra.mxu0 0.0
  %1568 = vmatprep.subr.mxu0 0.0
  %1569 = vmatpush1.msra.mxu0 0.0
  %1570 = vmatprep.subr.mxu0 0.0
  %1571 = vmatpush1.msra.mxu0 0.0
  %1572 = vmatprep.subr.mxu0 0.0
  %1573 = vmatpush1.msra.mxu0 0.0
  %1574 = vmatprep.subr.mxu0 0.0
  %1575 = vmatpush1.msra.mxu0 0.0
  %1576 = vmatprep.subr.mxu0 0.0
  %1577 = vmatpush1.msra.mxu0 0.0
  %1578 = vmatprep.subr.mxu0 0.0
  %1579 = vmatpush1.msra.mxu0 0.0
  %1580 = vmatprep.subr.mxu0 0.0
  %1581 = vmatpush1.msra.mxu0 0.0
  %1582 = vmatprep.subr.mxu0 0.0
  %1583 = vmatpush1.msra.mxu0 0.0
  %1584 = vmatprep.subr.mxu0 0.0
  %1585 = vmatpush1.msra.mxu0 0.0
  %1586 = vmatprep.subr.mxu0 0.0
  %1587 = vmatpush1.msra.mxu0 0.0
  %1588 = vmatprep.subr.mxu0 0.0
  %1589 = vmatpush1.msra.mxu0 0.0
  %1590 = vmatprep.subr.mxu0 0.0
  %1591 = vmatpush1.msra.mxu0 0.0
  %1592 = vmatprep.subr.mxu0 0.0
  %1593 = vmatpush1.msra.mxu0 0.0
  %1594 = vmatprep.subr.mxu0 0.0
  %1595 = vmatpush1.msra.mxu0 0.0
  %1596 = vmatprep.subr.mxu0 0.0
  %1597 = vmatpush1.msra.mxu0 0.0
  %1598 = vmatprep.subr.mxu0 0.0
  %1599 = vmatpush1.msra.mxu0 0.0
  %1600 = vmatprep.mubr.f32.mxu0 0.0
  %1601 = vmatmul.mubr.f32.gmra.mrb[0].mxu0 %v1485
  %v1602 = vpop.f32.mrb[0].mxu0
  %v1603 = vadd.f32 0.0, %v1602
  %v1604 = vpop.f32.mrb[0].mxu0
  %1605 = vmatprep.mubr.f32.mxu0 0.0
  %1606 = vmatmul.mubr.f32.gmra.mrb[0].mxu0 %v1488
  %v1607 = vpop.f32.mrb[0].mxu0
  %v1608 = vadd.f32 0.0, %v1607
  %v1609 = vpop.f32.mrb[0].mxu0
  %1610 = vmatprep.mubr.f32.mxu0 0.0
  %1611 = vmatmul.mubr.f32.gmra.mrb[0].mxu0 %v1491
  %v1612 = vpop.f32.mrb[0].mxu0
  %v1613 = vadd.f32 0.0, %v1612
  %v1614 = vpop.f32.mrb[0].mxu0
  %1615 = vmatprep.mubr.f32.mxu0 0.0
  %1616 = vmatmul.mubr.f32.gmra.mrb[0].mxu0 %v1494
  %v1617 = vpop.f32.mrb[0].mxu0
  %v1618 = vadd.f32 0.0, %v1617
  %v1619 = vpop.f32.mrb[0].mxu0
  %1620 = vmatprep.mubr.f32.mxu0 0.0
  %1621 = vmatmul.mubr.f32.gmra.mrb[0].mxu0 %v1497
  %v1622 = vpop.f32.mrb[0].mxu0
  %v1623 = vadd.f32 0.0, %v1622
  %v1624 = vpop.f32.mrb[0].mxu0
  %1625 = vmatprep.mubr.f32.mxu0 0.0
  %1626 = vmatmul.mubr.f32.gmra.mrb[0].mxu0 %v1500
  %v1627 = vpop.f32.mrb[0].mxu0
  %v1628 = vadd.f32 0.0, %v1627
  %v1629 = vpop.f32.mrb[0].mxu0
  %1630 = vmatprep.mubr.f32.mxu0 0.0
  %1631 = vmatmul.mubr.f32.gmra.mrb[0].mxu0 %v1503
  %v1632 = vpop.f32.mrb[0].mxu0
  %v1633 = vadd.f32 0.0, %v1632
  %v1634 = vpop.f32.mrb[0].mxu0
  %1635 = vmatprep.mubr.f32.mxu0 0.0
  %1636 = vmatmul.mubr.f32.gmra.mrb[0].mxu0 %v1506
  %v1637 = vpop.f32.mrb[0].mxu0
  %v1638 = vadd.f32 0.0, %v1637
  %v1639 = vpop.f32.mrb[0].mxu0
  %1640 = vmatprep.mubr.f32.mxu0 0.0
  %1641 = vmatmul.mubr.f32.gmra.mrb[0].mxu0 %v1509
  %v1642 = vpop.f32.mrb[0].mxu0
  %v1643 = vadd.f32 0.0, %v1642
  %v1644 = vpop.f32.mrb[0].mxu0
  %1645 = vmatprep.mubr.f32.mxu0 0.0
  %1646 = vmatmul.mubr.f32.gmra.mrb[0].mxu0 %v1512
  %v1647 = vpop.f32.mrb[0].mxu0
  %v1648 = vadd.f32 0.0, %v1647
  %v1649 = vpop.f32.mrb[0].mxu0
  %1650 = vmatprep.mubr.f32.mxu0 0.0
  %1651 = vmatmul.mubr.f32.gmra.mrb[0].mxu0 %v1515
  %v1652 = vpop.f32.mrb[0].mxu0
  %v1653 = vadd.f32 0.0, %v1652
  %v1654 = vpop.f32.mrb[0].mxu0
  %1655 = vmatprep.mubr.f32.mxu0 0.0
  %1656 = vmatmul.mubr.f32.gmra.mrb[0].mxu0 %v1518
  %v1657 = vpop.f32.mrb[0].mxu0
  %v1658 = vadd.f32 0.0, %v1657
  %v1659 = vpop.f32.mrb[0].mxu0
  %1660 = vmatprep.mubr.f32.mxu0 0.0
  %1661 = vmatmul.mubr.f32.gmra.mrb[0].mxu0 %v1521
  %v1662 = vpop.f32.mrb[0].mxu0
  %v1663 = vadd.f32 0.0, %v1662
  %v1664 = vpop.f32.mrb[0].mxu0
  %1665 = vmatprep.mubr.f32.mxu0 0.0
  %1666 = vmatmul.mubr.f32.gmra.mrb[0].mxu0 %v1524
  %v1667 = vpop.f32.mrb[0].mxu0
  %v1668 = vadd.f32 0.0, %v1667
  %v1669 = vpop.f32.mrb[0].mxu0
  %1670 = vmatprep.mubr.f32.mxu0 0.0
  %1671 = vmatmul.mubr.f32.gmra.mrb[0].mxu0 %v1527
  %v1672 = vpop.f32.mrb[0].mxu0
  %v1673 = vadd.f32 0.0, %v1672
  %v1674 = vpop.f32.mrb[0].mxu0
  %1675 = vmatprep.mubr.f32.mxu0 0.0
  %1676 = vmatmul.mubr.f32.gmra.mrb[0].mxu0 %v1530
  %v1677 = vpop.f32.mrb[0].mxu0
  %v1678 = vadd.f32 0.0, %v1677
  %v1679 = vpop.f32.mrb[0].mxu0
  %1680 = vdwg.mxu0
  %v1681 = vadd.f32 %v1467, %v1603
  %v1682 = vadd.f32 %v1468, %v1608
  %v1683 = vadd.f32 %v1469, %v1613
  %v1684 = vadd.f32 %v1470, %v1618
  %v1685 = vadd.f32 %v1471, %v1623
  %v1686 = vadd.f32 %v1472, %v1628
  %v1687 = vadd.f32 %v1473, %v1633
  %v1688 = vadd.f32 %v1474, %v1638
  %v1689 = vadd.f32 %v1475, %v1643
  %v1690 = vadd.f32 %v1476, %v1648
  %v1691 = vadd.f32 %v1477, %v1653
  %v1692 = vadd.f32 %v1478, %v1658
  %v1693 = vadd.f32 %v1479, %v1663
  %v1694 = vadd.f32 %v1480, %v1668
  %v1695 = vadd.f32 %v1481, %v1673
  %v1696 = vadd.f32 %v1482, %v1678
  %v1697 = vld [vmem:[%s1 + $0xd0] sm:$0xff]
  %v1698 = vld [vmem:[%s1 + $0xd8] sm:$0xff]
  %v1699 = vld [vmem:[%s1 + $0x150] sm:$0xff]
  %v1700 = vld [vmem:[%s1 + $0x158] sm:$0xff]
  %vm1701 = vcmask 326656
  %v1703 = vsel %vm1701, %v95, 0
  %1705 = vmatprep.subr.mxu0 0.0
  %1706 = vmatpush1.msra.mxu0 %v54
  %1707 = vmatprep.subr.mxu0 0.0
  %1708 = vmatpush1.msra.mxu0 %v55
  %1709 = vmatprep.subr.mxu0 0.0
  %1710 = vmatpush1.msra.mxu0 %v56
  %1711 = vmatprep.subr.mxu0 0.0
  %1712 = vmatpush1.msra.mxu0 %v57
  %1713 = vmatprep.subr.mxu0 0.0
  %1714 = vmatpush1.msra.mxu0 %v58
  %1715 = vmatprep.subr.mxu0 0.0
  %1716 = vmatpush1.msra.mxu0 0.0
  %1717 = vmatprep.subr.mxu0 0.0
  %1718 = vmatpush1.msra.mxu0 0.0
  %1719 = vmatprep.subr.mxu0 0.0
  %1720 = vmatpush1.msra.mxu0 0.0
  %1721 = vmatprep.subr.mxu0 0.0
  %1722 = vmatpush1.msra.mxu0 0.0
  %1723 = vmatprep.subr.mxu0 0.0
  %1724 = vmatpush1.msra.mxu0 0.0
  %1725 = vmatprep.subr.mxu0 0.0
  %1726 = vmatpush1.msra.mxu0 0.0
  %1727 = vmatprep.subr.mxu0 0.0
  %1728 = vmatpush1.msra.mxu0 0.0
  %1729 = vmatprep.subr.mxu0 0.0
  %1730 = vmatpush1.msra.mxu0 0.0
  %1731 = vmatprep.subr.mxu0 0.0
  %1732 = vmatpush1.msra.mxu0 0.0
  %1733 = vmatprep.subr.mxu0 0.0
  %1734 = vmatpush1.msra.mxu0 0.0
  %1735 = vmatprep.subr.mxu0 0.0
  %1736 = vmatpush1.msra.mxu0 0.0
  %1737 = vmatprep.subr.mxu0 0.0
  %1738 = vmatpush1.msra.mxu0 0.0
  %1739 = vmatprep.subr.mxu0 0.0
  %1740 = vmatpush1.msra.mxu0 0.0
  %1741 = vmatprep.subr.mxu0 0.0
  %1742 = vmatpush1.msra.mxu0 0.0
  %1743 = vmatprep.subr.mxu0 0.0
  %1744 = vmatpush1.msra.mxu0 0.0
  %1745 = vmatprep.subr.mxu0 0.0
  %1746 = vmatpush1.msra.mxu0 0.0
  %1747 = vmatprep.subr.mxu0 0.0
  %1748 = vmatpush1.msra.mxu0 0.0
  %1749 = vmatprep.subr.mxu0 0.0
  %1750 = vmatpush1.msra.mxu0 0.0
  %1751 = vmatprep.subr.mxu0 0.0
  %1752 = vmatpush1.msra.mxu0 0.0
  %1753 = vmatprep.subr.mxu0 0.0
  %1754 = vmatpush1.msra.mxu0 0.0
  %1755 = vmatprep.subr.mxu0 0.0
  %1756 = vmatpush1.msra.mxu0 0.0
  %1757 = vmatprep.subr.mxu0 0.0
  %1758 = vmatpush1.msra.mxu0 0.0
  %1759 = vmatprep.subr.mxu0 0.0
  %1760 = vmatpush1.msra.mxu0 0.0
  %1761 = vmatprep.subr.mxu0 0.0
  %1762 = vmatpush1.msra.mxu0 0.0
  %1763 = vmatprep.subr.mxu0 0.0
  %1764 = vmatpush1.msra.mxu0 0.0
  %1765 = vmatprep.subr.mxu0 0.0
  %1766 = vmatpush1.msra.mxu0 0.0
  %1767 = vmatprep.subr.mxu0 0.0
  %1768 = vmatpush1.msra.mxu0 0.0
  %1769 = vmatprep.mubr.f32.mxu0 0.0
  %1770 = vmatmul.mubr.f32.gmra.mrb[0].mxu0 %v1703
  %v1771 = vpop.f32.mrb[0].mxu0
  %v1772 = vadd.f32 0.0, %v1771
  %v1773 = vpop.f32.mrb[0].mxu0
  %1774 = vdwg.mxu0
  %1775 = vmatprep.subr.mxu0 0.0
  %1776 = vmatpush1.msra.mxu0 %v59
  %1777 = vmatprep.subr.mxu0 0.0
  %1778 = vmatpush1.msra.mxu0 %v60
  %1779 = vmatprep.subr.mxu0 0.0
  %1780 = vmatpush1.msra.mxu0 %v61
  %1781 = vmatprep.subr.mxu0 0.0
  %1782 = vmatpush1.msra.mxu0 %v62
  %1783 = vmatprep.subr.mxu0 0.0
  %1784 = vmatpush1.msra.mxu0 %v63
  %1785 = vmatprep.subr.mxu0 0.0
  %1786 = vmatpush1.msra.mxu0 0.0
  %1787 = vmatprep.subr.mxu0 0.0
  %1788 = vmatpush1.msra.mxu0 0.0
  %1789 = vmatprep.subr.mxu0 0.0
  %1790 = vmatpush1.msra.mxu0 0.0
  %1791 = vmatprep.subr.mxu0 0.0
  %1792 = vmatpush1.msra.mxu0 0.0
  %1793 = vmatprep.subr.mxu0 0.0
  %1794 = vmatpush1.msra.mxu0 0.0
  %1795 = vmatprep.subr.mxu0 0.0
  %1796 = vmatpush1.msra.mxu0 0.0
  %1797 = vmatprep.subr.mxu0 0.0
  %1798 = vmatpush1.msra.mxu0 0.0
  %1799 = vmatprep.subr.mxu0 0.0
  %1800 = vmatpush1.msra.mxu0 0.0
  %1801 = vmatprep.subr.mxu0 0.0
  %1802 = vmatpush1.msra.mxu0 0.0
  %1803 = vmatprep.subr.mxu0 0.0
  %1804 = vmatpush1.msra.mxu0 0.0
  %1805 = vmatprep.subr.mxu0 0.0
  %1806 = vmatpush1.msra.mxu0 0.0
  %1807 = vmatprep.subr.mxu0 0.0
  %1808 = vmatpush1.msra.mxu0 0.0
  %1809 = vmatprep.subr.mxu0 0.0
  %1810 = vmatpush1.msra.mxu0 0.0
  %1811 = vmatprep.subr.mxu0 0.0
  %1812 = vmatpush1.msra.mxu0 0.0
  %1813 = vmatprep.subr.mxu0 0.0
  %1814 = vmatpush1.msra.mxu0 0.0
  %1815 = vmatprep.subr.mxu0 0.0
  %1816 = vmatpush1.msra.mxu0 0.0
  %1817 = vmatprep.subr.mxu0 0.0
  %1818 = vmatpush1.msra.mxu0 0.0
  %1819 = vmatprep.subr.mxu0 0.0
  %1820 = vmatpush1.msra.mxu0 0.0
  %1821 = vmatprep.subr.mxu0 0.0
  %1822 = vmatpush1.msra.mxu0 0.0
  %1823 = vmatprep.subr.mxu0 0.0
  %1824 = vmatpush1.msra.mxu0 0.0
  %1825 = vmatprep.subr.mxu0 0.0
  %1826 = vmatpush1.msra.mxu0 0.0
  %1827 = vmatprep.subr.mxu0 0.0
  %1828 = vmatpush1.msra.mxu0 0.0
  %1829 = vmatprep.subr.mxu0 0.0
  %1830 = vmatpush1.msra.mxu0 0.0
  %1831 = vmatprep.subr.mxu0 0.0
  %1832 = vmatpush1.msra.mxu0 0.0
  %1833 = vmatprep.subr.mxu0 0.0
  %1834 = vmatpush1.msra.mxu0 0.0
  %1835 = vmatprep.subr.mxu0 0.0
  %1836 = vmatpush1.msra.mxu0 0.0
  %1837 = vmatprep.subr.mxu0 0.0
  %1838 = vmatpush1.msra.mxu0 0.0
  %1839 = vmatprep.mubr.f32.mxu0 0.0
  %1840 = vmatmul.mubr.f32.gmra.mrb[0].mxu0 %v1703
  %v1841 = vpop.f32.mrb[0].mxu0
  %v1842 = vadd.f32 0.0, %v1841
  %v1843 = vpop.f32.mrb[0].mxu0
  %1844 = vdwg.mxu0
  %vm1845 = vcmask 195584
  %v1847 = vsel %vm1845, %v1697, 0
  %v1850 = vsel %vm1845, %v1698, 0
  %1852 = vmatprep.subr.mxu0 0.0
  %1853 = vmatpush1.msra.mxu0 %v1772
  %1854 = vmatprep.subr.mxu0 0.0
  %1855 = vmatpush1.msra.mxu0 %v95
  %1856 = vmatprep.subr.mxu0 0.0
  %1857 = vmatpush1.msra.mxu0 %v1842
  %1858 = vmatprep.subr.mxu0 0.0
  %1859 = vmatpush1.msra.mxu0 0.0
  %1860 = vmatprep.subr.mxu0 0.0
  %1861 = vmatpush1.msra.mxu0 0.0
  %1862 = vmatprep.subr.mxu0 0.0
  %1863 = vmatpush1.msra.mxu0 0.0
  %1864 = vmatprep.subr.mxu0 0.0
  %1865 = vmatpush1.msra.mxu0 0.0
  %1866 = vmatprep.subr.mxu0 0.0
  %1867 = vmatpush1.msra.mxu0 0.0
  %1868 = vmatprep.subr.mxu0 0.0
  %1869 = vmatpush1.msra.mxu0 0.0
  %1870 = vmatprep.subr.mxu0 0.0
  %1871 = vmatpush1.msra.mxu0 0.0
  %1872 = vmatprep.subr.mxu0 0.0
  %1873 = vmatpush1.msra.mxu0 0.0
  %1874 = vmatprep.subr.mxu0 0.0
  %1875 = vmatpush1.msra.mxu0 0.0
  %1876 = vmatprep.subr.mxu0 0.0
  %1877 = vmatpush1.msra.mxu0 0.0
  %1878 = vmatprep.subr.mxu0 0.0
  %1879 = vmatpush1.msra.mxu0 0.0
  %1880 = vmatprep.subr.mxu0 0.0
  %1881 = vmatpush1.msra.mxu0 0.0
  %1882 = vmatprep.subr.mxu0 0.0
  %1883 = vmatpush1.msra.mxu0 0.0
  %1884 = vmatprep.subr.mxu0 0.0
  %1885 = vmatpush1.msra.mxu0 0.0
  %1886 = vmatprep.subr.mxu0 0.0
  %1887 = vmatpush1.msra.mxu0 0.0
  %1888 = vmatprep.subr.mxu0 0.0
  %1889 = vmatpush1.msra.mxu0 0.0
  %1890 = vmatprep.subr.mxu0 0.0
  %1891 = vmatpush1.msra.mxu0 0.0
  %1892 = vmatprep.subr.mxu0 0.0
  %1893 = vmatpush1.msra.mxu0 0.0
  %1894 = vmatprep.subr.mxu0 0.0
  %1895 = vmatpush1.msra.mxu0 0.0
  %1896 = vmatprep.subr.mxu0 0.0
  %1897 = vmatpush1.msra.mxu0 0.0
  %1898 = vmatprep.subr.mxu0 0.0
  %1899 = vmatpush1.msra.mxu0 0.0
  %1900 = vmatprep.subr.mxu0 0.0
  %1901 = vmatpush1.msra.mxu0 0.0
  %1902 = vmatprep.subr.mxu0 0.0
  %1903 = vmatpush1.msra.mxu0 0.0
  %1904 = vmatprep.subr.mxu0 0.0
  %1905 = vmatpush1.msra.mxu0 0.0
  %1906 = vmatprep.subr.mxu0 0.0
  %1907 = vmatpush1.msra.mxu0 0.0
  %1908 = vmatprep.subr.mxu0 0.0
  %1909 = vmatpush1.msra.mxu0 0.0
  %1910 = vmatprep.subr.mxu0 0.0
  %1911 = vmatpush1.msra.mxu0 0.0
  %1912 = vmatprep.subr.mxu0 0.0
  %1913 = vmatpush1.msra.mxu0 0.0
  %1914 = vmatprep.subr.mxu0 0.0
  %1915 = vmatpush1.msra.mxu0 0.0
  %1916 = vmatprep.mubr.f32.mxu0 0.0
  %1917 = vmatmul.mubr.f32.gmra.mrb[0].mxu0 %v1847
  %v1918 = vpop.f32.mrb[0].mxu0
  %v1919 = vadd.f32 %v1681, %v1918
  %v1920 = vpop.f32.mrb[0].mxu0
  %1921 = vmatprep.mubr.f32.mxu0 0.0
  %1922 = vmatmul.mubr.f32.gmra.mrb[0].mxu0 %v1850
  %v1923 = vpop.f32.mrb[0].mxu0
  %v1924 = vadd.f32 %v1682, %v1923
  %v1925 = vpop.f32.mrb[0].mxu0
  %1926 = vdwg.mxu0
  %v1927 = vxor.u32 %v1919, 2147483648
  %v1928 = vmul.f32 %v1927, 1.442695
  %v1929 = vpow.pop %v1928
  %v1930 = vadd.f32 %v1929, 1.0
  %v1931 = vrcp.pop %v1930
  %v1932 = vmul.f32 1.0, %v1931
  %v1933 = vtanh.pop %v1924
  %v1934 = vmul.f32 %v1932, %v1933
  %1936 = vset.pattern.permute.xlu0 8
  %1937 = vperm.xlu0 %1936, %v1699
  %v1938 = vpop.permute.xlu0 %1937
  %1941 = vset.pattern.permute.xlu0 8
  %1942 = vperm.xlu0 %1941, %v1700
  %v1943 = vpop.permute.xlu0 %1942
  %vm1945 = vcmask 64512
  %v1946 = vsel %vm1945, %v1699, 0
  %v1948 = vsel %vm1945, %v1700, 0
  %1950 = vmatprep.subr.mxu0 0.0
  %1951 = vmatpush1.msra.mxu0 %v1934
  %1952 = vmatprep.subr.mxu0 0.0
  %1953 = vmatpush1.msra.mxu0 0.0
  %1954 = vmatprep.subr.mxu0 0.0
  %1955 = vmatpush1.msra.mxu0 0.0
  %1956 = vmatprep.subr.mxu0 0.0
  %1957 = vmatpush1.msra.mxu0 0.0
  %1958 = vmatprep.subr.mxu0 0.0
  %1959 = vmatpush1.msra.mxu0 0.0
  %1960 = vmatprep.subr.mxu0 0.0
  %1961 = vmatpush1.msra.mxu0 0.0
  %1962 = vmatprep.subr.mxu0 0.0
  %1963 = vmatpush1.msra.mxu0 0.0
  %1964 = vmatprep.subr.mxu0 0.0
  %1965 = vmatpush1.msra.mxu0 0.0
  %1966 = vmatprep.subr.mxu0 0.0
  %1967 = vmatpush1.msra.mxu0 0.0
  %1968 = vmatprep.subr.mxu0 0.0
  %1969 = vmatpush1.msra.mxu0 0.0
  %1970 = vmatprep.subr.mxu0 0.0
  %1971 = vmatpush1.msra.mxu0 0.0
  %1972 = vmatprep.subr.mxu0 0.0
  %1973 = vmatpush1.msra.mxu0 0.0
  %1974 = vmatprep.subr.mxu0 0.0
  %1975 = vmatpush1.msra.mxu0 0.0
  %1976 = vmatprep.subr.mxu0 0.0
  %1977 = vmatpush1.msra.mxu0 0.0
  %1978 = vmatprep.subr.mxu0 0.0
  %1979 = vmatpush1.msra.mxu0 0.0
  %1980 = vmatprep.subr.mxu0 0.0
  %1981 = vmatpush1.msra.mxu0 0.0
  %1982 = vmatprep.subr.mxu0 0.0
  %1983 = vmatpush1.msra.mxu0 0.0
  %1984 = vmatprep.subr.mxu0 0.0
  %1985 = vmatpush1.msra.mxu0 0.0
  %1986 = vmatprep.subr.mxu0 0.0
  %1987 = vmatpush1.msra.mxu0 0.0
  %1988 = vmatprep.subr.mxu0 0.0
  %1989 = vmatpush1.msra.mxu0 0.0
  %1990 = vmatprep.subr.mxu0 0.0
  %1991 = vmatpush1.msra.mxu0 0.0
  %1992 = vmatprep.subr.mxu0 0.0
  %1993 = vmatpush1.msra.mxu0 0.0
  %1994 = vmatprep.subr.mxu0 0.0
  %1995 = vmatpush1.msra.mxu0 0.0
  %1996 = vmatprep.subr.mxu0 0.0
  %1997 = vmatpush1.msra.mxu0 0.0
  %1998 = vmatprep.subr.mxu0 0.0
  %1999 = vmatpush1.msra.mxu0 0.0
  %2000 = vmatprep.subr.mxu0 0.0
  %2001 = vmatpush1.msra.mxu0 0.0
  %2002 = vmatprep.subr.mxu0 0.0
  %2003 = vmatpush1.msra.mxu0 0.0
  %2004 = vmatprep.subr.mxu0 0.0
  %2005 = vmatpush1.msra.mxu0 0.0
  %2006 = vmatprep.subr.mxu0 0.0
  %2007 = vmatpush1.msra.mxu0 0.0
  %2008 = vmatprep.subr.mxu0 0.0
  %2009 = vmatpush1.msra.mxu0 0.0
  %2010 = vmatprep.subr.mxu0 0.0
  %2011 = vmatpush1.msra.mxu0 0.0
  %2012 = vmatprep.subr.mxu0 0.0
  %2013 = vmatpush1.msra.mxu0 0.0
  %2014 = vmatprep.mubr.f32.mxu0 0.0
  %2015 = vmatmul.mubr.f32.gmra.mrb[0].mxu0 %v1946
  %v2016 = vpop.f32.mrb[0].mxu0
  %v2017 = vadd.f32 %v1938, %v2016
  %v2018 = vpop.f32.mrb[0].mxu0
  %2019 = vmatprep.mubr.f32.mxu0 0.0
  %2020 = vmatmul.mubr.f32.gmra.mrb[0].mxu0 %v1948
  %v2021 = vpop.f32.mrb[0].mxu0
  %v2022 = vadd.f32 %v1943, %v2021
  %v2023 = vpop.f32.mrb[0].mxu0
  %2024 = vdwg.mxu0
  %vm2025 = vcmp.ge.f32.partialorder %v2017, 0.0
  %vm2026 = vcmp.ge.f32.partialorder %v2022, 0.0
  %v2027 = vmul.f32 %v2017, 0.4
  %v2028 = vmul.f32 %v2022, 0.4
  %v2029 = vsel %vm2025, %v2017, %v2027
  %v2030 = vsel %vm2026, %v2022, %v2028
  %v2031 = vadd.f32 %v95, %v2029
  %v2032 = vmul.f32 %v2031, 0.70710677
  %v2033 = vadd.f32 %v2030, 0.0
  %v2034 = vld [vmem:[%s1 + $0xe0] sm:$0xff]
  %v2035 = vld [vmem:[%s1 + $0xe8] sm:$0xff]
  %v2036 = vld [vmem:[%s1 + $0x160] sm:$0xff]
  %v2037 = vld [vmem:[%s1 + $0x168] sm:$0xff]
  %v2039 = vsel %vm1701, %v2032, 0
  %2041 = vmatprep.subr.mxu0 0.0
  %2042 = vmatpush1.msra.mxu0 %v64
  %2043 = vmatprep.subr.mxu0 0.0
  %2044 = vmatpush1.msra.mxu0 %v65
  %2045 = vmatprep.subr.mxu0 0.0
  %2046 = vmatpush1.msra.mxu0 %v66
  %2047 = vmatprep.subr.mxu0 0.0
  %2048 = vmatpush1.msra.mxu0 %v67
  %2049 = vmatprep.subr.mxu0 0.0
  %2050 = vmatpush1.msra.mxu0 %v68
  %2051 = vmatprep.subr.mxu0 0.0
  %2052 = vmatpush1.msra.mxu0 0.0
  %2053 = vmatprep.subr.mxu0 0.0
  %2054 = vmatpush1.msra.mxu0 0.0
  %2055 = vmatprep.subr.mxu0 0.0
  %2056 = vmatpush1.msra.mxu0 0.0
  %2057 = vmatprep.subr.mxu0 0.0
  %2058 = vmatpush1.msra.mxu0 0.0
  %2059 = vmatprep.subr.mxu0 0.0
  %2060 = vmatpush1.msra.mxu0 0.0
  %2061 = vmatprep.subr.mxu0 0.0
  %2062 = vmatpush1.msra.mxu0 0.0
  %2063 = vmatprep.subr.mxu0 0.0
  %2064 = vmatpush1.msra.mxu0 0.0
  %2065 = vmatprep.subr.mxu0 0.0
  %2066 = vmatpush1.msra.mxu0 0.0
  %2067 = vmatprep.subr.mxu0 0.0
  %2068 = vmatpush1.msra.mxu0 0.0
  %2069 = vmatprep.subr.mxu0 0.0
  %2070 = vmatpush1.msra.mxu0 0.0
  %2071 = vmatprep.subr.mxu0 0.0
  %2072 = vmatpush1.msra.mxu0 0.0
  %2073 = vmatprep.subr.mxu0 0.0
  %2074 = vmatpush1.msra.mxu0 0.0
  %2075 = vmatprep.subr.mxu0 0.0
  %2076 = vmatpush1.msra.mxu0 0.0
  %2077 = vmatprep.subr.mxu0 0.0
  %2078 = vmatpush1.msra.mxu0 0.0
  %2079 = vmatprep.subr.mxu0 0.0
  %2080 = vmatpush1.msra.mxu0 0.0
  %2081 = vmatprep.subr.mxu0 0.0
  %2082 = vmatpush1.msra.mxu0 0.0
  %2083 = vmatprep.subr.mxu0 0.0
  %2084 = vmatpush1.msra.mxu0 0.0
  %2085 = vmatprep.subr.mxu0 0.0
  %2086 = vmatpush1.msra.mxu0 0.0
  %2087 = vmatprep.subr.mxu0 0.0
  %2088 = vmatpush1.msra.mxu0 0.0
  %2089 = vmatprep.subr.mxu0 0.0
  %2090 = vmatpush1.msra.mxu0 0.0
  %2091 = vmatprep.subr.mxu0 0.0
  %2092 = vmatpush1.msra.mxu0 0.0
  %2093 = vmatprep.subr.mxu0 0.0
  %2094 = vmatpush1.msra.mxu0 0.0
  %2095 = vmatprep.subr.mxu0 0.0
  %2096 = vmatpush1.msra.mxu0 0.0
  %2097 = vmatprep.subr.mxu0 0.0
  %2098 = vmatpush1.msra.mxu0 0.0
  %2099 = vmatprep.subr.mxu0 0.0
  %2100 = vmatpush1.msra.mxu0 0.0
  %2101 = vmatprep.subr.mxu0 0.0
  %2102 = vmatpush1.msra.mxu0 0.0
  %2103 = vmatprep.subr.mxu0 0.0
  %2104 = vmatpush1.msra.mxu0 0.0
  %2105 = vmatprep.mubr.f32.mxu0 0.0
  %2106 = vmatmul.mubr.f32.gmra.mrb[0].mxu0 %v2039
  %v2107 = vpop.f32.mrb[0].mxu0
  %v2108 = vadd.f32 0.0, %v2107
  %v2109 = vpop.f32.mrb[0].mxu0
  %2110 = vdwg.mxu0
  %2111 = vmatprep.subr.mxu0 0.0
  %2112 = vmatpush1.msra.mxu0 %v69
  %2113 = vmatprep.subr.mxu0 0.0
  %2114 = vmatpush1.msra.mxu0 %v70
  %2115 = vmatprep.subr.mxu0 0.0
  %2116 = vmatpush1.msra.mxu0 %v71
  %2117 = vmatprep.subr.mxu0 0.0
  %2118 = vmatpush1.msra.mxu0 %v72
  %2119 = vmatprep.subr.mxu0 0.0
  %2120 = vmatpush1.msra.mxu0 %v73
  %2121 = vmatprep.subr.mxu0 0.0
  %2122 = vmatpush1.msra.mxu0 0.0
  %2123 = vmatprep.subr.mxu0 0.0
  %2124 = vmatpush1.msra.mxu0 0.0
  %2125 = vmatprep.subr.mxu0 0.0
  %2126 = vmatpush1.msra.mxu0 0.0
  %2127 = vmatprep.subr.mxu0 0.0
  %2128 = vmatpush1.msra.mxu0 0.0
  %2129 = vmatprep.subr.mxu0 0.0
  %2130 = vmatpush1.msra.mxu0 0.0
  %2131 = vmatprep.subr.mxu0 0.0
  %2132 = vmatpush1.msra.mxu0 0.0
  %2133 = vmatprep.subr.mxu0 0.0
  %2134 = vmatpush1.msra.mxu0 0.0
  %2135 = vmatprep.subr.mxu0 0.0
  %2136 = vmatpush1.msra.mxu0 0.0
  %2137 = vmatprep.subr.mxu0 0.0
  %2138 = vmatpush1.msra.mxu0 0.0
  %2139 = vmatprep.subr.mxu0 0.0
  %2140 = vmatpush1.msra.mxu0 0.0
  %2141 = vmatprep.subr.mxu0 0.0
  %2142 = vmatpush1.msra.mxu0 0.0
  %2143 = vmatprep.subr.mxu0 0.0
  %2144 = vmatpush1.msra.mxu0 0.0
  %2145 = vmatprep.subr.mxu0 0.0
  %2146 = vmatpush1.msra.mxu0 0.0
  %2147 = vmatprep.subr.mxu0 0.0
  %2148 = vmatpush1.msra.mxu0 0.0
  %2149 = vmatprep.subr.mxu0 0.0
  %2150 = vmatpush1.msra.mxu0 0.0
  %2151 = vmatprep.subr.mxu0 0.0
  %2152 = vmatpush1.msra.mxu0 0.0
  %2153 = vmatprep.subr.mxu0 0.0
  %2154 = vmatpush1.msra.mxu0 0.0
  %2155 = vmatprep.subr.mxu0 0.0
  %2156 = vmatpush1.msra.mxu0 0.0
  %2157 = vmatprep.subr.mxu0 0.0
  %2158 = vmatpush1.msra.mxu0 0.0
  %2159 = vmatprep.subr.mxu0 0.0
  %2160 = vmatpush1.msra.mxu0 0.0
  %2161 = vmatprep.subr.mxu0 0.0
  %2162 = vmatpush1.msra.mxu0 0.0
  %2163 = vmatprep.subr.mxu0 0.0
  %2164 = vmatpush1.msra.mxu0 0.0
  %2165 = vmatprep.subr.mxu0 0.0
  %2166 = vmatpush1.msra.mxu0 0.0
  %2167 = vmatprep.subr.mxu0 0.0
  %2168 = vmatpush1.msra.mxu0 0.0
  %2169 = vmatprep.subr.mxu0 0.0
  %2170 = vmatpush1.msra.mxu0 0.0
  %2171 = vmatprep.subr.mxu0 0.0
  %2172 = vmatpush1.msra.mxu0 0.0
  %2173 = vmatprep.subr.mxu0 0.0
  %2174 = vmatpush1.msra.mxu0 0.0
  %2175 = vmatprep.mubr.f32.mxu0 0.0
  %2176 = vmatmul.mubr.f32.gmra.mrb[0].mxu0 %v2039
  %v2177 = vpop.f32.mrb[0].mxu0
  %v2178 = vadd.f32 0.0, %v2177
  %v2179 = vpop.f32.mrb[0].mxu0
  %2180 = vdwg.mxu0
  %v2182 = vsel %vm1845, %v2034, 0
  %v2185 = vsel %vm1845, %v2035, 0
  %2187 = vmatprep.subr.mxu0 0.0
  %2188 = vmatpush1.msra.mxu0 %v2108
  %2189 = vmatprep.subr.mxu0 0.0
  %2190 = vmatpush1.msra.mxu0 %v2032
  %2191 = vmatprep.subr.mxu0 0.0
  %2192 = vmatpush1.msra.mxu0 %v2178
  %2193 = vmatprep.subr.mxu0 0.0
  %2194 = vmatpush1.msra.mxu0 0.0
  %2195 = vmatprep.subr.mxu0 0.0
  %2196 = vmatpush1.msra.mxu0 0.0
  %2197 = vmatprep.subr.mxu0 0.0
  %2198 = vmatpush1.msra.mxu0 0.0
  %2199 = vmatprep.subr.mxu0 0.0
  %2200 = vmatpush1.msra.mxu0 0.0
  %2201 = vmatprep.subr.mxu0 0.0
  %2202 = vmatpush1.msra.mxu0 0.0
  %2203 = vmatprep.subr.mxu0 0.0
  %2204 = vmatpush1.msra.mxu0 0.0
  %2205 = vmatprep.subr.mxu0 0.0
  %2206 = vmatpush1.msra.mxu0 0.0
  %2207 = vmatprep.subr.mxu0 0.0
  %2208 = vmatpush1.msra.mxu0 0.0
  %2209 = vmatprep.subr.mxu0 0.0
  %2210 = vmatpush1.msra.mxu0 0.0
  %2211 = vmatprep.subr.mxu0 0.0
  %2212 = vmatpush1.msra.mxu0 0.0
  %2213 = vmatprep.subr.mxu0 0.0
  %2214 = vmatpush1.msra.mxu0 0.0
  %2215 = vmatprep.subr.mxu0 0.0
  %2216 = vmatpush1.msra.mxu0 0.0
  %2217 = vmatprep.subr.mxu0 0.0
  %2218 = vmatpush1.msra.mxu0 0.0
  %2219 = vmatprep.subr.mxu0 0.0
  %2220 = vmatpush1.msra.mxu0 0.0
  %2221 = vmatprep.subr.mxu0 0.0
  %2222 = vmatpush1.msra.mxu0 0.0
  %2223 = vmatprep.subr.mxu0 0.0
  %2224 = vmatpush1.msra.mxu0 0.0
  %2225 = vmatprep.subr.mxu0 0.0
  %2226 = vmatpush1.msra.mxu0 0.0
  %2227 = vmatprep.subr.mxu0 0.0
  %2228 = vmatpush1.msra.mxu0 0.0
  %2229 = vmatprep.subr.mxu0 0.0
  %2230 = vmatpush1.msra.mxu0 0.0
  %2231 = vmatprep.subr.mxu0 0.0
  %2232 = vmatpush1.msra.mxu0 0.0
  %2233 = vmatprep.subr.mxu0 0.0
  %2234 = vmatpush1.msra.mxu0 0.0
  %2235 = vmatprep.subr.mxu0 0.0
  %2236 = vmatpush1.msra.mxu0 0.0
  %2237 = vmatprep.subr.mxu0 0.0
  %2238 = vmatpush1.msra.mxu0 0.0
  %2239 = vmatprep.subr.mxu0 0.0
  %2240 = vmatpush1.msra.mxu0 0.0
  %2241 = vmatprep.subr.mxu0 0.0
  %2242 = vmatpush1.msra.mxu0 0.0
  %2243 = vmatprep.subr.mxu0 0.0
  %2244 = vmatpush1.msra.mxu0 0.0
  %2245 = vmatprep.subr.mxu0 0.0
  %2246 = vmatpush1.msra.mxu0 0.0
  %2247 = vmatprep.subr.mxu0 0.0
  %2248 = vmatpush1.msra.mxu0 0.0
  %2249 = vmatprep.subr.mxu0 0.0
  %2250 = vmatpush1.msra.mxu0 0.0
  %2251 = vmatprep.mubr.f32.mxu0 0.0
  %2252 = vmatmul.mubr.f32.gmra.mrb[0].mxu0 %v2182
  %v2253 = vpop.f32.mrb[0].mxu0
  %v2254 = vadd.f32 %v1683, %v2253
  %v2255 = vpop.f32.mrb[0].mxu0
  %2256 = vmatprep.mubr.f32.mxu0 0.0
  %2257 = vmatmul.mubr.f32.gmra.mrb[0].mxu0 %v2185
  %v2258 = vpop.f32.mrb[0].mxu0
  %v2259 = vadd.f32 %v1684, %v2258
  %v2260 = vpop.f32.mrb[0].mxu0
  %2261 = vdwg.mxu0
  %v2262 = vxor.u32 %v2254, 2147483648
  %v2263 = vmul.f32 %v2262, 1.442695
  %v2264 = vpow.pop %v2263
  %v2265 = vadd.f32 %v2264, 1.0
  %v2266 = vrcp.pop %v2265
  %v2267 = vmul.f32 1.0, %v2266
  %v2268 = vtanh.pop %v2259
  %v2269 = vmul.f32 %v2267, %v2268
  %2271 = vset.pattern.permute.xlu0 8
  %2272 = vperm.xlu0 %2271, %v2036
  %v2273 = vpop.permute.xlu0 %2272
  %2276 = vset.pattern.permute.xlu0 8
  %2277 = vperm.xlu0 %2276, %v2037
  %v2278 = vpop.permute.xlu0 %2277
  %v2280 = vsel %vm1945, %v2036, 0
  %v2282 = vsel %vm1945, %v2037, 0
  %2284 = vmatprep.subr.mxu0 0.0
  %2285 = vmatpush1.msra.mxu0 %v2269
  %2286 = vmatprep.subr.mxu0 0.0
  %2287 = vmatpush1.msra.mxu0 0.0
  %2288 = vmatprep.subr.mxu0 0.0
  %2289 = vmatpush1.msra.mxu0 0.0
  %2290 = vmatprep.subr.mxu0 0.0
  %2291 = vmatpush1.msra.mxu0 0.0
  %2292 = vmatprep.subr.mxu0 0.0
  %2293 = vmatpush1.msra.mxu0 0.0
  %2294 = vmatprep.subr.mxu0 0.0
  %2295 = vmatpush1.msra.mxu0 0.0
  %2296 = vmatprep.subr.mxu0 0.0
  %2297 = vmatpush1.msra.mxu0 0.0
  %2298 = vmatprep.subr.mxu0 0.0
  %2299 = vmatpush1.msra.mxu0 0.0
  %2300 = vmatprep.subr.mxu0 0.0
  %2301 = vmatpush1.msra.mxu0 0.0
  %2302 = vmatprep.subr.mxu0 0.0
  %2303 = vmatpush1.msra.mxu0 0.0
  %2304 = vmatprep.subr.mxu0 0.0
  %2305 = vmatpush1.msra.mxu0 0.0
  %2306 = vmatprep.subr.mxu0 0.0
  %2307 = vmatpush1.msra.mxu0 0.0
  %2308 = vmatprep.subr.mxu0 0.0
  %2309 = vmatpush1.msra.mxu0 0.0
  %2310 = vmatprep.subr.mxu0 0.0
  %2311 = vmatpush1.msra.mxu0 0.0
  %2312 = vmatprep.subr.mxu0 0.0
  %2313 = vmatpush1.msra.mxu0 0.0
  %2314 = vmatprep.subr.mxu0 0.0
  %2315 = vmatpush1.msra.mxu0 0.0
  %2316 = vmatprep.subr.mxu0 0.0
  %2317 = vmatpush1.msra.mxu0 0.0
  %2318 = vmatprep.subr.mxu0 0.0
  %2319 = vmatpush1.msra.mxu0 0.0
  %2320 = vmatprep.subr.mxu0 0.0
  %2321 = vmatpush1.msra.mxu0 0.0
  %2322 = vmatprep.subr.mxu0 0.0
  %2323 = vmatpush1.msra.mxu0 0.0
  %2324 = vmatprep.subr.mxu0 0.0
  %2325 = vmatpush1.msra.mxu0 0.0
  %2326 = vmatprep.subr.mxu0 0.0
  %2327 = vmatpush1.msra.mxu0 0.0
  %2328 = vmatprep.subr.mxu0 0.0
  %2329 = vmatpush1.msra.mxu0 0.0
  %2330 = vmatprep.subr.mxu0 0.0
  %2331 = vmatpush1.msra.mxu0 0.0
  %2332 = vmatprep.subr.mxu0 0.0
  %2333 = vmatpush1.msra.mxu0 0.0
  %2334 = vmatprep.subr.mxu0 0.0
  %2335 = vmatpush1.msra.mxu0 0.0
  %2336 = vmatprep.subr.mxu0 0.0
  %2337 = vmatpush1.msra.mxu0 0.0
  %2338 = vmatprep.subr.mxu0 0.0
  %2339 = vmatpush1.msra.mxu0 0.0
  %2340 = vmatprep.subr.mxu0 0.0
  %2341 = vmatpush1.msra.mxu0 0.0
  %2342 = vmatprep.subr.mxu0 0.0
  %2343 = vmatpush1.msra.mxu0 0.0
  %2344 = vmatprep.subr.mxu0 0.0
  %2345 = vmatpush1.msra.mxu0 0.0
  %2346 = vmatprep.subr.mxu0 0.0
  %2347 = vmatpush1.msra.mxu0 0.0
  %2348 = vmatprep.mubr.f32.mxu0 0.0
  %2349 = vmatmul.mubr.f32.gmra.mrb[0].mxu0 %v2280
  %v2350 = vpop.f32.mrb[0].mxu0
  %v2351 = vadd.f32 %v2273, %v2350
  %v2352 = vpop.f32.mrb[0].mxu0
  %2353 = vmatprep.mubr.f32.mxu0 0.0
  %2354 = vmatmul.mubr.f32.gmra.mrb[0].mxu0 %v2282
  %v2355 = vpop.f32.mrb[0].mxu0
  %v2356 = vadd.f32 %v2278, %v2355
  %v2357 = vpop.f32.mrb[0].mxu0
  %2358 = vdwg.mxu0
  %vm2359 = vcmp.ge.f32.partialorder %v2351, 0.0
  %vm2360 = vcmp.ge.f32.partialorder %v2356, 0.0
  %v2361 = vmul.f32 %v2351, 0.4
  %v2362 = vmul.f32 %v2356, 0.4
  %v2363 = vsel %vm2359, %v2351, %v2361
  %v2364 = vsel %vm2360, %v2356, %v2362
  %v2365 = vadd.f32 %v2032, %v2363
  %v2366 = vmul.f32 %v2365, 0.70710677
  %v2367 = vadd.f32 %v2033, %v2364
  %v2368 = vld [vmem:[%s1 + $0xf0] sm:$0xff]
  %v2369 = vld [vmem:[%s1 + $0xf8] sm:$0xff]
  %v2370 = vld [vmem:[%s1 + $0x170] sm:$0xff]
  %v2371 = vld [vmem:[%s1 + $0x178] sm:$0xff]
  %v2373 = vsel %vm1701, %v2366, 0
  %2375 = vmatprep.subr.mxu0 0.0
  %2376 = vmatpush1.msra.mxu0 %v54
  %2377 = vmatprep.subr.mxu0 0.0
  %2378 = vmatpush1.msra.mxu0 %v55
  %2379 = vmatprep.subr.mxu0 0.0
  %2380 = vmatpush1.msra.mxu0 %v56
  %2381 = vmatprep.subr.mxu0 0.0
  %2382 = vmatpush1.msra.mxu0 %v57
  %2383 = vmatprep.subr.mxu0 0.0
  %2384 = vmatpush1.msra.mxu0 %v58
  %2385 = vmatprep.subr.mxu0 0.0
  %2386 = vmatpush1.msra.mxu0 0.0
  %2387 = vmatprep.subr.mxu0 0.0
  %2388 = vmatpush1.msra.mxu0 0.0
  %2389 = vmatprep.subr.mxu0 0.0
  %2390 = vmatpush1.msra.mxu0 0.0
  %2391 = vmatprep.subr.mxu0 0.0
  %2392 = vmatpush1.msra.mxu0 0.0
  %2393 = vmatprep.subr.mxu0 0.0
  %2394 = vmatpush1.msra.mxu0 0.0
  %2395 = vmatprep.subr.mxu0 0.0
  %2396 = vmatpush1.msra.mxu0 0.0
  %2397 = vmatprep.subr.mxu0 0.0
  %2398 = vmatpush1.msra.mxu0 0.0
  %2399 = vmatprep.subr.mxu0 0.0
  %2400 = vmatpush1.msra.mxu0 0.0
  %2401 = vmatprep.subr.mxu0 0.0
  %2402 = vmatpush1.msra.mxu0 0.0
  %2403 = vmatprep.subr.mxu0 0.0
  %2404 = vmatpush1.msra.mxu0 0.0
  %2405 = vmatprep.subr.mxu0 0.0
  %2406 = vmatpush1.msra.mxu0 0.0
  %2407 = vmatprep.subr.mxu0 0.0
  %2408 = vmatpush1.msra.mxu0 0.0
  %2409 = vmatprep.subr.mxu0 0.0
  %2410 = vmatpush1.msra.mxu0 0.0
  %2411 = vmatprep.subr.mxu0 0.0
  %2412 = vmatpush1.msra.mxu0 0.0
  %2413 = vmatprep.subr.mxu0 0.0
  %2414 = vmatpush1.msra.mxu0 0.0
  %2415 = vmatprep.subr.mxu0 0.0
  %2416 = vmatpush1.msra.mxu0 0.0
  %2417 = vmatprep.subr.mxu0 0.0
  %2418 = vmatpush1.msra.mxu0 0.0
  %2419 = vmatprep.subr.mxu0 0.0
  %2420 = vmatpush1.msra.mxu0 0.0
  %2421 = vmatprep.subr.mxu0 0.0
  %2422 = vmatpush1.msra.mxu0 0.0
  %2423 = vmatprep.subr.mxu0 0.0
  %2424 = vmatpush1.msra.mxu0 0.0
  %2425 = vmatprep.subr.mxu0 0.0
  %2426 = vmatpush1.msra.mxu0 0.0
  %2427 = vmatprep.subr.mxu0 0.0
  %2428 = vmatpush1.msra.mxu0 0.0
  %2429 = vmatprep.subr.mxu0 0.0
  %2430 = vmatpush1.msra.mxu0 0.0
  %2431 = vmatprep.subr.mxu0 0.0
  %2432 = vmatpush1.msra.mxu0 0.0
  %2433 = vmatprep.subr.mxu0 0.0
  %2434 = vmatpush1.msra.mxu0 0.0
  %2435 = vmatprep.subr.mxu0 0.0
  %2436 = vmatpush1.msra.mxu0 0.0
  %2437 = vmatprep.subr.mxu0 0.0
  %2438 = vmatpush1.msra.mxu0 0.0
  %2439 = vmatprep.mubr.f32.mxu0 0.0
  %2440 = vmatmul.mubr.f32.gmra.mrb[0].mxu0 %v2373
  %v2441 = vpop.f32.mrb[0].mxu0
  %v2442 = vadd.f32 0.0, %v2441
  %v2443 = vpop.f32.mrb[0].mxu0
  %2444 = vdwg.mxu0
  %2445 = vmatprep.subr.mxu0 0.0
  %2446 = vmatpush1.msra.mxu0 %v59
  %2447 = vmatprep.subr.mxu0 0.0
  %2448 = vmatpush1.msra.mxu0 %v60
  %2449 = vmatprep.subr.mxu0 0.0
  %2450 = vmatpush1.msra.mxu0 %v61
  %2451 = vmatprep.subr.mxu0 0.0
  %2452 = vmatpush1.msra.mxu0 %v62
  %2453 = vmatprep.subr.mxu0 0.0
  %2454 = vmatpush1.msra.mxu0 %v63
  %2455 = vmatprep.subr.mxu0 0.0
  %2456 = vmatpush1.msra.mxu0 0.0
  %2457 = vmatprep.subr.mxu0 0.0
  %2458 = vmatpush1.msra.mxu0 0.0
  %2459 = vmatprep.subr.mxu0 0.0
  %2460 = vmatpush1.msra.mxu0 0.0
  %2461 = vmatprep.subr.mxu0 0.0
  %2462 = vmatpush1.msra.mxu0 0.0
  %2463 = vmatprep.subr.mxu0 0.0
  %2464 = vmatpush1.msra.mxu0 0.0
  %2465 = vmatprep.subr.mxu0 0.0
  %2466 = vmatpush1.msra.mxu0 0.0
  %2467 = vmatprep.subr.mxu0 0.0
  %2468 = vmatpush1.msra.mxu0 0.0
  %2469 = vmatprep.subr.mxu0 0.0
  %2470 = vmatpush1.msra.mxu0 0.0
  %2471 = vmatprep.subr.mxu0 0.0
  %2472 = vmatpush1.msra.mxu0 0.0
  %2473 = vmatprep.subr.mxu0 0.0
  %2474 = vmatpush1.msra.mxu0 0.0
  %2475 = vmatprep.subr.mxu0 0.0
  %2476 = vmatpush1.msra.mxu0 0.0
  %2477 = vmatprep.subr.mxu0 0.0
  %2478 = vmatpush1.msra.mxu0 0.0
  %2479 = vmatprep.subr.mxu0 0.0
  %2480 = vmatpush1.msra.mxu0 0.0
  %2481 = vmatprep.subr.mxu0 0.0
  %2482 = vmatpush1.msra.mxu0 0.0
  %2483 = vmatprep.subr.mxu0 0.0
  %2484 = vmatpush1.msra.mxu0 0.0
  %2485 = vmatprep.subr.mxu0 0.0
  %2486 = vmatpush1.msra.mxu0 0.0
  %2487 = vmatprep.subr.mxu0 0.0
  %2488 = vmatpush1.msra.mxu0 0.0
  %2489 = vmatprep.subr.mxu0 0.0
  %2490 = vmatpush1.msra.mxu0 0.0
  %2491 = vmatprep.subr.mxu0 0.0
  %2492 = vmatpush1.msra.mxu0 0.0
  %2493 = vmatprep.subr.mxu0 0.0
  %2494 = vmatpush1.msra.mxu0 0.0
  %2495 = vmatprep.subr.mxu0 0.0
  %2496 = vmatpush1.msra.mxu0 0.0
  %2497 = vmatprep.subr.mxu0 0.0
  %2498 = vmatpush1.msra.mxu0 0.0
  %2499 = vmatprep.subr.mxu0 0.0
  %2500 = vmatpush1.msra.mxu0 0.0
  %2501 = vmatprep.subr.mxu0 0.0
  %2502 = vmatpush1.msra.mxu0 0.0
  %2503 = vmatprep.subr.mxu0 0.0
  %2504 = vmatpush1.msra.mxu0 0.0
  %2505 = vmatprep.subr.mxu0 0.0
  %2506 = vmatpush1.msra.mxu0 0.0
  %2507 = vmatprep.subr.mxu0 0.0
  %2508 = vmatpush1.msra.mxu0 0.0
  %2509 = vmatprep.mubr.f32.mxu0 0.0
  %2510 = vmatmul.mubr.f32.gmra.mrb[0].mxu0 %v2373
  %v2511 = vpop.f32.mrb[0].mxu0
  %v2512 = vadd.f32 0.0, %v2511
  %v2513 = vpop.f32.mrb[0].mxu0
  %2514 = vdwg.mxu0
  %v2516 = vsel %vm1845, %v2368, 0
  %v2519 = vsel %vm1845, %v2369, 0
  %2521 = vmatprep.subr.mxu0 0.0
  %2522 = vmatpush1.msra.mxu0 %v2442
  %2523 = vmatprep.subr.mxu0 0.0
  %2524 = vmatpush1.msra.mxu0 %v2366
  %2525 = vmatprep.subr.mxu0 0.0
  %2526 = vmatpush1.msra.mxu0 %v2512
  %2527 = vmatprep.subr.mxu0 0.0
  %2528 = vmatpush1.msra.mxu0 0.0
  %2529 = vmatprep.subr.mxu0 0.0
  %2530 = vmatpush1.msra.mxu0 0.0
  %2531 = vmatprep.subr.mxu0 0.0
  %2532 = vmatpush1.msra.mxu0 0.0
  %2533 = vmatprep.subr.mxu0 0.0
  %2534 = vmatpush1.msra.mxu0 0.0
  %2535 = vmatprep.subr.mxu0 0.0
  %2536 = vmatpush1.msra.mxu0 0.0
  %2537 = vmatprep.subr.mxu0 0.0
  %2538 = vmatpush1.msra.mxu0 0.0
  %2539 = vmatprep.subr.mxu0 0.0
  %2540 = vmatpush1.msra.mxu0 0.0
  %2541 = vmatprep.subr.mxu0 0.0
  %2542 = vmatpush1.msra.mxu0 0.0
  %2543 = vmatprep.subr.mxu0 0.0
  %2544 = vmatpush1.msra.mxu0 0.0
  %2545 = vmatprep.subr.mxu0 0.0
  %2546 = vmatpush1.msra.mxu0 0.0
  %2547 = vmatprep.subr.mxu0 0.0
  %2548 = vmatpush1.msra.mxu0 0.0
  %2549 = vmatprep.subr.mxu0 0.0
  %2550 = vmatpush1.msra.mxu0 0.0
  %2551 = vmatprep.subr.mxu0 0.0
  %2552 = vmatpush1.msra.mxu0 0.0
  %2553 = vmatprep.subr.mxu0 0.0
  %2554 = vmatpush1.msra.mxu0 0.0
  %2555 = vmatprep.subr.mxu0 0.0
  %2556 = vmatpush1.msra.mxu0 0.0
  %2557 = vmatprep.subr.mxu0 0.0
  %2558 = vmatpush1.msra.mxu0 0.0
  %2559 = vmatprep.subr.mxu0 0.0
  %2560 = vmatpush1.msra.mxu0 0.0
  %2561 = vmatprep.subr.mxu0 0.0
  %2562 = vmatpush1.msra.mxu0 0.0
  %2563 = vmatprep.subr.mxu0 0.0
  %2564 = vmatpush1.msra.mxu0 0.0
  %2565 = vmatprep.subr.mxu0 0.0
  %2566 = vmatpush1.msra.mxu0 0.0
  %2567 = vmatprep.subr.mxu0 0.0
  %2568 = vmatpush1.msra.mxu0 0.0
  %2569 = vmatprep.subr.mxu0 0.0
  %2570 = vmatpush1.msra.mxu0 0.0
  %2571 = vmatprep.subr.mxu0 0.0
  %2572 = vmatpush1.msra.mxu0 0.0
  %2573 = vmatprep.subr.mxu0 0.0
  %2574 = vmatpush1.msra.mxu0 0.0
  %2575 = vmatprep.subr.mxu0 0.0
  %2576 = vmatpush1.msra.mxu0 0.0
  %2577 = vmatprep.subr.mxu0 0.0
  %2578 = vmatpush1.msra.mxu0 0.0
  %2579 = vmatprep.subr.mxu0 0.0
  %2580 = vmatpush1.msra.mxu0 0.0
  %2581 = vmatprep.subr.mxu0 0.0
  %2582 = vmatpush1.msra.mxu0 0.0
  %2583 = vmatprep.subr.mxu0 0.0
  %2584 = vmatpush1.msra.mxu0 0.0
  %2585 = vmatprep.mubr.f32.mxu0 0.0
  %2586 = vmatmul.mubr.f32.gmra.mrb[0].mxu0 %v2516
  %v2587 = vpop.f32.mrb[0].mxu0
  %v2588 = vadd.f32 %v1685, %v2587
  %v2589 = vpop.f32.mrb[0].mxu0
  %2590 = vmatprep.mubr.f32.mxu0 0.0
  %2591 = vmatmul.mubr.f32.gmra.mrb[0].mxu0 %v2519
  %v2592 = vpop.f32.mrb[0].mxu0
  %v2593 = vadd.f32 %v1686, %v2592
  %v2594 = vpop.f32.mrb[0].mxu0
  %2595 = vdwg.mxu0
  %v2596 = vxor.u32 %v2588, 2147483648
  %v2597 = vmul.f32 %v2596, 1.442695
  %v2598 = vpow.pop %v2597
  %v2599 = vadd.f32 %v2598, 1.0
  %v2600 = vrcp.pop %v2599
  %v2601 = vmul.f32 1.0, %v2600
  %v2602 = vtanh.pop %v2593
  %v2603 = vmul.f32 %v2601, %v2602
  %2605 = vset.pattern.permute.xlu0 8
  %2606 = vperm.xlu0 %2605, %v2370
  %v2607 = vpop.permute.xlu0 %2606
  %2610 = vset.pattern.permute.xlu0 8
  %2611 = vperm.xlu0 %2610, %v2371
  %v2612 = vpop.permute.xlu0 %2611
  %v2614 = vsel %vm1945, %v2370, 0
  %v2616 = vsel %vm1945, %v2371, 0
  %2618 = vmatprep.subr.mxu0 0.0
  %2619 = vmatpush1.msra.mxu0 %v2603
  %2620 = vmatprep.subr.mxu0 0.0
  %2621 = vmatpush1.msra.mxu0 0.0
  %2622 = vmatprep.subr.mxu0 0.0
  %2623 = vmatpush1.msra.mxu0 0.0
  %2624 = vmatprep.subr.mxu0 0.0
  %2625 = vmatpush1.msra.mxu0 0.0
  %2626 = vmatprep.subr.mxu0 0.0
  %2627 = vmatpush1.msra.mxu0 0.0
  %2628 = vmatprep.subr.mxu0 0.0
  %2629 = vmatpush1.msra.mxu0 0.0
  %2630 = vmatprep.subr.mxu0 0.0
  %2631 = vmatpush1.msra.mxu0 0.0
  %2632 = vmatprep.subr.mxu0 0.0
  %2633 = vmatpush1.msra.mxu0 0.0
  %2634 = vmatprep.subr.mxu0 0.0
  %2635 = vmatpush1.msra.mxu0 0.0
  %2636 = vmatprep.subr.mxu0 0.0
  %2637 = vmatpush1.msra.mxu0 0.0
  %2638 = vmatprep.subr.mxu0 0.0
  %2639 = vmatpush1.msra.mxu0 0.0
  %2640 = vmatprep.subr.mxu0 0.0
  %2641 = vmatpush1.msra.mxu0 0.0
  %2642 = vmatprep.subr.mxu0 0.0
  %2643 = vmatpush1.msra.mxu0 0.0
  %2644 = vmatprep.subr.mxu0 0.0
  %2645 = vmatpush1.msra.mxu0 0.0
  %2646 = vmatprep.subr.mxu0 0.0
  %2647 = vmatpush1.msra.mxu0 0.0
  %2648 = vmatprep.subr.mxu0 0.0
  %2649 = vmatpush1.msra.mxu0 0.0
  %2650 = vmatprep.subr.mxu0 0.0
  %2651 = vmatpush1.msra.mxu0 0.0
  %2652 = vmatprep.subr.mxu0 0.0
  %2653 = vmatpush1.msra.mxu0 0.0
  %2654 = vmatprep.subr.mxu0 0.0
  %2655 = vmatpush1.msra.mxu0 0.0
  %2656 = vmatprep.subr.mxu0 0.0
  %2657 = vmatpush1.msra.mxu0 0.0
  %2658 = vmatprep.subr.mxu0 0.0
  %2659 = vmatpush1.msra.mxu0 0.0
  %2660 = vmatprep.subr.mxu0 0.0
  %2661 = vmatpush1.msra.mxu0 0.0
  %2662 = vmatprep.subr.mxu0 0.0
  %2663 = vmatpush1.msra.mxu0 0.0
  %2664 = vmatprep.subr.mxu0 0.0
  %2665 = vmatpush1.msra.mxu0 0.0
  %2666 = vmatprep.subr.mxu0 0.0
  %2667 = vmatpush1.msra.mxu0 0.0
  %2668 = vmatprep.subr.mxu0 0.0
  %2669 = vmatpush1.msra.mxu0 0.0
  %2670 = vmatprep.subr.mxu0 0.0
  %2671 = vmatpush1.msra.mxu0 0.0
  %2672 = vmatprep.subr.mxu0 0.0
  %2673 = vmatpush1.msra.mxu0 0.0
  %2674 = vmatprep.subr.mxu0 0.0
  %2675 = vmatpush1.msra.mxu0 0.0
  %2676 = vmatprep.subr.mxu0 0.0
  %2677 = vmatpush1.msra.mxu0 0.0
  %2678 = vmatprep.subr.mxu0 0.0
  %2679 = vmatpush1.msra.mxu0 0.0
  %2680 = vmatprep.subr.mxu0 0.0
  %2681 = vmatpush1.msra.mxu0 0.0
  %2682 = vmatprep.mubr.f32.mxu0 0.0
  %2683 = vmatmul.mubr.f32.gmra.mrb[0].mxu0 %v2614
  %v2684 = vpop.f32.mrb[0].mxu0
  %v2685 = vadd.f32 %v2607, %v2684
  %v2686 = vpop.f32.mrb[0].mxu0
  %2687 = vmatprep.mubr.f32.mxu0 0.0
  %2688 = vmatmul.mubr.f32.gmra.mrb[0].mxu0 %v2616
  %v2689 = vpop.f32.mrb[0].mxu0
  %v2690 = vadd.f32 %v2612, %v2689
  %v2691 = vpop.f32.mrb[0].mxu0
  %2692 = vdwg.mxu0
  %vm2693 = vcmp.ge.f32.partialorder %v2685, 0.0
  %vm2694 = vcmp.ge.f32.partialorder %v2690, 0.0
  %v2695 = vmul.f32 %v2685, 0.4
  %v2696 = vmul.f32 %v2690, 0.4
  %v2697 = vsel %vm2693, %v2685, %v2695
  %v2698 = vsel %vm2694, %v2690, %v2696
  %v2699 = vadd.f32 %v2366, %v2697
  %v2700 = vmul.f32 %v2699, 0.70710677
  %v2701 = vadd.f32 %v2367, %v2698
  %v2702 = vld [vmem:[%s1 + $0x100] sm:$0xff]
  %v2703 = vld [vmem:[%s1 + $0x108] sm:$0xff]
  %v2704 = vld [vmem:[%s1 + $0x180] sm:$0xff]
  %v2705 = vld [vmem:[%s1 + $0x188] sm:$0xff]
  %v2707 = vsel %vm1701, %v2700, 0
  %2709 = vmatprep.subr.mxu0 0.0
  %2710 = vmatpush1.msra.mxu0 %v64
  %2711 = vmatprep.subr.mxu0 0.0
  %2712 = vmatpush1.msra.mxu0 %v65
  %2713 = vmatprep.subr.mxu0 0.0
  %2714 = vmatpush1.msra.mxu0 %v66
  %2715 = vmatprep.subr.mxu0 0.0
  %2716 = vmatpush1.msra.mxu0 %v67
  %2717 = vmatprep.subr.mxu0 0.0
  %2718 = vmatpush1.msra.mxu0 %v68
  %2719 = vmatprep.subr.mxu0 0.0
  %2720 = vmatpush1.msra.mxu0 0.0
  %2721 = vmatprep.subr.mxu0 0.0
  %2722 = vmatpush1.msra.mxu0 0.0
  %2723 = vmatprep.subr.mxu0 0.0
  %2724 = vmatpush1.msra.mxu0 0.0
  %2725 = vmatprep.subr.mxu0 0.0
  %2726 = vmatpush1.msra.mxu0 0.0
  %2727 = vmatprep.subr.mxu0 0.0
  %2728 = vmatpush1.msra.mxu0 0.0
  %2729 = vmatprep.subr.mxu0 0.0
  %2730 = vmatpush1.msra.mxu0 0.0
  %2731 = vmatprep.subr.mxu0 0.0
  %2732 = vmatpush1.msra.mxu0 0.0
  %2733 = vmatprep.subr.mxu0 0.0
  %2734 = vmatpush1.msra.mxu0 0.0
  %2735 = vmatprep.subr.mxu0 0.0
  %2736 = vmatpush1.msra.mxu0 0.0
  %2737 = vmatprep.subr.mxu0 0.0
  %2738 = vmatpush1.msra.mxu0 0.0
  %2739 = vmatprep.subr.mxu0 0.0
  %2740 = vmatpush1.msra.mxu0 0.0
  %2741 = vmatprep.subr.mxu0 0.0
  %2742 = vmatpush1.msra.mxu0 0.0
  %2743 = vmatprep.subr.mxu0 0.0
  %2744 = vmatpush1.msra.mxu0 0.0
  %2745 = vmatprep.subr.mxu0 0.0
  %2746 = vmatpush1.msra.mxu0 0.0
  %2747 = vmatprep.subr.mxu0 0.0
  %2748 = vmatpush1.msra.mxu0 0.0
  %2749 = vmatprep.subr.mxu0 0.0
  %2750 = vmatpush1.msra.mxu0 0.0
  %2751 = vmatprep.subr.mxu0 0.0
  %2752 = vmatpush1.msra.mxu0 0.0
  %2753 = vmatprep.subr.mxu0 0.0
  %2754 = vmatpush1.msra.mxu0 0.0
  %2755 = vmatprep.subr.mxu0 0.0
  %2756 = vmatpush1.msra.mxu0 0.0
  %2757 = vmatprep.subr.mxu0 0.0
  %2758 = vmatpush1.msra.mxu0 0.0
  %2759 = vmatprep.subr.mxu0 0.0
  %2760 = vmatpush1.msra.mxu0 0.0
  %2761 = vmatprep.subr.mxu0 0.0
  %2762 = vmatpush1.msra.mxu0 0.0
  %2763 = vmatprep.subr.mxu0 0.0
  %2764 = vmatpush1.msra.mxu0 0.0
  %2765 = vmatprep.subr.mxu0 0.0
  %2766 = vmatpush1.msra.mxu0 0.0
  %2767 = vmatprep.subr.mxu0 0.0
  %2768 = vmatpush1.msra.mxu0 0.0
  %2769 = vmatprep.subr.mxu0 0.0
  %2770 = vmatpush1.msra.mxu0 0.0
  %2771 = vmatprep.subr.mxu0 0.0
  %2772 = vmatpush1.msra.mxu0 0.0
  %2773 = vmatprep.mubr.f32.mxu0 0.0
  %2774 = vmatmul.mubr.f32.gmra.mrb[0].mxu0 %v2707
  %v2775 = vpop.f32.mrb[0].mxu0
  %v2776 = vadd.f32 0.0, %v2775
  %v2777 = vpop.f32.mrb[0].mxu0
  %2778 = vdwg.mxu0
  %2779 = vmatprep.subr.mxu0 0.0
  %2780 = vmatpush1.msra.mxu0 %v69
  %2781 = vmatprep.subr.mxu0 0.0
  %2782 = vmatpush1.msra.mxu0 %v70
  %2783 = vmatprep.subr.mxu0 0.0
  %2784 = vmatpush1.msra.mxu0 %v71
  %2785 = vmatprep.subr.mxu0 0.0
  %2786 = vmatpush1.msra.mxu0 %v72
  %2787 = vmatprep.subr.mxu0 0.0
  %2788 = vmatpush1.msra.mxu0 %v73
  %2789 = vmatprep.subr.mxu0 0.0
  %2790 = vmatpush1.msra.mxu0 0.0
  %2791 = vmatprep.subr.mxu0 0.0
  %2792 = vmatpush1.msra.mxu0 0.0
  %2793 = vmatprep.subr.mxu0 0.0
  %2794 = vmatpush1.msra.mxu0 0.0
  %2795 = vmatprep.subr.mxu0 0.0
  %2796 = vmatpush1.msra.mxu0 0.0
  %2797 = vmatprep.subr.mxu0 0.0
  %2798 = vmatpush1.msra.mxu0 0.0
  %2799 = vmatprep.subr.mxu0 0.0
  %2800 = vmatpush1.msra.mxu0 0.0
  %2801 = vmatprep.subr.mxu0 0.0
  %2802 = vmatpush1.msra.mxu0 0.0
  %2803 = vmatprep.subr.mxu0 0.0
  %2804 = vmatpush1.msra.mxu0 0.0
  %2805 = vmatprep.subr.mxu0 0.0
  %2806 = vmatpush1.msra.mxu0 0.0
  %2807 = vmatprep.subr.mxu0 0.0
  %2808 = vmatpush1.msra.mxu0 0.0
  %2809 = vmatprep.subr.mxu0 0.0
  %2810 = vmatpush1.msra.mxu0 0.0
  %2811 = vmatprep.subr.mxu0 0.0
  %2812 = vmatpush1.msra.mxu0 0.0
  %2813 = vmatprep.subr.mxu0 0.0
  %2814 = vmatpush1.msra.mxu0 0.0
  %2815 = vmatprep.subr.mxu0 0.0
  %2816 = vmatpush1.msra.mxu0 0.0
  %2817 = vmatprep.subr.mxu0 0.0
  %2818 = vmatpush1.msra.mxu0 0.0
  %2819 = vmatprep.subr.mxu0 0.0
  %2820 = vmatpush1.msra.mxu0 0.0
  %2821 = vmatprep.subr.mxu0 0.0
  %2822 = vmatpush1.msra.mxu0 0.0
  %2823 = vmatprep.subr.mxu0 0.0
  %2824 = vmatpush1.msra.mxu0 0.0
  %2825 = vmatprep.subr.mxu0 0.0
  %2826 = vmatpush1.msra.mxu0 0.0
  %2827 = vmatprep.subr.mxu0 0.0
  %2828 = vmatpush1.msra.mxu0 0.0
  %2829 = vmatprep.subr.mxu0 0.0
  %2830 = vmatpush1.msra.mxu0 0.0
  %2831 = vmatprep.subr.mxu0 0.0
  %2832 = vmatpush1.msra.mxu0 0.0
  %2833 = vmatprep.subr.mxu0 0.0
  %2834 = vmatpush1.msra.mxu0 0.0
  %2835 = vmatprep.subr.mxu0 0.0
  %2836 = vmatpush1.msra.mxu0 0.0
  %2837 = vmatprep.subr.mxu0 0.0
  %2838 = vmatpush1.msra.mxu0 0.0
  %2839 = vmatprep.subr.mxu0 0.0
  %2840 = vmatpush1.msra.mxu0 0.0
  %2841 = vmatprep.subr.mxu0 0.0
  %2842 = vmatpush1.msra.mxu0 0.0
  %2843 = vmatprep.mubr.f32.mxu0 0.0
  %2844 = vmatmul.mubr.f32.gmra.mrb[0].mxu0 %v2707
  %v2845 = vpop.f32.mrb[0].mxu0
  %v2846 = vadd.f32 0.0, %v2845
  %v2847 = vpop.f32.mrb[0].mxu0
  %2848 = vdwg.mxu0
  %v2850 = vsel %vm1845, %v2702, 0
  %v2853 = vsel %vm1845, %v2703, 0
  %2855 = vmatprep.subr.mxu0 0.0
  %2856 = vmatpush1.msra.mxu0 %v2776
  %2857 = vmatprep.subr.mxu0 0.0
  %2858 = vmatpush1.msra.mxu0 %v2700
  %2859 = vmatprep.subr.mxu0 0.0
  %2860 = vmatpush1.msra.mxu0 %v2846
  %2861 = vmatprep.subr.mxu0 0.0
  %2862 = vmatpush1.msra.mxu0 0.0
  %2863 = vmatprep.subr.mxu0 0.0
  %2864 = vmatpush1.msra.mxu0 0.0
  %2865 = vmatprep.subr.mxu0 0.0
  %2866 = vmatpush1.msra.mxu0 0.0
  %2867 = vmatprep.subr.mxu0 0.0
  %2868 = vmatpush1.msra.mxu0 0.0
  %2869 = vmatprep.subr.mxu0 0.0
  %2870 = vmatpush1.msra.mxu0 0.0
  %2871 = vmatprep.subr.mxu0 0.0
  %2872 = vmatpush1.msra.mxu0 0.0
  %2873 = vmatprep.subr.mxu0 0.0
  %2874 = vmatpush1.msra.mxu0 0.0
  %2875 = vmatprep.subr.mxu0 0.0
  %2876 = vmatpush1.msra.mxu0 0.0
  %2877 = vmatprep.subr.mxu0 0.0
  %2878 = vmatpush1.msra.mxu0 0.0
  %2879 = vmatprep.subr.mxu0 0.0
  %2880 = vmatpush1.msra.mxu0 0.0
  %2881 = vmatprep.subr.mxu0 0.0
  %2882 = vmatpush1.msra.mxu0 0.0
  %2883 = vmatprep.subr.mxu0 0.0
  %2884 = vmatpush1.msra.mxu0 0.0
  %2885 = vmatprep.subr.mxu0 0.0
  %2886 = vmatpush1.msra.mxu0 0.0
  %2887 = vmatprep.subr.mxu0 0.0
  %2888 = vmatpush1.msra.mxu0 0.0
  %2889 = vmatprep.subr.mxu0 0.0
  %2890 = vmatpush1.msra.mxu0 0.0
  %2891 = vmatprep.subr.mxu0 0.0
  %2892 = vmatpush1.msra.mxu0 0.0
  %2893 = vmatprep.subr.mxu0 0.0
  %2894 = vmatpush1.msra.mxu0 0.0
  %2895 = vmatprep.subr.mxu0 0.0
  %2896 = vmatpush1.msra.mxu0 0.0
  %2897 = vmatprep.subr.mxu0 0.0
  %2898 = vmatpush1.msra.mxu0 0.0
  %2899 = vmatprep.subr.mxu0 0.0
  %2900 = vmatpush1.msra.mxu0 0.0
  %2901 = vmatprep.subr.mxu0 0.0
  %2902 = vmatpush1.msra.mxu0 0.0
  %2903 = vmatprep.subr.mxu0 0.0
  %2904 = vmatpush1.msra.mxu0 0.0
  %2905 = vmatprep.subr.mxu0 0.0
  %2906 = vmatpush1.msra.mxu0 0.0
  %2907 = vmatprep.subr.mxu0 0.0
  %2908 = vmatpush1.msra.mxu0 0.0
  %2909 = vmatprep.subr.mxu0 0.0
  %2910 = vmatpush1.msra.mxu0 0.0
  %2911 = vmatprep.subr.mxu0 0.0
  %2912 = vmatpush1.msra.mxu0 0.0
  %2913 = vmatprep.subr.mxu0 0.0
  %2914 = vmatpush1.msra.mxu0 0.0
  %2915 = vmatprep.subr.mxu0 0.0
  %2916 = vmatpush1.msra.mxu0 0.0
  %2917 = vmatprep.subr.mxu0 0.0
  %2918 = vmatpush1.msra.mxu0 0.0
  %2919 = vmatprep.mubr.f32.mxu0 0.0
  %2920 = vmatmul.mubr.f32.gmra.mrb[0].mxu0 %v2850
  %v2921 = vpop.f32.mrb[0].mxu0
  %v2922 = vadd.f32 %v1687, %v2921
  %v2923 = vpop.f32.mrb[0].mxu0
  %2924 = vmatprep.mubr.f32.mxu0 0.0
  %2925 = vmatmul.mubr.f32.gmra.mrb[0].mxu0 %v2853
  %v2926 = vpop.f32.mrb[0].mxu0
  %v2927 = vadd.f32 %v1688, %v2926
  %v2928 = vpop.f32.mrb[0].mxu0
  %2929 = vdwg.mxu0
  %v2930 = vxor.u32 %v2922, 2147483648
  %v2931 = vmul.f32 %v2930, 1.442695
  %v2932 = vpow.pop %v2931
  %v2933 = vadd.f32 %v2932, 1.0
  %v2934 = vrcp.pop %v2933
  %v2935 = vmul.f32 1.0, %v2934
  %v2936 = vtanh.pop %v2927
  %v2937 = vmul.f32 %v2935, %v2936
  %2939 = vset.pattern.permute.xlu0 8
  %2940 = vperm.xlu0 %2939, %v2704
  %v2941 = vpop.permute.xlu0 %2940
  %2944 = vset.pattern.permute.xlu0 8
  %2945 = vperm.xlu0 %2944, %v2705
  %v2946 = vpop.permute.xlu0 %2945
  %v2948 = vsel %vm1945, %v2704, 0
  %v2950 = vsel %vm1945, %v2705, 0
  %2952 = vmatprep.subr.mxu0 0.0
  %2953 = vmatpush1.msra.mxu0 %v2937
  %2954 = vmatprep.subr.mxu0 0.0
  %2955 = vmatpush1.msra.mxu0 0.0
  %2956 = vmatprep.subr.mxu0 0.0
  %2957 = vmatpush1.msra.mxu0 0.0
  %2958 = vmatprep.subr.mxu0 0.0
  %2959 = vmatpush1.msra.mxu0 0.0
  %2960 = vmatprep.subr.mxu0 0.0
  %2961 = vmatpush1.msra.mxu0 0.0
  %2962 = vmatprep.subr.mxu0 0.0
  %2963 = vmatpush1.msra.mxu0 0.0
  %2964 = vmatprep.subr.mxu0 0.0
  %2965 = vmatpush1.msra.mxu0 0.0
  %2966 = vmatprep.subr.mxu0 0.0
  %2967 = vmatpush1.msra.mxu0 0.0
  %2968 = vmatprep.subr.mxu0 0.0
  %2969 = vmatpush1.msra.mxu0 0.0
  %2970 = vmatprep.subr.mxu0 0.0
  %2971 = vmatpush1.msra.mxu0 0.0
  %2972 = vmatprep.subr.mxu0 0.0
  %2973 = vmatpush1.msra.mxu0 0.0
  %2974 = vmatprep.subr.mxu0 0.0
  %2975 = vmatpush1.msra.mxu0 0.0
  %2976 = vmatprep.subr.mxu0 0.0
  %2977 = vmatpush1.msra.mxu0 0.0
  %2978 = vmatprep.subr.mxu0 0.0
  %2979 = vmatpush1.msra.mxu0 0.0
  %2980 = vmatprep.subr.mxu0 0.0
  %2981 = vmatpush1.msra.mxu0 0.0
  %2982 = vmatprep.subr.mxu0 0.0
  %2983 = vmatpush1.msra.mxu0 0.0
  %2984 = vmatprep.subr.mxu0 0.0
  %2985 = vmatpush1.msra.mxu0 0.0
  %2986 = vmatprep.subr.mxu0 0.0
  %2987 = vmatpush1.msra.mxu0 0.0
  %2988 = vmatprep.subr.mxu0 0.0
  %2989 = vmatpush1.msra.mxu0 0.0
  %2990 = vmatprep.subr.mxu0 0.0
  %2991 = vmatpush1.msra.mxu0 0.0
  %2992 = vmatprep.subr.mxu0 0.0
  %2993 = vmatpush1.msra.mxu0 0.0
  %2994 = vmatprep.subr.mxu0 0.0
  %2995 = vmatpush1.msra.mxu0 0.0
  %2996 = vmatprep.subr.mxu0 0.0
  %2997 = vmatpush1.msra.mxu0 0.0
  %2998 = vmatprep.subr.mxu0 0.0
  %2999 = vmatpush1.msra.mxu0 0.0
  %3000 = vmatprep.subr.mxu0 0.0
  %3001 = vmatpush1.msra.mxu0 0.0
  %3002 = vmatprep.subr.mxu0 0.0
  %3003 = vmatpush1.msra.mxu0 0.0
  %3004 = vmatprep.subr.mxu0 0.0
  %3005 = vmatpush1.msra.mxu0 0.0
  %3006 = vmatprep.subr.mxu0 0.0
  %3007 = vmatpush1.msra.mxu0 0.0
  %3008 = vmatprep.subr.mxu0 0.0
  %3009 = vmatpush1.msra.mxu0 0.0
  %3010 = vmatprep.subr.mxu0 0.0
  %3011 = vmatpush1.msra.mxu0 0.0
  %3012 = vmatprep.subr.mxu0 0.0
  %3013 = vmatpush1.msra.mxu0 0.0
  %3014 = vmatprep.subr.mxu0 0.0
  %3015 = vmatpush1.msra.mxu0 0.0
  %3016 = vmatprep.mubr.f32.mxu0 0.0
  %3017 = vmatmul.mubr.f32.gmra.mrb[0].mxu0 %v2948
  %v3018 = vpop.f32.mrb[0].mxu0
  %v3019 = vadd.f32 %v2941, %v3018
  %v3020 = vpop.f32.mrb[0].mxu0
  %3021 = vmatprep.mubr.f32.mxu0 0.0
  %3022 = vmatmul.mubr.f32.gmra.mrb[0].mxu0 %v2950
  %v3023 = vpop.f32.mrb[0].mxu0
  %v3024 = vadd.f32 %v2946, %v3023
  %v3025 = vpop.f32.mrb[0].mxu0
  %3026 = vdwg.mxu0
  %vm3027 = vcmp.ge.f32.partialorder %v3019, 0.0
  %vm3028 = vcmp.ge.f32.partialorder %v3024, 0.0
  %v3029 = vmul.f32 %v3019, 0.4
  %v3030 = vmul.f32 %v3024, 0.4
  %v3031 = vsel %vm3027, %v3019, %v3029
  %v3032 = vsel %vm3028, %v3024, %v3030
  %v3033 = vadd.f32 %v2700, %v3031
  %v3034 = vmul.f32 %v3033, 0.70710677
  %v3035 = vadd.f32 %v2701, %v3032
  %v3036 = vld [vmem:[%s1 + $0x110] sm:$0xff]
  %v3037 = vld [vmem:[%s1 + $0x118] sm:$0xff]
  %v3038 = vld [vmem:[%s1 + $0x190] sm:$0xff]
  %v3039 = vld [vmem:[%s1 + $0x198] sm:$0xff]
  %v3041 = vsel %vm1701, %v3034, 0
  %3043 = vmatprep.subr.mxu0 0.0
  %3044 = vmatpush1.msra.mxu0 %v54
  %3045 = vmatprep.subr.mxu0 0.0
  %3046 = vmatpush1.msra.mxu0 %v55
  %3047 = vmatprep.subr.mxu0 0.0
  %3048 = vmatpush1.msra.mxu0 %v56
  %3049 = vmatprep.subr.mxu0 0.0
  %3050 = vmatpush1.msra.mxu0 %v57
  %3051 = vmatprep.subr.mxu0 0.0
  %3052 = vmatpush1.msra.mxu0 %v58
  %3053 = vmatprep.subr.mxu0 0.0
  %3054 = vmatpush1.msra.mxu0 0.0
  %3055 = vmatprep.subr.mxu0 0.0
  %3056 = vmatpush1.msra.mxu0 0.0
  %3057 = vmatprep.subr.mxu0 0.0
  %3058 = vmatpush1.msra.mxu0 0.0
  %3059 = vmatprep.subr.mxu0 0.0
  %3060 = vmatpush1.msra.mxu0 0.0
  %3061 = vmatprep.subr.mxu0 0.0
  %3062 = vmatpush1.msra.mxu0 0.0
  %3063 = vmatprep.subr.mxu0 0.0
  %3064 = vmatpush1.msra.mxu0 0.0
  %3065 = vmatprep.subr.mxu0 0.0
  %3066 = vmatpush1.msra.mxu0 0.0
  %3067 = vmatprep.subr.mxu0 0.0
  %3068 = vmatpush1.msra.mxu0 0.0
  %3069 = vmatprep.subr.mxu0 0.0
  %3070 = vmatpush1.msra.mxu0 0.0
  %3071 = vmatprep.subr.mxu0 0.0
  %3072 = vmatpush1.msra.mxu0 0.0
  %3073 = vmatprep.subr.mxu0 0.0
  %3074 = vmatpush1.msra.mxu0 0.0
  %3075 = vmatprep.subr.mxu0 0.0
  %3076 = vmatpush1.msra.mxu0 0.0
  %3077 = vmatprep.subr.mxu0 0.0
  %3078 = vmatpush1.msra.mxu0 0.0
  %3079 = vmatprep.subr.mxu0 0.0
  %3080 = vmatpush1.msra.mxu0 0.0
  %3081 = vmatprep.subr.mxu0 0.0
  %3082 = vmatpush1.msra.mxu0 0.0
  %3083 = vmatprep.subr.mxu0 0.0
  %3084 = vmatpush1.msra.mxu0 0.0
  %3085 = vmatprep.subr.mxu0 0.0
  %3086 = vmatpush1.msra.mxu0 0.0
  %3087 = vmatprep.subr.mxu0 0.0
  %3088 = vmatpush1.msra.mxu0 0.0
  %3089 = vmatprep.subr.mxu0 0.0
  %3090 = vmatpush1.msra.mxu0 0.0
  %3091 = vmatprep.subr.mxu0 0.0
  %3092 = vmatpush1.msra.mxu0 0.0
  %3093 = vmatprep.subr.mxu0 0.0
  %3094 = vmatpush1.msra.mxu0 0.0
  %3095 = vmatprep.subr.mxu0 0.0
  %3096 = vmatpush1.msra.mxu0 0.0
  %3097 = vmatprep.subr.mxu0 0.0
  %3098 = vmatpush1.msra.mxu0 0.0
  %3099 = vmatprep.subr.mxu0 0.0
  %3100 = vmatpush1.msra.mxu0 0.0
  %3101 = vmatprep.subr.mxu0 0.0
  %3102 = vmatpush1.msra.mxu0 0.0
  %3103 = vmatprep.subr.mxu0 0.0
  %3104 = vmatpush1.msra.mxu0 0.0
  %3105 = vmatprep.subr.mxu0 0.0
  %3106 = vmatpush1.msra.mxu0 0.0
  %3107 = vmatprep.mubr.f32.mxu0 0.0
  %3108 = vmatmul.mubr.f32.gmra.mrb[0].mxu0 %v3041
  %v3109 = vpop.f32.mrb[0].mxu0
  %v3110 = vadd.f32 0.0, %v3109
  %v3111 = vpop.f32.mrb[0].mxu0
  %3112 = vdwg.mxu0
  %3113 = vmatprep.subr.mxu0 0.0
  %3114 = vmatpush1.msra.mxu0 %v59
  %3115 = vmatprep.subr.mxu0 0.0
  %3116 = vmatpush1.msra.mxu0 %v60
  %3117 = vmatprep.subr.mxu0 0.0
  %3118 = vmatpush1.msra.mxu0 %v61
  %3119 = vmatprep.subr.mxu0 0.0
  %3120 = vmatpush1.msra.mxu0 %v62
  %3121 = vmatprep.subr.mxu0 0.0
  %3122 = vmatpush1.msra.mxu0 %v63
  %3123 = vmatprep.subr.mxu0 0.0
  %3124 = vmatpush1.msra.mxu0 0.0
  %3125 = vmatprep.subr.mxu0 0.0
  %3126 = vmatpush1.msra.mxu0 0.0
  %3127 = vmatprep.subr.mxu0 0.0
  %3128 = vmatpush1.msra.mxu0 0.0
  %3129 = vmatprep.subr.mxu0 0.0
  %3130 = vmatpush1.msra.mxu0 0.0
  %3131 = vmatprep.subr.mxu0 0.0
  %3132 = vmatpush1.msra.mxu0 0.0
  %3133 = vmatprep.subr.mxu0 0.0
  %3134 = vmatpush1.msra.mxu0 0.0
  %3135 = vmatprep.subr.mxu0 0.0
  %3136 = vmatpush1.msra.mxu0 0.0
  %3137 = vmatprep.subr.mxu0 0.0
  %3138 = vmatpush1.msra.mxu0 0.0
  %3139 = vmatprep.subr.mxu0 0.0
  %3140 = vmatpush1.msra.mxu0 0.0
  %3141 = vmatprep.subr.mxu0 0.0
  %3142 = vmatpush1.msra.mxu0 0.0
  %3143 = vmatprep.subr.mxu0 0.0
  %3144 = vmatpush1.msra.mxu0 0.0
  %3145 = vmatprep.subr.mxu0 0.0
  %3146 = vmatpush1.msra.mxu0 0.0
  %3147 = vmatprep.subr.mxu0 0.0
  %3148 = vmatpush1.msra.mxu0 0.0
  %3149 = vmatprep.subr.mxu0 0.0
  %3150 = vmatpush1.msra.mxu0 0.0
  %3151 = vmatprep.subr.mxu0 0.0
  %3152 = vmatpush1.msra.mxu0 0.0
  %3153 = vmatprep.subr.mxu0 0.0
  %3154 = vmatpush1.msra.mxu0 0.0
  %3155 = vmatprep.subr.mxu0 0.0
  %3156 = vmatpush1.msra.mxu0 0.0
  %3157 = vmatprep.subr.mxu0 0.0
  %3158 = vmatpush1.msra.mxu0 0.0
  %3159 = vmatprep.subr.mxu0 0.0
  %3160 = vmatpush1.msra.mxu0 0.0
  %3161 = vmatprep.subr.mxu0 0.0
  %3162 = vmatpush1.msra.mxu0 0.0
  %3163 = vmatprep.subr.mxu0 0.0
  %3164 = vmatpush1.msra.mxu0 0.0
  %3165 = vmatprep.subr.mxu0 0.0
  %3166 = vmatpush1.msra.mxu0 0.0
  %3167 = vmatprep.subr.mxu0 0.0
  %3168 = vmatpush1.msra.mxu0 0.0
  %3169 = vmatprep.subr.mxu0 0.0
  %3170 = vmatpush1.msra.mxu0 0.0
  %3171 = vmatprep.subr.mxu0 0.0
  %3172 = vmatpush1.msra.mxu0 0.0
  %3173 = vmatprep.subr.mxu0 0.0
  %3174 = vmatpush1.msra.mxu0 0.0
  %3175 = vmatprep.subr.mxu0 0.0
  %3176 = vmatpush1.msra.mxu0 0.0
  %3177 = vmatprep.mubr.f32.mxu0 0.0
  %3178 = vmatmul.mubr.f32.gmra.mrb[0].mxu0 %v3041
  %v3179 = vpop.f32.mrb[0].mxu0
  %v3180 = vadd.f32 0.0, %v3179
  %v3181 = vpop.f32.mrb[0].mxu0
  %3182 = vdwg.mxu0
  %v3184 = vsel %vm1845, %v3036, 0
  %v3187 = vsel %vm1845, %v3037, 0
  %3189 = vmatprep.subr.mxu0 0.0
  %3190 = vmatpush1.msra.mxu0 %v3110
  %3191 = vmatprep.subr.mxu0 0.0
  %3192 = vmatpush1.msra.mxu0 %v3034
  %3193 = vmatprep.subr.mxu0 0.0
  %3194 = vmatpush1.msra.mxu0 %v3180
  %3195 = vmatprep.subr.mxu0 0.0
  %3196 = vmatpush1.msra.mxu0 0.0
  %3197 = vmatprep.subr.mxu0 0.0
  %3198 = vmatpush1.msra.mxu0 0.0
  %3199 = vmatprep.subr.mxu0 0.0
  %3200 = vmatpush1.msra.mxu0 0.0
  %3201 = vmatprep.subr.mxu0 0.0
  %3202 = vmatpush1.msra.mxu0 0.0
  %3203 = vmatprep.subr.mxu0 0.0
  %3204 = vmatpush1.msra.mxu0 0.0
  %3205 = vmatprep.subr.mxu0 0.0
  %3206 = vmatpush1.msra.mxu0 0.0
  %3207 = vmatprep.subr.mxu0 0.0
  %3208 = vmatpush1.msra.mxu0 0.0
  %3209 = vmatprep.subr.mxu0 0.0
  %3210 = vmatpush1.msra.mxu0 0.0
  %3211 = vmatprep.subr.mxu0 0.0
  %3212 = vmatpush1.msra.mxu0 0.0
  %3213 = vmatprep.subr.mxu0 0.0
  %3214 = vmatpush1.msra.mxu0 0.0
  %3215 = vmatprep.subr.mxu0 0.0
  %3216 = vmatpush1.msra.mxu0 0.0
  %3217 = vmatprep.subr.mxu0 0.0
  %3218 = vmatpush1.msra.mxu0 0.0
  %3219 = vmatprep.subr.mxu0 0.0
  %3220 = vmatpush1.msra.mxu0 0.0
  %3221 = vmatprep.subr.mxu0 0.0
  %3222 = vmatpush1.msra.mxu0 0.0
  %3223 = vmatprep.subr.mxu0 0.0
  %3224 = vmatpush1.msra.mxu0 0.0
  %3225 = vmatprep.subr.mxu0 0.0
  %3226 = vmatpush1.msra.mxu0 0.0
  %3227 = vmatprep.subr.mxu0 0.0
  %3228 = vmatpush1.msra.mxu0 0.0
  %3229 = vmatprep.subr.mxu0 0.0
  %3230 = vmatpush1.msra.mxu0 0.0
  %3231 = vmatprep.subr.mxu0 0.0
  %3232 = vmatpush1.msra.mxu0 0.0
  %3233 = vmatprep.subr.mxu0 0.0
  %3234 = vmatpush1.msra.mxu0 0.0
  %3235 = vmatprep.subr.mxu0 0.0
  %3236 = vmatpush1.msra.mxu0 0.0
  %3237 = vmatprep.subr.mxu0 0.0
  %3238 = vmatpush1.msra.mxu0 0.0
  %3239 = vmatprep.subr.mxu0 0.0
  %3240 = vmatpush1.msra.mxu0 0.0
  %3241 = vmatprep.subr.mxu0 0.0
  %3242 = vmatpush1.msra.mxu0 0.0
  %3243 = vmatprep.subr.mxu0 0.0
  %3244 = vmatpush1.msra.mxu0 0.0
  %3245 = vmatprep.subr.mxu0 0.0
  %3246 = vmatpush1.msra.mxu0 0.0
  %3247 = vmatprep.subr.mxu0 0.0
  %3248 = vmatpush1.msra.mxu0 0.0
  %3249 = vmatprep.subr.mxu0 0.0
  %3250 = vmatpush1.msra.mxu0 0.0
  %3251 = vmatprep.subr.mxu0 0.0
  %3252 = vmatpush1.msra.mxu0 0.0
  %3253 = vmatprep.mubr.f32.mxu0 0.0
  %3254 = vmatmul.mubr.f32.gmra.mrb[0].mxu0 %v3184
  %v3255 = vpop.f32.mrb[0].mxu0
  %v3256 = vadd.f32 %v1689, %v3255
  %v3257 = vpop.f32.mrb[0].mxu0
  %3258 = vmatprep.mubr.f32.mxu0 0.0
  %3259 = vmatmul.mubr.f32.gmra.mrb[0].mxu0 %v3187
  %v3260 = vpop.f32.mrb[0].mxu0
  %v3261 = vadd.f32 %v1690, %v3260
  %v3262 = vpop.f32.mrb[0].mxu0
  %3263 = vdwg.mxu0
  %v3264 = vxor.u32 %v3256, 2147483648
  %v3265 = vmul.f32 %v3264, 1.442695
  %v3266 = vpow.pop %v3265
  %v3267 = vadd.f32 %v3266, 1.0
  %v3268 = vrcp.pop %v3267
  %v3269 = vmul.f32 1.0, %v3268
  %v3270 = vtanh.pop %v3261
  %v3271 = vmul.f32 %v3269, %v3270
  %3273 = vset.pattern.permute.xlu0 8
  %3274 = vperm.xlu0 %3273, %v3038
  %v3275 = vpop.permute.xlu0 %3274
  %3278 = vset.pattern.permute.xlu0 8
  %3279 = vperm.xlu0 %3278, %v3039
  %v3280 = vpop.permute.xlu0 %3279
  %v3282 = vsel %vm1945, %v3038, 0
  %v3284 = vsel %vm1945, %v3039, 0
  %3286 = vmatprep.subr.mxu0 0.0
  %3287 = vmatpush1.msra.mxu0 %v3271
  %3288 = vmatprep.subr.mxu0 0.0
  %3289 = vmatpush1.msra.mxu0 0.0
  %3290 = vmatprep.subr.mxu0 0.0
  %3291 = vmatpush1.msra.mxu0 0.0
  %3292 = vmatprep.subr.mxu0 0.0
  %3293 = vmatpush1.msra.mxu0 0.0
  %3294 = vmatprep.subr.mxu0 0.0
  %3295 = vmatpush1.msra.mxu0 0.0
  %3296 = vmatprep.subr.mxu0 0.0
  %3297 = vmatpush1.msra.mxu0 0.0
  %3298 = vmatprep.subr.mxu0 0.0
  %3299 = vmatpush1.msra.mxu0 0.0
  %3300 = vmatprep.subr.mxu0 0.0
  %3301 = vmatpush1.msra.mxu0 0.0
  %3302 = vmatprep.subr.mxu0 0.0
  %3303 = vmatpush1.msra.mxu0 0.0
  %3304 = vmatprep.subr.mxu0 0.0
  %3305 = vmatpush1.msra.mxu0 0.0
  %3306 = vmatprep.subr.mxu0 0.0
  %3307 = vmatpush1.msra.mxu0 0.0
  %3308 = vmatprep.subr.mxu0 0.0
  %3309 = vmatpush1.msra.mxu0 0.0
  %3310 = vmatprep.subr.mxu0 0.0
  %3311 = vmatpush1.msra.mxu0 0.0
  %3312 = vmatprep.subr.mxu0 0.0
  %3313 = vmatpush1.msra.mxu0 0.0
  %3314 = vmatprep.subr.mxu0 0.0
  %3315 = vmatpush1.msra.mxu0 0.0
  %3316 = vmatprep.subr.mxu0 0.0
  %3317 = vmatpush1.msra.mxu0 0.0
  %3318 = vmatprep.subr.mxu0 0.0
  %3319 = vmatpush1.msra.mxu0 0.0
  %3320 = vmatprep.subr.mxu0 0.0
  %3321 = vmatpush1.msra.mxu0 0.0
  %3322 = vmatprep.subr.mxu0 0.0
  %3323 = vmatpush1.msra.mxu0 0.0
  %3324 = vmatprep.subr.mxu0 0.0
  %3325 = vmatpush1.msra.mxu0 0.0
  %3326 = vmatprep.subr.mxu0 0.0
  %3327 = vmatpush1.msra.mxu0 0.0
  %3328 = vmatprep.subr.mxu0 0.0
  %3329 = vmatpush1.msra.mxu0 0.0
  %3330 = vmatprep.subr.mxu0 0.0
  %3331 = vmatpush1.msra.mxu0 0.0
  %3332 = vmatprep.subr.mxu0 0.0
  %3333 = vmatpush1.msra.mxu0 0.0
  %3334 = vmatprep.subr.mxu0 0.0
  %3335 = vmatpush1.msra.mxu0 0.0
  %3336 = vmatprep.subr.mxu0 0.0
  %3337 = vmatpush1.msra.mxu0 0.0
  %3338 = vmatprep.subr.mxu0 0.0
  %3339 = vmatpush1.msra.mxu0 0.0
  %3340 = vmatprep.subr.mxu0 0.0
  %3341 = vmatpush1.msra.mxu0 0.0
  %3342 = vmatprep.subr.mxu0 0.0
  %3343 = vmatpush1.msra.mxu0 0.0
  %3344 = vmatprep.subr.mxu0 0.0
  %3345 = vmatpush1.msra.mxu0 0.0
  %3346 = vmatprep.subr.mxu0 0.0
  %3347 = vmatpush1.msra.mxu0 0.0
  %3348 = vmatprep.subr.mxu0 0.0
  %3349 = vmatpush1.msra.mxu0 0.0
  %3350 = vmatprep.mubr.f32.mxu0 0.0
  %3351 = vmatmul.mubr.f32.gmra.mrb[0].mxu0 %v3282
  %v3352 = vpop.f32.mrb[0].mxu0
  %v3353 = vadd.f32 %v3275, %v3352
  %v3354 = vpop.f32.mrb[0].mxu0
  %3355 = vmatprep.mubr.f32.mxu0 0.0
  %3356 = vmatmul.mubr.f32.gmra.mrb[0].mxu0 %v3284
  %v3357 = vpop.f32.mrb[0].mxu0
  %v3358 = vadd.f32 %v3280, %v3357
  %v3359 = vpop.f32.mrb[0].mxu0
  %3360 = vdwg.mxu0
  %vm3361 = vcmp.ge.f32.partialorder %v3353, 0.0
  %vm3362 = vcmp.ge.f32.partialorder %v3358, 0.0
  %v3363 = vmul.f32 %v3353, 0.4
  %v3364 = vmul.f32 %v3358, 0.4
  %v3365 = vsel %vm3361, %v3353, %v3363
  %v3366 = vsel %vm3362, %v3358, %v3364
  %v3367 = vadd.f32 %v3034, %v3365
  %v3368 = vmul.f32 %v3367, 0.70710677
  %v3369 = vadd.f32 %v3035, %v3366
  %v3370 = vld [vmem:[%s1 + $0x120] sm:$0xff]
  %v3371 = vld [vmem:[%s1 + $0x128] sm:$0xff]
  %v3372 = vld [vmem:[%s1 + $0x1a0] sm:$0xff]
  %v3373 = vld [vmem:[%s1 + $0x1a8] sm:$0xff]
  %v3375 = vsel %vm1701, %v3368, 0
  %3377 = vmatprep.subr.mxu0 0.0
  %3378 = vmatpush1.msra.mxu0 %v64
  %3379 = vmatprep.subr.mxu0 0.0
  %3380 = vmatpush1.msra.mxu0 %v65
  %3381 = vmatprep.subr.mxu0 0.0
  %3382 = vmatpush1.msra.mxu0 %v66
  %3383 = vmatprep.subr.mxu0 0.0
  %3384 = vmatpush1.msra.mxu0 %v67
  %3385 = vmatprep.subr.mxu0 0.0
  %3386 = vmatpush1.msra.mxu0 %v68
  %3387 = vmatprep.subr.mxu0 0.0
  %3388 = vmatpush1.msra.mxu0 0.0
  %3389 = vmatprep.subr.mxu0 0.0
  %3390 = vmatpush1.msra.mxu0 0.0
  %3391 = vmatprep.subr.mxu0 0.0
  %3392 = vmatpush1.msra.mxu0 0.0
  %3393 = vmatprep.subr.mxu0 0.0
  %3394 = vmatpush1.msra.mxu0 0.0
  %3395 = vmatprep.subr.mxu0 0.0
  %3396 = vmatpush1.msra.mxu0 0.0
  %3397 = vmatprep.subr.mxu0 0.0
  %3398 = vmatpush1.msra.mxu0 0.0
  %3399 = vmatprep.subr.mxu0 0.0
  %3400 = vmatpush1.msra.mxu0 0.0
  %3401 = vmatprep.subr.mxu0 0.0
  %3402 = vmatpush1.msra.mxu0 0.0
  %3403 = vmatprep.subr.mxu0 0.0
  %3404 = vmatpush1.msra.mxu0 0.0
  %3405 = vmatprep.subr.mxu0 0.0
  %3406 = vmatpush1.msra.mxu0 0.0
  %3407 = vmatprep.subr.mxu0 0.0
  %3408 = vmatpush1.msra.mxu0 0.0
  %3409 = vmatprep.subr.mxu0 0.0
  %3410 = vmatpush1.msra.mxu0 0.0
  %3411 = vmatprep.subr.mxu0 0.0
  %3412 = vmatpush1.msra.mxu0 0.0
  %3413 = vmatprep.subr.mxu0 0.0
  %3414 = vmatpush1.msra.mxu0 0.0
  %3415 = vmatprep.subr.mxu0 0.0
  %3416 = vmatpush1.msra.mxu0 0.0
  %3417 = vmatprep.subr.mxu0 0.0
  %3418 = vmatpush1.msra.mxu0 0.0
  %3419 = vmatprep.subr.mxu0 0.0
  %3420 = vmatpush1.msra.mxu0 0.0
  %3421 = vmatprep.subr.mxu0 0.0
  %3422 = vmatpush1.msra.mxu0 0.0
  %3423 = vmatprep.subr.mxu0 0.0
  %3424 = vmatpush1.msra.mxu0 0.0
  %3425 = vmatprep.subr.mxu0 0.0
  %3426 = vmatpush1.msra.mxu0 0.0
  %3427 = vmatprep.subr.mxu0 0.0
  %3428 = vmatpush1.msra.mxu0 0.0
  %3429 = vmatprep.subr.mxu0 0.0
  %3430 = vmatpush1.msra.mxu0 0.0
  %3431 = vmatprep.subr.mxu0 0.0
  %3432 = vmatpush1.msra.mxu0 0.0
  %3433 = vmatprep.subr.mxu0 0.0
  %3434 = vmatpush1.msra.mxu0 0.0
  %3435 = vmatprep.subr.mxu0 0.0
  %3436 = vmatpush1.msra.mxu0 0.0
  %3437 = vmatprep.subr.mxu0 0.0
  %3438 = vmatpush1.msra.mxu0 0.0
  %3439 = vmatprep.subr.mxu0 0.0
  %3440 = vmatpush1.msra.mxu0 0.0
  %3441 = vmatprep.mubr.f32.mxu0 0.0
  %3442 = vmatmul.mubr.f32.gmra.mrb[0].mxu0 %v3375
  %v3443 = vpop.f32.mrb[0].mxu0
  %v3444 = vadd.f32 0.0, %v3443
  %v3445 = vpop.f32.mrb[0].mxu0
  %3446 = vdwg.mxu0
  %3447 = vmatprep.subr.mxu0 0.0
  %3448 = vmatpush1.msra.mxu0 %v69
  %3449 = vmatprep.subr.mxu0 0.0
  %3450 = vmatpush1.msra.mxu0 %v70
  %3451 = vmatprep.subr.mxu0 0.0
  %3452 = vmatpush1.msra.mxu0 %v71
  %3453 = vmatprep.subr.mxu0 0.0
  %3454 = vmatpush1.msra.mxu0 %v72
  %3455 = vmatprep.subr.mxu0 0.0
  %3456 = vmatpush1.msra.mxu0 %v73
  %3457 = vmatprep.subr.mxu0 0.0
  %3458 = vmatpush1.msra.mxu0 0.0
  %3459 = vmatprep.subr.mxu0 0.0
  %3460 = vmatpush1.msra.mxu0 0.0
  %3461 = vmatprep.subr.mxu0 0.0
  %3462 = vmatpush1.msra.mxu0 0.0
  %3463 = vmatprep.subr.mxu0 0.0
  %3464 = vmatpush1.msra.mxu0 0.0
  %3465 = vmatprep.subr.mxu0 0.0
  %3466 = vmatpush1.msra.mxu0 0.0
  %3467 = vmatprep.subr.mxu0 0.0
  %3468 = vmatpush1.msra.mxu0 0.0
  %3469 = vmatprep.subr.mxu0 0.0
  %3470 = vmatpush1.msra.mxu0 0.0
  %3471 = vmatprep.subr.mxu0 0.0
  %3472 = vmatpush1.msra.mxu0 0.0
  %3473 = vmatprep.subr.mxu0 0.0
  %3474 = vmatpush1.msra.mxu0 0.0
  %3475 = vmatprep.subr.mxu0 0.0
  %3476 = vmatpush1.msra.mxu0 0.0
  %3477 = vmatprep.subr.mxu0 0.0
  %3478 = vmatpush1.msra.mxu0 0.0
  %3479 = vmatprep.subr.mxu0 0.0
  %3480 = vmatpush1.msra.mxu0 0.0
  %3481 = vmatprep.subr.mxu0 0.0
  %3482 = vmatpush1.msra.mxu0 0.0
  %3483 = vmatprep.subr.mxu0 0.0
  %3484 = vmatpush1.msra.mxu0 0.0
  %3485 = vmatprep.subr.mxu0 0.0
  %3486 = vmatpush1.msra.mxu0 0.0
  %3487 = vmatprep.subr.mxu0 0.0
  %3488 = vmatpush1.msra.mxu0 0.0
  %3489 = vmatprep.subr.mxu0 0.0
  %3490 = vmatpush1.msra.mxu0 0.0
  %3491 = vmatprep.subr.mxu0 0.0
  %3492 = vmatpush1.msra.mxu0 0.0
  %3493 = vmatprep.subr.mxu0 0.0
  %3494 = vmatpush1.msra.mxu0 0.0
  %3495 = vmatprep.subr.mxu0 0.0
  %3496 = vmatpush1.msra.mxu0 0.0
  %3497 = vmatprep.subr.mxu0 0.0
  %3498 = vmatpush1.msra.mxu0 0.0
  %3499 = vmatprep.subr.mxu0 0.0
  %3500 = vmatpush1.msra.mxu0 0.0
  %3501 = vmatprep.subr.mxu0 0.0
  %3502 = vmatpush1.msra.mxu0 0.0
  %3503 = vmatprep.subr.mxu0 0.0
  %3504 = vmatpush1.msra.mxu0 0.0
  %3505 = vmatprep.subr.mxu0 0.0
  %3506 = vmatpush1.msra.mxu0 0.0
  %3507 = vmatprep.subr.mxu0 0.0
  %3508 = vmatpush1.msra.mxu0 0.0
  %3509 = vmatprep.subr.mxu0 0.0
  %3510 = vmatpush1.msra.mxu0 0.0
  %3511 = vmatprep.mubr.f32.mxu0 0.0
  %3512 = vmatmul.mubr.f32.gmra.mrb[0].mxu0 %v3375
  %v3513 = vpop.f32.mrb[0].mxu0
  %v3514 = vadd.f32 0.0, %v3513
  %v3515 = vpop.f32.mrb[0].mxu0
  %3516 = vdwg.mxu0
  %v3518 = vsel %vm1845, %v3370, 0
  %v3521 = vsel %vm1845, %v3371, 0
  %3523 = vmatprep.subr.mxu0 0.0
  %3524 = vmatpush1.msra.mxu0 %v3444
  %3525 = vmatprep.subr.mxu0 0.0
  %3526 = vmatpush1.msra.mxu0 %v3368
  %3527 = vmatprep.subr.mxu0 0.0
  %3528 = vmatpush1.msra.mxu0 %v3514
  %3529 = vmatprep.subr.mxu0 0.0
  %3530 = vmatpush1.msra.mxu0 0.0
  %3531 = vmatprep.subr.mxu0 0.0
  %3532 = vmatpush1.msra.mxu0 0.0
  %3533 = vmatprep.subr.mxu0 0.0
  %3534 = vmatpush1.msra.mxu0 0.0
  %3535 = vmatprep.subr.mxu0 0.0
  %3536 = vmatpush1.msra.mxu0 0.0
  %3537 = vmatprep.subr.mxu0 0.0
  %3538 = vmatpush1.msra.mxu0 0.0
  %3539 = vmatprep.subr.mxu0 0.0
  %3540 = vmatpush1.msra.mxu0 0.0
  %3541 = vmatprep.subr.mxu0 0.0
  %3542 = vmatpush1.msra.mxu0 0.0
  %3543 = vmatprep.subr.mxu0 0.0
  %3544 = vmatpush1.msra.mxu0 0.0
  %3545 = vmatprep.subr.mxu0 0.0
  %3546 = vmatpush1.msra.mxu0 0.0
  %3547 = vmatprep.subr.mxu0 0.0
  %3548 = vmatpush1.msra.mxu0 0.0
  %3549 = vmatprep.subr.mxu0 0.0
  %3550 = vmatpush1.msra.mxu0 0.0
  %3551 = vmatprep.subr.mxu0 0.0
  %3552 = vmatpush1.msra.mxu0 0.0
  %3553 = vmatprep.subr.mxu0 0.0
  %3554 = vmatpush1.msra.mxu0 0.0
  %3555 = vmatprep.subr.mxu0 0.0
  %3556 = vmatpush1.msra.mxu0 0.0
  %3557 = vmatprep.subr.mxu0 0.0
  %3558 = vmatpush1.msra.mxu0 0.0
  %3559 = vmatprep.subr.mxu0 0.0
  %3560 = vmatpush1.msra.mxu0 0.0
  %3561 = vmatprep.subr.mxu0 0.0
  %3562 = vmatpush1.msra.mxu0 0.0
  %3563 = vmatprep.subr.mxu0 0.0
  %3564 = vmatpush1.msra.mxu0 0.0
  %3565 = vmatprep.subr.mxu0 0.0
  %3566 = vmatpush1.msra.mxu0 0.0
  %3567 = vmatprep.subr.mxu0 0.0
  %3568 = vmatpush1.msra.mxu0 0.0
  %3569 = vmatprep.subr.mxu0 0.0
  %3570 = vmatpush1.msra.mxu0 0.0
  %3571 = vmatprep.subr.mxu0 0.0
  %3572 = vmatpush1.msra.mxu0 0.0
  %3573 = vmatprep.subr.mxu0 0.0
  %3574 = vmatpush1.msra.mxu0 0.0
  %3575 = vmatprep.subr.mxu0 0.0
  %3576 = vmatpush1.msra.mxu0 0.0
  %3577 = vmatprep.subr.mxu0 0.0
  %3578 = vmatpush1.msra.mxu0 0.0
  %3579 = vmatprep.subr.mxu0 0.0
  %3580 = vmatpush1.msra.mxu0 0.0
  %3581 = vmatprep.subr.mxu0 0.0
  %3582 = vmatpush1.msra.mxu0 0.0
  %3583 = vmatprep.subr.mxu0 0.0
  %3584 = vmatpush1.msra.mxu0 0.0
  %3585 = vmatprep.subr.mxu0 0.0
  %3586 = vmatpush1.msra.mxu0 0.0
  %3587 = vmatprep.mubr.f32.mxu0 0.0
  %3588 = vmatmul.mubr.f32.gmra.mrb[0].mxu0 %v3518
  %v3589 = vpop.f32.mrb[0].mxu0
  %v3590 = vadd.f32 %v1691, %v3589
  %v3591 = vpop.f32.mrb[0].mxu0
  %3592 = vmatprep.mubr.f32.mxu0 0.0
  %3593 = vmatmul.mubr.f32.gmra.mrb[0].mxu0 %v3521
  %v3594 = vpop.f32.mrb[0].mxu0
  %v3595 = vadd.f32 %v1692, %v3594
  %v3596 = vpop.f32.mrb[0].mxu0
  %3597 = vdwg.mxu0
  %v3598 = vxor.u32 %v3590, 2147483648
  %v3599 = vmul.f32 %v3598, 1.442695
  %v3600 = vpow.pop %v3599
  %v3601 = vadd.f32 %v3600, 1.0
  %v3602 = vrcp.pop %v3601
  %v3603 = vmul.f32 1.0, %v3602
  %v3604 = vtanh.pop %v3595
  %v3605 = vmul.f32 %v3603, %v3604
  %3607 = vset.pattern.permute.xlu0 8
  %3608 = vperm.xlu0 %3607, %v3372
  %v3609 = vpop.permute.xlu0 %3608
  %3612 = vset.pattern.permute.xlu0 8
  %3613 = vperm.xlu0 %3612, %v3373
  %v3614 = vpop.permute.xlu0 %3613
  %v3616 = vsel %vm1945, %v3372, 0
  %v3618 = vsel %vm1945, %v3373, 0
  %3620 = vmatprep.subr.mxu0 0.0
  %3621 = vmatpush1.msra.mxu0 %v3605
  %3622 = vmatprep.subr.mxu0 0.0
  %3623 = vmatpush1.msra.mxu0 0.0
  %3624 = vmatprep.subr.mxu0 0.0
  %3625 = vmatpush1.msra.mxu0 0.0
  %3626 = vmatprep.subr.mxu0 0.0
  %3627 = vmatpush1.msra.mxu0 0.0
  %3628 = vmatprep.subr.mxu0 0.0
  %3629 = vmatpush1.msra.mxu0 0.0
  %3630 = vmatprep.subr.mxu0 0.0
  %3631 = vmatpush1.msra.mxu0 0.0
  %3632 = vmatprep.subr.mxu0 0.0
  %3633 = vmatpush1.msra.mxu0 0.0
  %3634 = vmatprep.subr.mxu0 0.0
  %3635 = vmatpush1.msra.mxu0 0.0
  %3636 = vmatprep.subr.mxu0 0.0
  %3637 = vmatpush1.msra.mxu0 0.0
  %3638 = vmatprep.subr.mxu0 0.0
  %3639 = vmatpush1.msra.mxu0 0.0
  %3640 = vmatprep.subr.mxu0 0.0
  %3641 = vmatpush1.msra.mxu0 0.0
  %3642 = vmatprep.subr.mxu0 0.0
  %3643 = vmatpush1.msra.mxu0 0.0
  %3644 = vmatprep.subr.mxu0 0.0
  %3645 = vmatpush1.msra.mxu0 0.0
  %3646 = vmatprep.subr.mxu0 0.0
  %3647 = vmatpush1.msra.mxu0 0.0
  %3648 = vmatprep.subr.mxu0 0.0
  %3649 = vmatpush1.msra.mxu0 0.0
  %3650 = vmatprep.subr.mxu0 0.0
  %3651 = vmatpush1.msra.mxu0 0.0
  %3652 = vmatprep.subr.mxu0 0.0
  %3653 = vmatpush1.msra.mxu0 0.0
  %3654 = vmatprep.subr.mxu0 0.0
  %3655 = vmatpush1.msra.mxu0 0.0
  %3656 = vmatprep.subr.mxu0 0.0
  %3657 = vmatpush1.msra.mxu0 0.0
  %3658 = vmatprep.subr.mxu0 0.0
  %3659 = vmatpush1.msra.mxu0 0.0
  %3660 = vmatprep.subr.mxu0 0.0
  %3661 = vmatpush1.msra.mxu0 0.0
  %3662 = vmatprep.subr.mxu0 0.0
  %3663 = vmatpush1.msra.mxu0 0.0
  %3664 = vmatprep.subr.mxu0 0.0
  %3665 = vmatpush1.msra.mxu0 0.0
  %3666 = vmatprep.subr.mxu0 0.0
  %3667 = vmatpush1.msra.mxu0 0.0
  %3668 = vmatprep.subr.mxu0 0.0
  %3669 = vmatpush1.msra.mxu0 0.0
  %3670 = vmatprep.subr.mxu0 0.0
  %3671 = vmatpush1.msra.mxu0 0.0
  %3672 = vmatprep.subr.mxu0 0.0
  %3673 = vmatpush1.msra.mxu0 0.0
  %3674 = vmatprep.subr.mxu0 0.0
  %3675 = vmatpush1.msra.mxu0 0.0
  %3676 = vmatprep.subr.mxu0 0.0
  %3677 = vmatpush1.msra.mxu0 0.0
  %3678 = vmatprep.subr.mxu0 0.0
  %3679 = vmatpush1.msra.mxu0 0.0
  %3680 = vmatprep.subr.mxu0 0.0
  %3681 = vmatpush1.msra.mxu0 0.0
  %3682 = vmatprep.subr.mxu0 0.0
  %3683 = vmatpush1.msra.mxu0 0.0
  %3684 = vmatprep.mubr.f32.mxu0 0.0
  %3685 = vmatmul.mubr.f32.gmra.mrb[0].mxu0 %v3616
  %v3686 = vpop.f32.mrb[0].mxu0
  %v3687 = vadd.f32 %v3609, %v3686
  %v3688 = vpop.f32.mrb[0].mxu0
  %3689 = vmatprep.mubr.f32.mxu0 0.0
  %3690 = vmatmul.mubr.f32.gmra.mrb[0].mxu0 %v3618
  %v3691 = vpop.f32.mrb[0].mxu0
  %v3692 = vadd.f32 %v3614, %v3691
  %v3693 = vpop.f32.mrb[0].mxu0
  %3694 = vdwg.mxu0
  %vm3695 = vcmp.ge.f32.partialorder %v3687, 0.0
  %vm3696 = vcmp.ge.f32.partialorder %v3692, 0.0
  %v3697 = vmul.f32 %v3687, 0.4
  %v3698 = vmul.f32 %v3692, 0.4
  %v3699 = vsel %vm3695, %v3687, %v3697
  %v3700 = vsel %vm3696, %v3692, %v3698
  %v3701 = vadd.f32 %v3368, %v3699
  %v3702 = vmul.f32 %v3701, 0.70710677
  %v3703 = vadd.f32 %v3369, %v3700
  %v3704 = vld [vmem:[%s1 + $0x130] sm:$0xff]
  %v3705 = vld [vmem:[%s1 + $0x138] sm:$0xff]
  %v3706 = vld [vmem:[%s1 + $0x1b0] sm:$0xff]
  %v3707 = vld [vmem:[%s1 + $0x1b8] sm:$0xff]
  %v3709 = vsel %vm1701, %v3702, 0
  %3711 = vmatprep.subr.mxu0 0.0
  %3712 = vmatpush1.msra.mxu0 %v54
  %3713 = vmatprep.subr.mxu0 0.0
  %3714 = vmatpush1.msra.mxu0 %v55
  %3715 = vmatprep.subr.mxu0 0.0
  %3716 = vmatpush1.msra.mxu0 %v56
  %3717 = vmatprep.subr.mxu0 0.0
  %3718 = vmatpush1.msra.mxu0 %v57
  %3719 = vmatprep.subr.mxu0 0.0
  %3720 = vmatpush1.msra.mxu0 %v58
  %3721 = vmatprep.subr.mxu0 0.0
  %3722 = vmatpush1.msra.mxu0 0.0
  %3723 = vmatprep.subr.mxu0 0.0
  %3724 = vmatpush1.msra.mxu0 0.0
  %3725 = vmatprep.subr.mxu0 0.0
  %3726 = vmatpush1.msra.mxu0 0.0
  %3727 = vmatprep.subr.mxu0 0.0
  %3728 = vmatpush1.msra.mxu0 0.0
  %3729 = vmatprep.subr.mxu0 0.0
  %3730 = vmatpush1.msra.mxu0 0.0
  %3731 = vmatprep.subr.mxu0 0.0
  %3732 = vmatpush1.msra.mxu0 0.0
  %3733 = vmatprep.subr.mxu0 0.0
  %3734 = vmatpush1.msra.mxu0 0.0
  %3735 = vmatprep.subr.mxu0 0.0
  %3736 = vmatpush1.msra.mxu0 0.0
  %3737 = vmatprep.subr.mxu0 0.0
  %3738 = vmatpush1.msra.mxu0 0.0
  %3739 = vmatprep.subr.mxu0 0.0
  %3740 = vmatpush1.msra.mxu0 0.0
  %3741 = vmatprep.subr.mxu0 0.0
  %3742 = vmatpush1.msra.mxu0 0.0
  %3743 = vmatprep.subr.mxu0 0.0
  %3744 = vmatpush1.msra.mxu0 0.0
  %3745 = vmatprep.subr.mxu0 0.0
  %3746 = vmatpush1.msra.mxu0 0.0
  %3747 = vmatprep.subr.mxu0 0.0
  %3748 = vmatpush1.msra.mxu0 0.0
  %3749 = vmatprep.subr.mxu0 0.0
  %3750 = vmatpush1.msra.mxu0 0.0
  %3751 = vmatprep.subr.mxu0 0.0
  %3752 = vmatpush1.msra.mxu0 0.0
  %3753 = vmatprep.subr.mxu0 0.0
  %3754 = vmatpush1.msra.mxu0 0.0
  %3755 = vmatprep.subr.mxu0 0.0
  %3756 = vmatpush1.msra.mxu0 0.0
  %3757 = vmatprep.subr.mxu0 0.0
  %3758 = vmatpush1.msra.mxu0 0.0
  %3759 = vmatprep.subr.mxu0 0.0
  %3760 = vmatpush1.msra.mxu0 0.0
  %3761 = vmatprep.subr.mxu0 0.0
  %3762 = vmatpush1.msra.mxu0 0.0
  %3763 = vmatprep.subr.mxu0 0.0
  %3764 = vmatpush1.msra.mxu0 0.0
  %3765 = vmatprep.subr.mxu0 0.0
  %3766 = vmatpush1.msra.mxu0 0.0
  %3767 = vmatprep.subr.mxu0 0.0
  %3768 = vmatpush1.msra.mxu0 0.0
  %3769 = vmatprep.subr.mxu0 0.0
  %3770 = vmatpush1.msra.mxu0 0.0
  %3771 = vmatprep.subr.mxu0 0.0
  %3772 = vmatpush1.msra.mxu0 0.0
  %3773 = vmatprep.subr.mxu0 0.0
  %3774 = vmatpush1.msra.mxu0 0.0
  %3775 = vmatprep.mubr.f32.mxu0 0.0
  %3776 = vmatmul.mubr.f32.gmra.mrb[0].mxu0 %v3709
  %v3777 = vpop.f32.mrb[0].mxu0
  %v3778 = vadd.f32 0.0, %v3777
  %v3779 = vpop.f32.mrb[0].mxu0
  %3780 = vdwg.mxu0
  %3781 = vmatprep.subr.mxu0 0.0
  %3782 = vmatpush1.msra.mxu0 %v59
  %3783 = vmatprep.subr.mxu0 0.0
  %3784 = vmatpush1.msra.mxu0 %v60
  %3785 = vmatprep.subr.mxu0 0.0
  %3786 = vmatpush1.msra.mxu0 %v61
  %3787 = vmatprep.subr.mxu0 0.0
  %3788 = vmatpush1.msra.mxu0 %v62
  %3789 = vmatprep.subr.mxu0 0.0
  %3790 = vmatpush1.msra.mxu0 %v63
  %3791 = vmatprep.subr.mxu0 0.0
  %3792 = vmatpush1.msra.mxu0 0.0
  %3793 = vmatprep.subr.mxu0 0.0
  %3794 = vmatpush1.msra.mxu0 0.0
  %3795 = vmatprep.subr.mxu0 0.0
  %3796 = vmatpush1.msra.mxu0 0.0
  %3797 = vmatprep.subr.mxu0 0.0
  %3798 = vmatpush1.msra.mxu0 0.0
  %3799 = vmatprep.subr.mxu0 0.0
  %3800 = vmatpush1.msra.mxu0 0.0
  %3801 = vmatprep.subr.mxu0 0.0
  %3802 = vmatpush1.msra.mxu0 0.0
  %3803 = vmatprep.subr.mxu0 0.0
  %3804 = vmatpush1.msra.mxu0 0.0
  %3805 = vmatprep.subr.mxu0 0.0
  %3806 = vmatpush1.msra.mxu0 0.0
  %3807 = vmatprep.subr.mxu0 0.0
  %3808 = vmatpush1.msra.mxu0 0.0
  %3809 = vmatprep.subr.mxu0 0.0
  %3810 = vmatpush1.msra.mxu0 0.0
  %3811 = vmatprep.subr.mxu0 0.0
  %3812 = vmatpush1.msra.mxu0 0.0
  %3813 = vmatprep.subr.mxu0 0.0
  %3814 = vmatpush1.msra.mxu0 0.0
  %3815 = vmatprep.subr.mxu0 0.0
  %3816 = vmatpush1.msra.mxu0 0.0
  %3817 = vmatprep.subr.mxu0 0.0
  %3818 = vmatpush1.msra.mxu0 0.0
  %3819 = vmatprep.subr.mxu0 0.0
  %3820 = vmatpush1.msra.mxu0 0.0
  %3821 = vmatprep.subr.mxu0 0.0
  %3822 = vmatpush1.msra.mxu0 0.0
  %3823 = vmatprep.subr.mxu0 0.0
  %3824 = vmatpush1.msra.mxu0 0.0
  %3825 = vmatprep.subr.mxu0 0.0
  %3826 = vmatpush1.msra.mxu0 0.0
  %3827 = vmatprep.subr.mxu0 0.0
  %3828 = vmatpush1.msra.mxu0 0.0
  %3829 = vmatprep.subr.mxu0 0.0
  %3830 = vmatpush1.msra.mxu0 0.0
  %3831 = vmatprep.subr.mxu0 0.0
  %3832 = vmatpush1.msra.mxu0 0.0
  %3833 = vmatprep.subr.mxu0 0.0
  %3834 = vmatpush1.msra.mxu0 0.0
  %3835 = vmatprep.subr.mxu0 0.0
  %3836 = vmatpush1.msra.mxu0 0.0
  %3837 = vmatprep.subr.mxu0 0.0
  %3838 = vmatpush1.msra.mxu0 0.0
  %3839 = vmatprep.subr.mxu0 0.0
  %3840 = vmatpush1.msra.mxu0 0.0
  %3841 = vmatprep.subr.mxu0 0.0
  %3842 = vmatpush1.msra.mxu0 0.0
  %3843 = vmatprep.subr.mxu0 0.0
  %3844 = vmatpush1.msra.mxu0 0.0
  %3845 = vmatprep.mubr.f32.mxu0 0.0
  %3846 = vmatmul.mubr.f32.gmra.mrb[0].mxu0 %v3709
  %v3847 = vpop.f32.mrb[0].mxu0
  %v3848 = vadd.f32 0.0, %v3847
  %v3849 = vpop.f32.mrb[0].mxu0
  %3850 = vdwg.mxu0
  %v3852 = vsel %vm1845, %v3704, 0
  %v3855 = vsel %vm1845, %v3705, 0
  %3857 = vmatprep.subr.mxu0 0.0
  %3858 = vmatpush1.msra.mxu0 %v3778
  %3859 = vmatprep.subr.mxu0 0.0
  %3860 = vmatpush1.msra.mxu0 %v3702
  %3861 = vmatprep.subr.mxu0 0.0
  %3862 = vmatpush1.msra.mxu0 %v3848
  %3863 = vmatprep.subr.mxu0 0.0
  %3864 = vmatpush1.msra.mxu0 0.0
  %3865 = vmatprep.subr.mxu0 0.0
  %3866 = vmatpush1.msra.mxu0 0.0
  %3867 = vmatprep.subr.mxu0 0.0
  %3868 = vmatpush1.msra.mxu0 0.0
  %3869 = vmatprep.subr.mxu0 0.0
  %3870 = vmatpush1.msra.mxu0 0.0
  %3871 = vmatprep.subr.mxu0 0.0
  %3872 = vmatpush1.msra.mxu0 0.0
  %3873 = vmatprep.subr.mxu0 0.0
  %3874 = vmatpush1.msra.mxu0 0.0
  %3875 = vmatprep.subr.mxu0 0.0
  %3876 = vmatpush1.msra.mxu0 0.0
  %3877 = vmatprep.subr.mxu0 0.0
  %3878 = vmatpush1.msra.mxu0 0.0
  %3879 = vmatprep.subr.mxu0 0.0
  %3880 = vmatpush1.msra.mxu0 0.0
  %3881 = vmatprep.subr.mxu0 0.0
  %3882 = vmatpush1.msra.mxu0 0.0
  %3883 = vmatprep.subr.mxu0 0.0
  %3884 = vmatpush1.msra.mxu0 0.0
  %3885 = vmatprep.subr.mxu0 0.0
  %3886 = vmatpush1.msra.mxu0 0.0
  %3887 = vmatprep.subr.mxu0 0.0
  %3888 = vmatpush1.msra.mxu0 0.0
  %3889 = vmatprep.subr.mxu0 0.0
  %3890 = vmatpush1.msra.mxu0 0.0
  %3891 = vmatprep.subr.mxu0 0.0
  %3892 = vmatpush1.msra.mxu0 0.0
  %3893 = vmatprep.subr.mxu0 0.0
  %3894 = vmatpush1.msra.mxu0 0.0
  %3895 = vmatprep.subr.mxu0 0.0
  %3896 = vmatpush1.msra.mxu0 0.0
  %3897 = vmatprep.subr.mxu0 0.0
  %3898 = vmatpush1.msra.mxu0 0.0
  %3899 = vmatprep.subr.mxu0 0.0
  %3900 = vmatpush1.msra.mxu0 0.0
  %3901 = vmatprep.subr.mxu0 0.0
  %3902 = vmatpush1.msra.mxu0 0.0
  %3903 = vmatprep.subr.mxu0 0.0
  %3904 = vmatpush1.msra.mxu0 0.0
  %3905 = vmatprep.subr.mxu0 0.0
  %3906 = vmatpush1.msra.mxu0 0.0
  %3907 = vmatprep.subr.mxu0 0.0
  %3908 = vmatpush1.msra.mxu0 0.0
  %3909 = vmatprep.subr.mxu0 0.0
  %3910 = vmatpush1.msra.mxu0 0.0
  %3911 = vmatprep.subr.mxu0 0.0
  %3912 = vmatpush1.msra.mxu0 0.0
  %3913 = vmatprep.subr.mxu0 0.0
  %3914 = vmatpush1.msra.mxu0 0.0
  %3915 = vmatprep.subr.mxu0 0.0
  %3916 = vmatpush1.msra.mxu0 0.0
  %3917 = vmatprep.subr.mxu0 0.0
  %3918 = vmatpush1.msra.mxu0 0.0
  %3919 = vmatprep.subr.mxu0 0.0
  %3920 = vmatpush1.msra.mxu0 0.0
  %3921 = vmatprep.mubr.f32.mxu0 0.0
  %3922 = vmatmul.mubr.f32.gmra.mrb[0].mxu0 %v3852
  %v3923 = vpop.f32.mrb[0].mxu0
  %v3924 = vadd.f32 %v1693, %v3923
  %v3925 = vpop.f32.mrb[0].mxu0
  %3926 = vmatprep.mubr.f32.mxu0 0.0
  %3927 = vmatmul.mubr.f32.gmra.mrb[0].mxu0 %v3855
  %v3928 = vpop.f32.mrb[0].mxu0
  %v3929 = vadd.f32 %v1694, %v3928
  %v3930 = vpop.f32.mrb[0].mxu0
  %3931 = vdwg.mxu0
  %v3932 = vxor.u32 %v3924, 2147483648
  %v3933 = vmul.f32 %v3932, 1.442695
  %v3934 = vpow.pop %v3933
  %v3935 = vadd.f32 %v3934, 1.0
  %v3936 = vrcp.pop %v3935
  %v3937 = vmul.f32 1.0, %v3936
  %v3938 = vtanh.pop %v3929
  %v3939 = vmul.f32 %v3937, %v3938
  %3941 = vset.pattern.permute.xlu0 8
  %3942 = vperm.xlu0 %3941, %v3706
  %v3943 = vpop.permute.xlu0 %3942
  %3946 = vset.pattern.permute.xlu0 8
  %3947 = vperm.xlu0 %3946, %v3707
  %v3948 = vpop.permute.xlu0 %3947
  %v3950 = vsel %vm1945, %v3706, 0
  %v3952 = vsel %vm1945, %v3707, 0
  %3954 = vmatprep.subr.mxu0 0.0
  %3955 = vmatpush1.msra.mxu0 %v3939
  %3956 = vmatprep.subr.mxu0 0.0
  %3957 = vmatpush1.msra.mxu0 0.0
  %3958 = vmatprep.subr.mxu0 0.0
  %3959 = vmatpush1.msra.mxu0 0.0
  %3960 = vmatprep.subr.mxu0 0.0
  %3961 = vmatpush1.msra.mxu0 0.0
  %3962 = vmatprep.subr.mxu0 0.0
  %3963 = vmatpush1.msra.mxu0 0.0
  %3964 = vmatprep.subr.mxu0 0.0
  %3965 = vmatpush1.msra.mxu0 0.0
  %3966 = vmatprep.subr.mxu0 0.0
  %3967 = vmatpush1.msra.mxu0 0.0
  %3968 = vmatprep.subr.mxu0 0.0
  %3969 = vmatpush1.msra.mxu0 0.0
  %3970 = vmatprep.subr.mxu0 0.0
  %3971 = vmatpush1.msra.mxu0 0.0
  %3972 = vmatprep.subr.mxu0 0.0
  %3973 = vmatpush1.msra.mxu0 0.0
  %3974 = vmatprep.subr.mxu0 0.0
  %3975 = vmatpush1.msra.mxu0 0.0
  %3976 = vmatprep.subr.mxu0 0.0
  %3977 = vmatpush1.msra.mxu0 0.0
  %3978 = vmatprep.subr.mxu0 0.0
  %3979 = vmatpush1.msra.mxu0 0.0
  %3980 = vmatprep.subr.mxu0 0.0
  %3981 = vmatpush1.msra.mxu0 0.0
  %3982 = vmatprep.subr.mxu0 0.0
  %3983 = vmatpush1.msra.mxu0 0.0
  %3984 = vmatprep.subr.mxu0 0.0
  %3985 = vmatpush1.msra.mxu0 0.0
  %3986 = vmatprep.subr.mxu0 0.0
  %3987 = vmatpush1.msra.mxu0 0.0
  %3988 = vmatprep.subr.mxu0 0.0
  %3989 = vmatpush1.msra.mxu0 0.0
  %3990 = vmatprep.subr.mxu0 0.0
  %3991 = vmatpush1.msra.mxu0 0.0
  %3992 = vmatprep.subr.mxu0 0.0
  %3993 = vmatpush1.msra.mxu0 0.0
  %3994 = vmatprep.subr.mxu0 0.0
  %3995 = vmatpush1.msra.mxu0 0.0
  %3996 = vmatprep.subr.mxu0 0.0
  %3997 = vmatpush1.msra.mxu0 0.0
  %3998 = vmatprep.subr.mxu0 0.0
  %3999 = vmatpush1.msra.mxu0 0.0
  %4000 = vmatprep.subr.mxu0 0.0
  %4001 = vmatpush1.msra.mxu0 0.0
  %4002 = vmatprep.subr.mxu0 0.0
  %4003 = vmatpush1.msra.mxu0 0.0
  %4004 = vmatprep.subr.mxu0 0.0
  %4005 = vmatpush1.msra.mxu0 0.0
  %4006 = vmatprep.subr.mxu0 0.0
  %4007 = vmatpush1.msra.mxu0 0.0
  %4008 = vmatprep.subr.mxu0 0.0
  %4009 = vmatpush1.msra.mxu0 0.0
  %4010 = vmatprep.subr.mxu0 0.0
  %4011 = vmatpush1.msra.mxu0 0.0
  %4012 = vmatprep.subr.mxu0 0.0
  %4013 = vmatpush1.msra.mxu0 0.0
  %4014 = vmatprep.subr.mxu0 0.0
  %4015 = vmatpush1.msra.mxu0 0.0
  %4016 = vmatprep.subr.mxu0 0.0
  %4017 = vmatpush1.msra.mxu0 0.0
  %4018 = vmatprep.mubr.f32.mxu0 0.0
  %4019 = vmatmul.mubr.f32.gmra.mrb[0].mxu0 %v3950
  %v4020 = vpop.f32.mrb[0].mxu0
  %v4021 = vadd.f32 %v3943, %v4020
  %v4022 = vpop.f32.mrb[0].mxu0
  %4023 = vmatprep.mubr.f32.mxu0 0.0
  %4024 = vmatmul.mubr.f32.gmra.mrb[0].mxu0 %v3952
  %v4025 = vpop.f32.mrb[0].mxu0
  %v4026 = vadd.f32 %v3948, %v4025
  %v4027 = vpop.f32.mrb[0].mxu0
  %4028 = vdwg.mxu0
  %vm4029 = vcmp.ge.f32.partialorder %v4021, 0.0
  %vm4030 = vcmp.ge.f32.partialorder %v4026, 0.0
  %v4031 = vmul.f32 %v4021, 0.4
  %v4032 = vmul.f32 %v4026, 0.4
  %v4033 = vsel %vm4029, %v4021, %v4031
  %v4034 = vsel %vm4030, %v4026, %v4032
  %v4035 = vadd.f32 %v3702, %v4033
  %v4036 = vmul.f32 %v4035, 0.70710677
  %v4037 = vadd.f32 %v3703, %v4034
  %v4038 = vld [vmem:[%s1 + $0x1c0] sm:$0xff]
  %v4039 = vld [vmem:[%s1 + $0x1c8] sm:$0xff]
  %v4041 = vsel %vm1701, %v4036, 0
  %4043 = vmatprep.subr.mxu0 0.0
  %4044 = vmatpush1.msra.mxu0 %v64
  %4045 = vmatprep.subr.mxu0 0.0
  %4046 = vmatpush1.msra.mxu0 %v65
  %4047 = vmatprep.subr.mxu0 0.0
  %4048 = vmatpush1.msra.mxu0 %v66
  %4049 = vmatprep.subr.mxu0 0.0
  %4050 = vmatpush1.msra.mxu0 %v67
  %4051 = vmatprep.subr.mxu0 0.0
  %4052 = vmatpush1.msra.mxu0 %v68
  %4053 = vmatprep.subr.mxu0 0.0
  %4054 = vmatpush1.msra.mxu0 0.0
  %4055 = vmatprep.subr.mxu0 0.0
  %4056 = vmatpush1.msra.mxu0 0.0
  %4057 = vmatprep.subr.mxu0 0.0
  %4058 = vmatpush1.msra.mxu0 0.0
  %4059 = vmatprep.subr.mxu0 0.0
  %4060 = vmatpush1.msra.mxu0 0.0
  %4061 = vmatprep.subr.mxu0 0.0
  %4062 = vmatpush1.msra.mxu0 0.0
  %4063 = vmatprep.subr.mxu0 0.0
  %4064 = vmatpush1.msra.mxu0 0.0
  %4065 = vmatprep.subr.mxu0 0.0
  %4066 = vmatpush1.msra.mxu0 0.0
  %4067 = vmatprep.subr.mxu0 0.0
  %4068 = vmatpush1.msra.mxu0 0.0
  %4069 = vmatprep.subr.mxu0 0.0
  %4070 = vmatpush1.msra.mxu0 0.0
  %4071 = vmatprep.subr.mxu0 0.0
  %4072 = vmatpush1.msra.mxu0 0.0
  %4073 = vmatprep.subr.mxu0 0.0
  %4074 = vmatpush1.msra.mxu0 0.0
  %4075 = vmatprep.subr.mxu0 0.0
  %4076 = vmatpush1.msra.mxu0 0.0
  %4077 = vmatprep.subr.mxu0 0.0
  %4078 = vmatpush1.msra.mxu0 0.0
  %4079 = vmatprep.subr.mxu0 0.0
  %4080 = vmatpush1.msra.mxu0 0.0
  %4081 = vmatprep.subr.mxu0 0.0
  %4082 = vmatpush1.msra.mxu0 0.0
  %4083 = vmatprep.subr.mxu0 0.0
  %4084 = vmatpush1.msra.mxu0 0.0
  %4085 = vmatprep.subr.mxu0 0.0
  %4086 = vmatpush1.msra.mxu0 0.0
  %4087 = vmatprep.subr.mxu0 0.0
  %4088 = vmatpush1.msra.mxu0 0.0
  %4089 = vmatprep.subr.mxu0 0.0
  %4090 = vmatpush1.msra.mxu0 0.0
  %4091 = vmatprep.subr.mxu0 0.0
  %4092 = vmatpush1.msra.mxu0 0.0
  %4093 = vmatprep.subr.mxu0 0.0
  %4094 = vmatpush1.msra.mxu0 0.0
  %4095 = vmatprep.subr.mxu0 0.0
  %4096 = vmatpush1.msra.mxu0 0.0
  %4097 = vmatprep.subr.mxu0 0.0
  %4098 = vmatpush1.msra.mxu0 0.0
  %4099 = vmatprep.subr.mxu0 0.0
  %4100 = vmatpush1.msra.mxu0 0.0
  %4101 = vmatprep.subr.mxu0 0.0
  %4102 = vmatpush1.msra.mxu0 0.0
  %4103 = vmatprep.subr.mxu0 0.0
  %4104 = vmatpush1.msra.mxu0 0.0
  %4105 = vmatprep.subr.mxu0 0.0
  %4106 = vmatpush1.msra.mxu0 0.0
  %4107 = vmatprep.mubr.f32.mxu0 0.0
  %4108 = vmatmul.mubr.f32.gmra.mrb[0].mxu0 %v4041
  %v4109 = vpop.f32.mrb[0].mxu0
  %v4110 = vadd.f32 0.0, %v4109
  %v4111 = vpop.f32.mrb[0].mxu0
  %4112 = vdwg.mxu0
  %4113 = vmatprep.subr.mxu0 0.0
  %4114 = vmatpush1.msra.mxu0 %v69
  %4115 = vmatprep.subr.mxu0 0.0
  %4116 = vmatpush1.msra.mxu0 %v70
  %4117 = vmatprep.subr.mxu0 0.0
  %4118 = vmatpush1.msra.mxu0 %v71
  %4119 = vmatprep.subr.mxu0 0.0
  %4120 = vmatpush1.msra.mxu0 %v72
  %4121 = vmatprep.subr.mxu0 0.0
  %4122 = vmatpush1.msra.mxu0 %v73
  %4123 = vmatprep.subr.mxu0 0.0
  %4124 = vmatpush1.msra.mxu0 0.0
  %4125 = vmatprep.subr.mxu0 0.0
  %4126 = vmatpush1.msra.mxu0 0.0
  %4127 = vmatprep.subr.mxu0 0.0
  %4128 = vmatpush1.msra.mxu0 0.0
  %4129 = vmatprep.subr.mxu0 0.0
  %4130 = vmatpush1.msra.mxu0 0.0
  %4131 = vmatprep.subr.mxu0 0.0
  %4132 = vmatpush1.msra.mxu0 0.0
  %4133 = vmatprep.subr.mxu0 0.0
  %4134 = vmatpush1.msra.mxu0 0.0
  %4135 = vmatprep.subr.mxu0 0.0
  %4136 = vmatpush1.msra.mxu0 0.0
  %4137 = vmatprep.subr.mxu0 0.0
  %4138 = vmatpush1.msra.mxu0 0.0
  %4139 = vmatprep.subr.mxu0 0.0
  %4140 = vmatpush1.msra.mxu0 0.0
  %4141 = vmatprep.subr.mxu0 0.0
  %4142 = vmatpush1.msra.mxu0 0.0
  %4143 = vmatprep.subr.mxu0 0.0
  %4144 = vmatpush1.msra.mxu0 0.0
  %4145 = vmatprep.subr.mxu0 0.0
  %4146 = vmatpush1.msra.mxu0 0.0
  %4147 = vmatprep.subr.mxu0 0.0
  %4148 = vmatpush1.msra.mxu0 0.0
  %4149 = vmatprep.subr.mxu0 0.0
  %4150 = vmatpush1.msra.mxu0 0.0
  %4151 = vmatprep.subr.mxu0 0.0
  %4152 = vmatpush1.msra.mxu0 0.0
  %4153 = vmatprep.subr.mxu0 0.0
  %4154 = vmatpush1.msra.mxu0 0.0
  %4155 = vmatprep.subr.mxu0 0.0
  %4156 = vmatpush1.msra.mxu0 0.0
  %4157 = vmatprep.subr.mxu0 0.0
  %4158 = vmatpush1.msra.mxu0 0.0
  %4159 = vmatprep.subr.mxu0 0.0
  %4160 = vmatpush1.msra.mxu0 0.0
  %4161 = vmatprep.subr.mxu0 0.0
  %4162 = vmatpush1.msra.mxu0 0.0
  %4163 = vmatprep.subr.mxu0 0.0
  %4164 = vmatpush1.msra.mxu0 0.0
  %4165 = vmatprep.subr.mxu0 0.0
  %4166 = vmatpush1.msra.mxu0 0.0
  %4167 = vmatprep.subr.mxu0 0.0
  %4168 = vmatpush1.msra.mxu0 0.0
  %4169 = vmatprep.subr.mxu0 0.0
  %4170 = vmatpush1.msra.mxu0 0.0
  %4171 = vmatprep.subr.mxu0 0.0
  %4172 = vmatpush1.msra.mxu0 0.0
  %4173 = vmatprep.subr.mxu0 0.0
  %4174 = vmatpush1.msra.mxu0 0.0
  %4175 = vmatprep.subr.mxu0 0.0
  %4176 = vmatpush1.msra.mxu0 0.0
  %4177 = vmatprep.mubr.f32.mxu0 0.0
  %4178 = vmatmul.mubr.f32.gmra.mrb[0].mxu0 %v4041
  %v4179 = vpop.f32.mrb[0].mxu0
  %v4180 = vadd.f32 0.0, %v4179
  %v4181 = vpop.f32.mrb[0].mxu0
  %4182 = vdwg.mxu0
  %v4183 = vsel %vm1845, %v52, 0
  %v4185 = vsel %vm1845, %v53, 0
  %4187 = vmatprep.subr.mxu0 0.0
  %4188 = vmatpush1.msra.mxu0 %v4110
  %4189 = vmatprep.subr.mxu0 0.0
  %4190 = vmatpush1.msra.mxu0 %v4036
  %4191 = vmatprep.subr.mxu0 0.0
  %4192 = vmatpush1.msra.mxu0 %v4180
  %4193 = vmatprep.subr.mxu0 0.0
  %4194 = vmatpush1.msra.mxu0 0.0
  %4195 = vmatprep.subr.mxu0 0.0
  %4196 = vmatpush1.msra.mxu0 0.0
  %4197 = vmatprep.subr.mxu0 0.0
  %4198 = vmatpush1.msra.mxu0 0.0
  %4199 = vmatprep.subr.mxu0 0.0
  %4200 = vmatpush1.msra.mxu0 0.0
  %4201 = vmatprep.subr.mxu0 0.0
  %4202 = vmatpush1.msra.mxu0 0.0
  %4203 = vmatprep.subr.mxu0 0.0
  %4204 = vmatpush1.msra.mxu0 0.0
  %4205 = vmatprep.subr.mxu0 0.0
  %4206 = vmatpush1.msra.mxu0 0.0
  %4207 = vmatprep.subr.mxu0 0.0
  %4208 = vmatpush1.msra.mxu0 0.0
  %4209 = vmatprep.subr.mxu0 0.0
  %4210 = vmatpush1.msra.mxu0 0.0
  %4211 = vmatprep.subr.mxu0 0.0
  %4212 = vmatpush1.msra.mxu0 0.0
  %4213 = vmatprep.subr.mxu0 0.0
  %4214 = vmatpush1.msra.mxu0 0.0
  %4215 = vmatprep.subr.mxu0 0.0
  %4216 = vmatpush1.msra.mxu0 0.0
  %4217 = vmatprep.subr.mxu0 0.0
  %4218 = vmatpush1.msra.mxu0 0.0
  %4219 = vmatprep.subr.mxu0 0.0
  %4220 = vmatpush1.msra.mxu0 0.0
  %4221 = vmatprep.subr.mxu0 0.0
  %4222 = vmatpush1.msra.mxu0 0.0
  %4223 = vmatprep.subr.mxu0 0.0
  %4224 = vmatpush1.msra.mxu0 0.0
  %4225 = vmatprep.subr.mxu0 0.0
  %4226 = vmatpush1.msra.mxu0 0.0
  %4227 = vmatprep.subr.mxu0 0.0
  %4228 = vmatpush1.msra.mxu0 0.0
  %4229 = vmatprep.subr.mxu0 0.0
  %4230 = vmatpush1.msra.mxu0 0.0
  %4231 = vmatprep.subr.mxu0 0.0
  %4232 = vmatpush1.msra.mxu0 0.0
  %4233 = vmatprep.subr.mxu0 0.0
  %4234 = vmatpush1.msra.mxu0 0.0
  %4235 = vmatprep.subr.mxu0 0.0
  %4236 = vmatpush1.msra.mxu0 0.0
  %4237 = vmatprep.subr.mxu0 0.0
  %4238 = vmatpush1.msra.mxu0 0.0
  %4239 = vmatprep.subr.mxu0 0.0
  %4240 = vmatpush1.msra.mxu0 0.0
  %4241 = vmatprep.subr.mxu0 0.0
  %4242 = vmatpush1.msra.mxu0 0.0
  %4243 = vmatprep.subr.mxu0 0.0
  %4244 = vmatpush1.msra.mxu0 0.0
  %4245 = vmatprep.subr.mxu0 0.0
  %4246 = vmatpush1.msra.mxu0 0.0
  %4247 = vmatprep.subr.mxu0 0.0
  %4248 = vmatpush1.msra.mxu0 0.0
  %4249 = vmatprep.subr.mxu0 0.0
  %4250 = vmatpush1.msra.mxu0 0.0
  %4251 = vmatprep.mubr.f32.mxu0 0.0
  %4252 = vmatmul.mubr.f32.gmra.mrb[0].mxu0 %v4183
  %v4253 = vpop.f32.mrb[0].mxu0
  %v4254 = vadd.f32 %v1695, %v4253
  %v4255 = vpop.f32.mrb[0].mxu0
  %4256 = vmatprep.mubr.f32.mxu0 0.0
  %4257 = vmatmul.mubr.f32.gmra.mrb[0].mxu0 %v4185
  %v4258 = vpop.f32.mrb[0].mxu0
  %v4259 = vadd.f32 %v1696, %v4258
  %v4260 = vpop.f32.mrb[0].mxu0
  %4261 = vdwg.mxu0
  %v4262 = vxor.u32 %v4254, 2147483648
  %v4263 = vmul.f32 %v4262, 1.442695
  %v4264 = vpow.pop %v4263
  %v4265 = vadd.f32 %v4264, 1.0
  %v4266 = vrcp.pop %v4265
  %v4267 = vmul.f32 1.0, %v4266
  %v4268 = vtanh.pop %v4259
  %v4269 = vmul.f32 %v4267, %v4268
  %4271 = vset.pattern.permute.xlu0 8
  %4272 = vperm.xlu0 %4271, %v4038
  %v4273 = vpop.permute.xlu0 %4272
  %4275 = vset.pattern.permute.xlu0 8
  %4276 = vperm.xlu0 %4275, %v4039
  %v4277 = vpop.permute.xlu0 %4276
  %v4279 = vsel %vm1945, %v4038, 0
  %v4281 = vsel %vm1945, %v4039, 0
  %4283 = vmatprep.subr.mxu0 0.0
  %4284 = vmatpush1.msra.mxu0 %v4269
  %4285 = vmatprep.subr.mxu0 0.0
  %4286 = vmatpush1.msra.mxu0 0.0
  %4287 = vmatprep.subr.mxu0 0.0
  %4288 = vmatpush1.msra.mxu0 0.0
  %4289 = vmatprep.subr.mxu0 0.0
  %4290 = vmatpush1.msra.mxu0 0.0
  %4291 = vmatprep.subr.mxu0 0.0
  %4292 = vmatpush1.msra.mxu0 0.0
  %4293 = vmatprep.subr.mxu0 0.0
  %4294 = vmatpush1.msra.mxu0 0.0
  %4295 = vmatprep.subr.mxu0 0.0
  %4296 = vmatpush1.msra.mxu0 0.0
  %4297 = vmatprep.subr.mxu0 0.0
  %4298 = vmatpush1.msra.mxu0 0.0
  %4299 = vmatprep.subr.mxu0 0.0
  %4300 = vmatpush1.msra.mxu0 0.0
  %4301 = vmatprep.subr.mxu0 0.0
  %4302 = vmatpush1.msra.mxu0 0.0
  %4303 = vmatprep.subr.mxu0 0.0
  %4304 = vmatpush1.msra.mxu0 0.0
  %4305 = vmatprep.subr.mxu0 0.0
  %4306 = vmatpush1.msra.mxu0 0.0
  %4307 = vmatprep.subr.mxu0 0.0
  %4308 = vmatpush1.msra.mxu0 0.0
  %4309 = vmatprep.subr.mxu0 0.0
  %4310 = vmatpush1.msra.mxu0 0.0
  %4311 = vmatprep.subr.mxu0 0.0
  %4312 = vmatpush1.msra.mxu0 0.0
  %4313 = vmatprep.subr.mxu0 0.0
  %4314 = vmatpush1.msra.mxu0 0.0
  %4315 = vmatprep.subr.mxu0 0.0
  %4316 = vmatpush1.msra.mxu0 0.0
  %4317 = vmatprep.subr.mxu0 0.0
  %4318 = vmatpush1.msra.mxu0 0.0
  %4319 = vmatprep.subr.mxu0 0.0
  %4320 = vmatpush1.msra.mxu0 0.0
  %4321 = vmatprep.subr.mxu0 0.0
  %4322 = vmatpush1.msra.mxu0 0.0
  %4323 = vmatprep.subr.mxu0 0.0
  %4324 = vmatpush1.msra.mxu0 0.0
  %4325 = vmatprep.subr.mxu0 0.0
  %4326 = vmatpush1.msra.mxu0 0.0
  %4327 = vmatprep.subr.mxu0 0.0
  %4328 = vmatpush1.msra.mxu0 0.0
  %4329 = vmatprep.subr.mxu0 0.0
  %4330 = vmatpush1.msra.mxu0 0.0
  %4331 = vmatprep.subr.mxu0 0.0
  %4332 = vmatpush1.msra.mxu0 0.0
  %4333 = vmatprep.subr.mxu0 0.0
  %4334 = vmatpush1.msra.mxu0 0.0
  %4335 = vmatprep.subr.mxu0 0.0
  %4336 = vmatpush1.msra.mxu0 0.0
  %4337 = vmatprep.subr.mxu0 0.0
  %4338 = vmatpush1.msra.mxu0 0.0
  %4339 = vmatprep.subr.mxu0 0.0
  %4340 = vmatpush1.msra.mxu0 0.0
  %4341 = vmatprep.subr.mxu0 0.0
  %4342 = vmatpush1.msra.mxu0 0.0
  %4343 = vmatprep.subr.mxu0 0.0
  %4344 = vmatpush1.msra.mxu0 0.0
  %4345 = vmatprep.subr.mxu0 0.0
  %4346 = vmatpush1.msra.mxu0 0.0
  %4347 = vmatprep.mubr.f32.mxu0 0.0
  %4348 = vmatmul.mubr.f32.gmra.mrb[0].mxu0 %v4279
  %v4349 = vpop.f32.mrb[0].mxu0
  %v4350 = vpop.f32.mrb[0].mxu0
  %4351 = vmatprep.mubr.f32.mxu0 0.0
  %4352 = vmatmul.mubr.f32.gmra.mrb[0].mxu0 %v4281
  %v4353 = vpop.f32.mrb[0].mxu0
  %v4354 = vadd.f32 %v4277, %v4353
  %v4355 = vpop.f32.mrb[0].mxu0
  %4356 = vdwg.mxu0
  %vm4357 = vcmp.ge.f32.partialorder %v4354, 0.0
  %v4358 = vmul.f32 %v4354, 0.4
  %v4359 = vsel %vm4357, %v4354, %v4358
  %v4360 = vadd.f32 %v4037, %v4359
  %v4361 = vmul.f32 %v4360, 0.35355338
  %v4363 = vsel %vm1701, %v4361, 0
  %4365 = vmatprep.subr.mxu0 0.0
  %4366 = vmatpush1.msra.mxu0 %v59
  %4367 = vmatprep.subr.mxu0 0.0
  %4368 = vmatpush1.msra.mxu0 %v60
  %4369 = vmatprep.subr.mxu0 0.0
  %4370 = vmatpush1.msra.mxu0 %v61
  %4371 = vmatprep.subr.mxu0 0.0
  %4372 = vmatpush1.msra.mxu0 %v62
  %4373 = vmatprep.subr.mxu0 0.0
  %4374 = vmatpush1.msra.mxu0 %v63
  %4375 = vmatprep.subr.mxu0 0.0
  %4376 = vmatpush1.msra.mxu0 0.0
  %4377 = vmatprep.subr.mxu0 0.0
  %4378 = vmatpush1.msra.mxu0 0.0
  %4379 = vmatprep.subr.mxu0 0.0
  %4380 = vmatpush1.msra.mxu0 0.0
  %4381 = vmatprep.subr.mxu0 0.0
  %4382 = vmatpush1.msra.mxu0 0.0
  %4383 = vmatprep.subr.mxu0 0.0
  %4384 = vmatpush1.msra.mxu0 0.0
  %4385 = vmatprep.subr.mxu0 0.0
  %4386 = vmatpush1.msra.mxu0 0.0
  %4387 = vmatprep.subr.mxu0 0.0
  %4388 = vmatpush1.msra.mxu0 0.0
  %4389 = vmatprep.subr.mxu0 0.0
  %4390 = vmatpush1.msra.mxu0 0.0
  %4391 = vmatprep.subr.mxu0 0.0
  %4392 = vmatpush1.msra.mxu0 0.0
  %4393 = vmatprep.subr.mxu0 0.0
  %4394 = vmatpush1.msra.mxu0 0.0
  %4395 = vmatprep.subr.mxu0 0.0
  %4396 = vmatpush1.msra.mxu0 0.0
  %4397 = vmatprep.subr.mxu0 0.0
  %4398 = vmatpush1.msra.mxu0 0.0
  %4399 = vmatprep.subr.mxu0 0.0
  %4400 = vmatpush1.msra.mxu0 0.0
  %4401 = vmatprep.subr.mxu0 0.0
  %4402 = vmatpush1.msra.mxu0 0.0
  %4403 = vmatprep.subr.mxu0 0.0
  %4404 = vmatpush1.msra.mxu0 0.0
  %4405 = vmatprep.subr.mxu0 0.0
  %4406 = vmatpush1.msra.mxu0 0.0
  %4407 = vmatprep.subr.mxu0 0.0
  %4408 = vmatpush1.msra.mxu0 0.0
  %4409 = vmatprep.subr.mxu0 0.0
  %4410 = vmatpush1.msra.mxu0 0.0
  %4411 = vmatprep.subr.mxu0 0.0
  %4412 = vmatpush1.msra.mxu0 0.0
  %4413 = vmatprep.subr.mxu0 0.0
  %4414 = vmatpush1.msra.mxu0 0.0
  %4415 = vmatprep.subr.mxu0 0.0
  %4416 = vmatpush1.msra.mxu0 0.0
  %4417 = vmatprep.subr.mxu0 0.0
  %4418 = vmatpush1.msra.mxu0 0.0
  %4419 = vmatprep.subr.mxu0 0.0
  %4420 = vmatpush1.msra.mxu0 0.0
  %4421 = vmatprep.subr.mxu0 0.0
  %4422 = vmatpush1.msra.mxu0 0.0
  %4423 = vmatprep.subr.mxu0 0.0
  %4424 = vmatpush1.msra.mxu0 0.0
  %4425 = vmatprep.subr.mxu0 0.0
  %4426 = vmatpush1.msra.mxu0 0.0
  %4427 = vmatprep.subr.mxu0 0.0
  %4428 = vmatpush1.msra.mxu0 0.0
  %4429 = vmatprep.mubr.f32.mxu0 0.0
  %4430 = vmatmul.mubr.f32.gmra.mrb[0].mxu0 %v4363
  %v4431 = vpop.f32.mrb[0].mxu0
  %v4432 = vadd.f32 0.0, %v4431
  %v4433 = vpop.f32.mrb[0].mxu0
  %4434 = vdwg.mxu0
  %4435 = vmatprep.subr.mxu0 0.0
  %4436 = vmatpush1.msra.mxu0 %v69
  %4437 = vmatprep.subr.mxu0 0.0
  %4438 = vmatpush1.msra.mxu0 %v70
  %4439 = vmatprep.subr.mxu0 0.0
  %4440 = vmatpush1.msra.mxu0 %v71
  %4441 = vmatprep.subr.mxu0 0.0
  %4442 = vmatpush1.msra.mxu0 %v72
  %4443 = vmatprep.subr.mxu0 0.0
  %4444 = vmatpush1.msra.mxu0 %v73
  %4445 = vmatprep.subr.mxu0 0.0
  %4446 = vmatpush1.msra.mxu0 0.0
  %4447 = vmatprep.subr.mxu0 0.0
  %4448 = vmatpush1.msra.mxu0 0.0
  %4449 = vmatprep.subr.mxu0 0.0
  %4450 = vmatpush1.msra.mxu0 0.0
  %4451 = vmatprep.subr.mxu0 0.0
  %4452 = vmatpush1.msra.mxu0 0.0
  %4453 = vmatprep.subr.mxu0 0.0
  %4454 = vmatpush1.msra.mxu0 0.0
  %4455 = vmatprep.subr.mxu0 0.0
  %4456 = vmatpush1.msra.mxu0 0.0
  %4457 = vmatprep.subr.mxu0 0.0
  %4458 = vmatpush1.msra.mxu0 0.0
  %4459 = vmatprep.subr.mxu0 0.0
  %4460 = vmatpush1.msra.mxu0 0.0
  %4461 = vmatprep.subr.mxu0 0.0
  %4462 = vmatpush1.msra.mxu0 0.0
  %4463 = vmatprep.subr.mxu0 0.0
  %4464 = vmatpush1.msra.mxu0 0.0
  %4465 = vmatprep.subr.mxu0 0.0
  %4466 = vmatpush1.msra.mxu0 0.0
  %4467 = vmatprep.subr.mxu0 0.0
  %4468 = vmatpush1.msra.mxu0 0.0
  %4469 = vmatprep.subr.mxu0 0.0
  %4470 = vmatpush1.msra.mxu0 0.0
  %4471 = vmatprep.subr.mxu0 0.0
  %4472 = vmatpush1.msra.mxu0 0.0
  %4473 = vmatprep.subr.mxu0 0.0
  %4474 = vmatpush1.msra.mxu0 0.0
  %4475 = vmatprep.subr.mxu0 0.0
  %4476 = vmatpush1.msra.mxu0 0.0
  %4477 = vmatprep.subr.mxu0 0.0
  %4478 = vmatpush1.msra.mxu0 0.0
  %4479 = vmatprep.subr.mxu0 0.0
  %4480 = vmatpush1.msra.mxu0 0.0
  %4481 = vmatprep.subr.mxu0 0.0
  %4482 = vmatpush1.msra.mxu0 0.0
  %4483 = vmatprep.subr.mxu0 0.0
  %4484 = vmatpush1.msra.mxu0 0.0
  %4485 = vmatprep.subr.mxu0 0.0
  %4486 = vmatpush1.msra.mxu0 0.0
  %4487 = vmatprep.subr.mxu0 0.0
  %4488 = vmatpush1.msra.mxu0 0.0
  %4489 = vmatprep.subr.mxu0 0.0
  %4490 = vmatpush1.msra.mxu0 0.0
  %4491 = vmatprep.subr.mxu0 0.0
  %4492 = vmatpush1.msra.mxu0 0.0
  %4493 = vmatprep.subr.mxu0 0.0
  %4494 = vmatpush1.msra.mxu0 0.0
  %4495 = vmatprep.subr.mxu0 0.0
  %4496 = vmatpush1.msra.mxu0 0.0
  %4497 = vmatprep.subr.mxu0 0.0
  %4498 = vmatpush1.msra.mxu0 0.0
  %4499 = vmatprep.mubr.f32.mxu0 0.0
  %4500 = vmatmul.mubr.f32.gmra.mrb[0].mxu0 %v4363
  %v4501 = vpop.f32.mrb[0].mxu0
  %v4502 = vadd.f32 0.0, %v4501
  %v4503 = vpop.f32.mrb[0].mxu0
  %4504 = vdwg.mxu0
  %v4505 = vld [vmem:[%s1 + $0x1d0] sm:$0xff]
  %4507 = vset.pattern.permute.xlu0 24
  %4508 = vperm.xlu0 %4507, %v4505
  %v4509 = vpop.permute.xlu0 %4508
  %v4511 = vsel %vm1845, %v4505, 0
  %4513 = vmatprep.subr.mxu0 0.0
  %4514 = vmatpush1.msra.mxu0 %v4361
  %4515 = vmatprep.subr.mxu0 0.0
  %4516 = vmatpush1.msra.mxu0 %v4432
  %4517 = vmatprep.subr.mxu0 0.0
  %4518 = vmatpush1.msra.mxu0 %v4502
  %4519 = vmatprep.subr.mxu0 0.0
  %4520 = vmatpush1.msra.mxu0 0.0
  %4521 = vmatprep.subr.mxu0 0.0
  %4522 = vmatpush1.msra.mxu0 0.0
  %4523 = vmatprep.subr.mxu0 0.0
  %4524 = vmatpush1.msra.mxu0 0.0
  %4525 = vmatprep.subr.mxu0 0.0
  %4526 = vmatpush1.msra.mxu0 0.0
  %4527 = vmatprep.subr.mxu0 0.0
  %4528 = vmatpush1.msra.mxu0 0.0
  %4529 = vmatprep.subr.mxu0 0.0
  %4530 = vmatpush1.msra.mxu0 0.0
  %4531 = vmatprep.subr.mxu0 0.0
  %4532 = vmatpush1.msra.mxu0 0.0
  %4533 = vmatprep.subr.mxu0 0.0
  %4534 = vmatpush1.msra.mxu0 0.0
  %4535 = vmatprep.subr.mxu0 0.0
  %4536 = vmatpush1.msra.mxu0 0.0
  %4537 = vmatprep.subr.mxu0 0.0
  %4538 = vmatpush1.msra.mxu0 0.0
  %4539 = vmatprep.subr.mxu0 0.0
  %4540 = vmatpush1.msra.mxu0 0.0
  %4541 = vmatprep.subr.mxu0 0.0
  %4542 = vmatpush1.msra.mxu0 0.0
  %4543 = vmatprep.subr.mxu0 0.0
  %4544 = vmatpush1.msra.mxu0 0.0
  %4545 = vmatprep.subr.mxu0 0.0
  %4546 = vmatpush1.msra.mxu0 0.0
  %4547 = vmatprep.subr.mxu0 0.0
  %4548 = vmatpush1.msra.mxu0 0.0
  %4549 = vmatprep.subr.mxu0 0.0
  %4550 = vmatpush1.msra.mxu0 0.0
  %4551 = vmatprep.subr.mxu0 0.0
  %4552 = vmatpush1.msra.mxu0 0.0
  %4553 = vmatprep.subr.mxu0 0.0
  %4554 = vmatpush1.msra.mxu0 0.0
  %4555 = vmatprep.subr.mxu0 0.0
  %4556 = vmatpush1.msra.mxu0 0.0
  %4557 = vmatprep.subr.mxu0 0.0
  %4558 = vmatpush1.msra.mxu0 0.0
  %4559 = vmatprep.subr.mxu0 0.0
  %4560 = vmatpush1.msra.mxu0 0.0
  %4561 = vmatprep.subr.mxu0 0.0
  %4562 = vmatpush1.msra.mxu0 0.0
  %4563 = vmatprep.subr.mxu0 0.0
  %4564 = vmatpush1.msra.mxu0 0.0
  %4565 = vmatprep.subr.mxu0 0.0
  %4566 = vmatpush1.msra.mxu0 0.0
  %4567 = vmatprep.subr.mxu0 0.0
  %4568 = vmatpush1.msra.mxu0 0.0
  %4569 = vmatprep.subr.mxu0 0.0
  %4570 = vmatpush1.msra.mxu0 0.0
  %4571 = vmatprep.subr.mxu0 0.0
  %4572 = vmatpush1.msra.mxu0 0.0
  %4573 = vmatprep.subr.mxu0 0.0
  %4574 = vmatpush1.msra.mxu0 0.0
  %4575 = vmatprep.subr.mxu0 0.0
  %4576 = vmatpush1.msra.mxu0 0.0
  %4577 = vmatprep.mubr.f32.mxu0 0.0
  %4578 = vmatmul.mubr.f32.gmra.mrb[0].mxu0 %v4511
  %v4579 = vpop.f32.mrb[0].mxu0
  %v4580 = vadd.f32 %v4509, %v4579
  %v4581 = vpop.f32.mrb[0].mxu0
  %4582 = vdwg.mxu0
  %vm4583 = vcmp.ge.f32.partialorder %v4580, 0.0
  %v4584 = vmul.f32 %v4580, 0.4
  %v4585 = vsel %vm4583, %v4580, %v4584
  %v4587 = vsel %vm1701, %v4585, 0
  %4589 = vmatprep.subr.mxu0 0.0
  %4590 = vmatpush1.msra.mxu0 %v59
  %4591 = vmatprep.subr.mxu0 0.0
  %4592 = vmatpush1.msra.mxu0 %v60
  %4593 = vmatprep.subr.mxu0 0.0
  %4594 = vmatpush1.msra.mxu0 %v61
  %4595 = vmatprep.subr.mxu0 0.0
  %4596 = vmatpush1.msra.mxu0 %v62
  %4597 = vmatprep.subr.mxu0 0.0
  %4598 = vmatpush1.msra.mxu0 %v63
  %4599 = vmatprep.subr.mxu0 0.0
  %4600 = vmatpush1.msra.mxu0 0.0
  %4601 = vmatprep.subr.mxu0 0.0
  %4602 = vmatpush1.msra.mxu0 0.0
  %4603 = vmatprep.subr.mxu0 0.0
  %4604 = vmatpush1.msra.mxu0 0.0
  %4605 = vmatprep.subr.mxu0 0.0
  %4606 = vmatpush1.msra.mxu0 0.0
  %4607 = vmatprep.subr.mxu0 0.0
  %4608 = vmatpush1.msra.mxu0 0.0
  %4609 = vmatprep.subr.mxu0 0.0
  %4610 = vmatpush1.msra.mxu0 0.0
  %4611 = vmatprep.subr.mxu0 0.0
  %4612 = vmatpush1.msra.mxu0 0.0
  %4613 = vmatprep.subr.mxu0 0.0
  %4614 = vmatpush1.msra.mxu0 0.0
  %4615 = vmatprep.subr.mxu0 0.0
  %4616 = vmatpush1.msra.mxu0 0.0
  %4617 = vmatprep.subr.mxu0 0.0
  %4618 = vmatpush1.msra.mxu0 0.0
  %4619 = vmatprep.subr.mxu0 0.0
  %4620 = vmatpush1.msra.mxu0 0.0
  %4621 = vmatprep.subr.mxu0 0.0
  %4622 = vmatpush1.msra.mxu0 0.0
  %4623 = vmatprep.subr.mxu0 0.0
  %4624 = vmatpush1.msra.mxu0 0.0
  %4625 = vmatprep.subr.mxu0 0.0
  %4626 = vmatpush1.msra.mxu0 0.0
  %4627 = vmatprep.subr.mxu0 0.0
  %4628 = vmatpush1.msra.mxu0 0.0
  %4629 = vmatprep.subr.mxu0 0.0
  %4630 = vmatpush1.msra.mxu0 0.0
  %4631 = vmatprep.subr.mxu0 0.0
  %4632 = vmatpush1.msra.mxu0 0.0
  %4633 = vmatprep.subr.mxu0 0.0
  %4634 = vmatpush1.msra.mxu0 0.0
  %4635 = vmatprep.subr.mxu0 0.0
  %4636 = vmatpush1.msra.mxu0 0.0
  %4637 = vmatprep.subr.mxu0 0.0
  %4638 = vmatpush1.msra.mxu0 0.0
  %4639 = vmatprep.subr.mxu0 0.0
  %4640 = vmatpush1.msra.mxu0 0.0
  %4641 = vmatprep.subr.mxu0 0.0
  %4642 = vmatpush1.msra.mxu0 0.0
  %4643 = vmatprep.subr.mxu0 0.0
  %4644 = vmatpush1.msra.mxu0 0.0
  %4645 = vmatprep.subr.mxu0 0.0
  %4646 = vmatpush1.msra.mxu0 0.0
  %4647 = vmatprep.subr.mxu0 0.0
  %4648 = vmatpush1.msra.mxu0 0.0
  %4649 = vmatprep.subr.mxu0 0.0
  %4650 = vmatpush1.msra.mxu0 0.0
  %4651 = vmatprep.subr.mxu0 0.0
  %4652 = vmatpush1.msra.mxu0 0.0
  %4653 = vmatprep.mubr.f32.mxu0 0.0
  %4654 = vmatmul.mubr.f32.gmra.mrb[0].mxu0 %v4587
  %v4655 = vpop.f32.mrb[0].mxu0
  %v4656 = vadd.f32 0.0, %v4655
  %v4657 = vpop.f32.mrb[0].mxu0
  %4658 = vdwg.mxu0
  %4659 = vmatprep.subr.mxu0 0.0
  %4660 = vmatpush1.msra.mxu0 %v69
  %4661 = vmatprep.subr.mxu0 0.0
  %4662 = vmatpush1.msra.mxu0 %v70
  %4663 = vmatprep.subr.mxu0 0.0
  %4664 = vmatpush1.msra.mxu0 %v71
  %4665 = vmatprep.subr.mxu0 0.0
  %4666 = vmatpush1.msra.mxu0 %v72
  %4667 = vmatprep.subr.mxu0 0.0
  %4668 = vmatpush1.msra.mxu0 %v73
  %4669 = vmatprep.subr.mxu0 0.0
  %4670 = vmatpush1.msra.mxu0 0.0
  %4671 = vmatprep.subr.mxu0 0.0
  %4672 = vmatpush1.msra.mxu0 0.0
  %4673 = vmatprep.subr.mxu0 0.0
  %4674 = vmatpush1.msra.mxu0 0.0
  %4675 = vmatprep.subr.mxu0 0.0
  %4676 = vmatpush1.msra.mxu0 0.0
  %4677 = vmatprep.subr.mxu0 0.0
  %4678 = vmatpush1.msra.mxu0 0.0
  %4679 = vmatprep.subr.mxu0 0.0
  %4680 = vmatpush1.msra.mxu0 0.0
  %4681 = vmatprep.subr.mxu0 0.0
  %4682 = vmatpush1.msra.mxu0 0.0
  %4683 = vmatprep.subr.mxu0 0.0
  %4684 = vmatpush1.msra.mxu0 0.0
  %4685 = vmatprep.subr.mxu0 0.0
  %4686 = vmatpush1.msra.mxu0 0.0
  %4687 = vmatprep.subr.mxu0 0.0
  %4688 = vmatpush1.msra.mxu0 0.0
  %4689 = vmatprep.subr.mxu0 0.0
  %4690 = vmatpush1.msra.mxu0 0.0
  %4691 = vmatprep.subr.mxu0 0.0
  %4692 = vmatpush1.msra.mxu0 0.0
  %4693 = vmatprep.subr.mxu0 0.0
  %4694 = vmatpush1.msra.mxu0 0.0
  %4695 = vmatprep.subr.mxu0 0.0
  %4696 = vmatpush1.msra.mxu0 0.0
  %4697 = vmatprep.subr.mxu0 0.0
  %4698 = vmatpush1.msra.mxu0 0.0
  %4699 = vmatprep.subr.mxu0 0.0
  %4700 = vmatpush1.msra.mxu0 0.0
  %4701 = vmatprep.subr.mxu0 0.0
  %4702 = vmatpush1.msra.mxu0 0.0
  %4703 = vmatprep.subr.mxu0 0.0
  %4704 = vmatpush1.msra.mxu0 0.0
  %4705 = vmatprep.subr.mxu0 0.0
  %4706 = vmatpush1.msra.mxu0 0.0
  %4707 = vmatprep.subr.mxu0 0.0
  %4708 = vmatpush1.msra.mxu0 0.0
  %4709 = vmatprep.subr.mxu0 0.0
  %4710 = vmatpush1.msra.mxu0 0.0
  %4711 = vmatprep.subr.mxu0 0.0
  %4712 = vmatpush1.msra.mxu0 0.0
  %4713 = vmatprep.subr.mxu0 0.0
  %4714 = vmatpush1.msra.mxu0 0.0
  %4715 = vmatprep.subr.mxu0 0.0
  %4716 = vmatpush1.msra.mxu0 0.0
  %4717 = vmatprep.subr.mxu0 0.0
  %4718 = vmatpush1.msra.mxu0 0.0
  %4719 = vmatprep.subr.mxu0 0.0
  %4720 = vmatpush1.msra.mxu0 0.0
  %4721 = vmatprep.subr.mxu0 0.0
  %4722 = vmatpush1.msra.mxu0 0.0
  %4723 = vmatprep.mubr.f32.mxu0 0.0
  %4724 = vmatmul.mubr.f32.gmra.mrb[0].mxu0 %v4587
  %v4725 = vpop.f32.mrb[0].mxu0
  %v4726 = vadd.f32 0.0, %v4725
  %v4727 = vpop.f32.mrb[0].mxu0
  %4728 = vdwg.mxu0
  %v4729 = vld [vmem:[%s1 + $0x1d8] sm:$0x1]
  %4731 = vset.pattern.permute.xlu0 24
  %4732 = vperm.xlu0 %4731, %v4729
  %v4733 = vpop.permute.xlu0 %4732
  %v4735 = vsel %vm1845, %v4729, 0
  %4737 = vmatprep.subr.mxu0 0.0
  %4738 = vmatpush1.msra.mxu0 %v4585
  %4739 = vmatprep.subr.mxu0 0.0
  %4740 = vmatpush1.msra.mxu0 %v4656
  %4741 = vmatprep.subr.mxu0 0.0
  %4742 = vmatpush1.msra.mxu0 %v4726
  %4743 = vmatprep.subr.mxu0 0.0
  %4744 = vmatpush1.msra.mxu0 0.0
  %4745 = vmatprep.subr.mxu0 0.0
  %4746 = vmatpush1.msra.mxu0 0.0
  %4747 = vmatprep.subr.mxu0 0.0
  %4748 = vmatpush1.msra.mxu0 0.0
  %4749 = vmatprep.subr.mxu0 0.0
  %4750 = vmatpush1.msra.mxu0 0.0
  %4751 = vmatprep.subr.mxu0 0.0
  %4752 = vmatpush1.msra.mxu0 0.0
  %4753 = vmatprep.subr.mxu0 0.0
  %4754 = vmatpush1.msra.mxu0 0.0
  %4755 = vmatprep.subr.mxu0 0.0
  %4756 = vmatpush1.msra.mxu0 0.0
  %4757 = vmatprep.subr.mxu0 0.0
  %4758 = vmatpush1.msra.mxu0 0.0
  %4759 = vmatprep.subr.mxu0 0.0
  %4760 = vmatpush1.msra.mxu0 0.0
  %4761 = vmatprep.subr.mxu0 0.0
  %4762 = vmatpush1.msra.mxu0 0.0
  %4763 = vmatprep.subr.mxu0 0.0
  %4764 = vmatpush1.msra.mxu0 0.0
  %4765 = vmatprep.subr.mxu0 0.0
  %4766 = vmatpush1.msra.mxu0 0.0
  %4767 = vmatprep.subr.mxu0 0.0
  %4768 = vmatpush1.msra.mxu0 0.0
  %4769 = vmatprep.subr.mxu0 0.0
  %4770 = vmatpush1.msra.mxu0 0.0
  %4771 = vmatprep.subr.mxu0 0.0
  %4772 = vmatpush1.msra.mxu0 0.0
  %4773 = vmatprep.subr.mxu0 0.0
  %4774 = vmatpush1.msra.mxu0 0.0
  %4775 = vmatprep.subr.mxu0 0.0
  %4776 = vmatpush1.msra.mxu0 0.0
  %4777 = vmatprep.subr.mxu0 0.0
  %4778 = vmatpush1.msra.mxu0 0.0
  %4779 = vmatprep.subr.mxu0 0.0
  %4780 = vmatpush1.msra.mxu0 0.0
  %4781 = vmatprep.subr.mxu0 0.0
  %4782 = vmatpush1.msra.mxu0 0.0
  %4783 = vmatprep.subr.mxu0 0.0
  %4784 = vmatpush1.msra.mxu0 0.0
  %4785 = vmatprep.subr.mxu0 0.0
  %4786 = vmatpush1.msra.mxu0 0.0
  %4787 = vmatprep.subr.mxu0 0.0
  %4788 = vmatpush1.msra.mxu0 0.0
  %4789 = vmatprep.subr.mxu0 0.0
  %4790 = vmatpush1.msra.mxu0 0.0
  %4791 = vmatprep.subr.mxu0 0.0
  %4792 = vmatpush1.msra.mxu0 0.0
  %4793 = vmatprep.subr.mxu0 0.0
  %4794 = vmatpush1.msra.mxu0 0.0
  %4795 = vmatprep.subr.mxu0 0.0
  %4796 = vmatpush1.msra.mxu0 0.0
  %4797 = vmatprep.subr.mxu0 0.0
  %4798 = vmatpush1.msra.mxu0 0.0
  %4799 = vmatprep.subr.mxu0 0.0
  %4800 = vmatpush1.msra.mxu0 0.0
  %4801 = vmatprep.mubr.f32.mxu0 0.0
  %4802 = vmatmul.mubr.f32.gmra.mrb[0].mxu0 %v4735
  %v4803 = vpop.f32.mrb[0].mxu0
  %v4804 = vadd.f32 %v4733, %v4803
  %v4805 = vpop.f32.mrb[0].mxu0
  %4806 = vdwg.mxu0
  %vm4807 = vcmask 319488
  %4808 = vst.msk [vmem:[%s2] sm:$0x1] %vm4807, %v4804
  // Predicated region
  $region10: #{epsilon_theta_pallas.1} parent=0 // pred_check
    _
  $region11: #{epsilon_theta_pallas.1} parent=0 // pred_check_branch
    %4810 = sbr.rel (0) target = $region13
  $region12: #{epsilon_theta_pallas.1} parent=0 // pred_region
    _
  $region13: #{epsilon_theta_pallas.1} parent=0 // pred_fallthru
    _
  // Predicated region
  $region14: #{epsilon_theta_pallas.1} parent=0 // pred_check
    _
  $region15: #{epsilon_theta_pallas.1} parent=0 // pred_check_branch
    %4812 = sbr.rel (0) target = $region17
  $region16: #{epsilon_theta_pallas.1} parent=0 // pred_region
    _
  $region17: #{epsilon_theta_pallas.1} parent=0 // pred_fallthru
    _

</llo_original>
